<compile_context>
chip_gen: v7x
topology: tpu7x:2x2x1
jax: 0.10.0
libtpu: 0.0.40
codegen_flags: <defaults>
</compile_context>

<pallas_src>
import functools
import math

import jax
import jax.numpy as jnp
from jax.experimental import pallas as pl
from jax.experimental.pallas import tpu as pltpu

# ----------------------------- config (small) -------------------------------
BATCH = 2
SEQ = 8
VOCAB = 100
HIDDEN = 64
NUM_HEADS = 4
HEAD_DIM = HIDDEN // NUM_HEADS
INTERMEDIATE = 128
NUM_LAYERS = 2
NUM_LABELS = 3
LN_EPS = 1e-5

ROWS = BATCH * SEQ                       # all token rows, flattened
SCORE_ROWS = BATCH * NUM_HEADS * SEQ     # stacked (batch, head) score rows


# ------------------------------ kernel helpers -------------------------------
def _layer_norm(x, gamma, beta):
    mean = jnp.mean(x, axis=-1, keepdims=True)
    var = jnp.mean((x - mean) ** 2, axis=-1, keepdims=True)
    return (x - mean) * jax.lax.rsqrt(var + LN_EPS) * gamma + beta


# -------------------- Pallas kernel: fully fused forward ----------------------
def fused_forward_kernel(
    emb_ref, amask_ref, onehot_ref,
    embg_ref, embb_ref,
    wqkv_ref, bqkv_ref, wo_ref, bo_ref,
    ln1g_ref, ln1b_ref, w1_ref, b1_ref, w2_ref, b2_ref, ln2g_ref, ln2b_ref,
    wp_ref, bp_ref, wc_ref, bc_ref,
    logits_ref, loss_ref,
    scores_sc, ctx_sc,
):
    scale = 1.0 / math.sqrt(HEAD_DIM)

    # Embedding LayerNorm: hidden stays (B*S, H) f32 for the whole pass.
    hidden = _layer_norm(emb_ref[...], embg_ref[...], embb_ref[...])
    amask = amask_ref[...]                           # (B*NH*S, S) additive mask

    for l in range(NUM_LAYERS):                      # static unroll over layers
        x = hidden
        xb = x.astype(jnp.bfloat16)                  # cast once per layer

        # Fused QKV projection: (B*S, H) @ (H, 3H) -> (B*S, 3H), one bias add.
        qkv = jnp.dot(xb, wqkv_ref[l],
                      preferred_element_type=jnp.float32) + bqkv_ref[l]
        qkvb = qkv.astype(jnp.bfloat16)              # single cast reused below

        # Per-(batch, head) score blocks written into one stacked scratch at
        # static offsets (no concatenates / relayout copies).
        for b in range(BATCH):
            r0 = b * SEQ
            for h in range(NUM_HEADS):
                c0 = h * HEAD_DIM
                row0 = (b * NUM_HEADS + h) * SEQ
                scores_sc[row0:row0 + SEQ, :] = jax.lax.dot_general(
                    qkvb[r0:r0 + SEQ, c0:c0 + HEAD_DIM],
                    qkvb[r0:r0 + SEQ, HIDDEN + c0:HIDDEN + c0 + HEAD_DIM],
                    (((1,), (1,)), ((), ())),
                    preferred_element_type=jnp.float32)          # (S, S)

        # One softmax chain for ALL batches and heads.
        s = scores_sc[...] * scale + amask                       # (B*NH*S, S)
        s = s - jnp.max(s, axis=-1, keepdims=True)
        p = jnp.exp(s)
        p = p * pl.reciprocal(jnp.sum(p, axis=-1, keepdims=True), approx=True)
        pb = p.astype(jnp.bfloat16)

        # Per-head contexts written into contiguous column ranges of a (B*S, H)
        # scratch so the output projection is a single matmul.
        for b in range(BATCH):
            r0 = b * SEQ
            for h in range(NUM_HEADS):
                c0 = h * HEAD_DIM
                row0 = (b * NUM_HEADS + h) * SEQ
                ctx_sc[r0:r0 + SEQ, c0:c0 + HEAD_DIM] = jnp.dot(
                    pb[row0:row0 + SEQ, :],
                    qkvb[r0:r0 + SEQ, 2 * HIDDEN + c0:2 * HIDDEN + c0 + HEAD_DIM],
                    preferred_element_type=jnp.float32)

        # Single output projection for all heads & batches, residual + LN.
        attn_out = jnp.dot(ctx_sc[...].astype(jnp.bfloat16), wo_ref[l],
                           preferred_element_type=jnp.float32) + bo_ref[l]
        h1 = _layer_norm(x + attn_out, ln1g_ref[l], ln1b_ref[l])

        # Feed-forward.
        h1b = h1.astype(jnp.bfloat16)
        ff = jnp.dot(h1b, w1_ref[l],
                     preferred_element_type=jnp.float32) + b1_ref[l]
        ff = jax.nn.gelu(ff, approximate=True)  # TODO(synk): HF RoBERTa uses exact erf GELU
        ff = jnp.dot(ff.astype(jnp.bfloat16), w2_ref[l],
                     preferred_element_type=jnp.float32) + b2_ref[l]
        hidden = _layer_norm(h1 + ff, ln2g_ref[l], ln2b_ref[l])

    # Pooler + classifier on ALL rows (same MXU latency as B rows at this
    # shape), then CLS rows (0, SEQ, ...) are copied into the output — no
    # strided gather / concatenate.
    hb = hidden.astype(jnp.bfloat16)
    pooled_all = jnp.tanh(
        jnp.dot(hb, wp_ref[...], preferred_element_type=jnp.float32)
        + bp_ref[...])                                            # (B*S, H)
    logits_all = (jnp.dot(pooled_all.astype(jnp.bfloat16), wc_ref[...],
                          preferred_element_type=jnp.float32)
                  + bc_ref[...])                                  # (B*S, NL)

    for b in range(BATCH):
        logits_ref[b:b + 1, :] = logits_all[b * SEQ:b * SEQ + 1, :]

    # CrossEntropyLoss(reduction='mean') in f32.  The one-hot mask is expanded
    # to (B*S, NL) in the wrapper with zeros on non-CLS rows, so those rows
    # contribute nothing and no row gather is needed.
    m = jnp.max(logits_all, axis=-1, keepdims=True)
    z = logits_all - m
    lse = jnp.log(jnp.sum(jnp.exp(z), axis=-1, keepdims=True))
    logp = z - lse
    loss = -jnp.sum(onehot_ref[...] * logp) / BATCH
    loss_ref[...] = loss.reshape(1, 1)


# ------------------------------- parameters ----------------------------------
def init_params(key):
    std = 0.02
    ks = jax.random.split(key, 10)
    L, H, F = NUM_LAYERS, HIDDEN, INTERMEDIATE

    def dense(k, shape):
        # bf16 matmul operands (f32 accumulation happens in-kernel).
        return (jax.random.normal(k, shape, jnp.float32) * std).astype(jnp.bfloat16)

    params = {
        "word_emb": jax.random.normal(ks[0], (VOCAB, H), jnp.float32) * std,
        "pos_emb": jax.random.normal(ks[1], (SEQ, H), jnp.float32) * std,
        "emb_ln_g": jnp.ones((1, H), jnp.float32),
        "emb_ln_b": jnp.zeros((1, H), jnp.float32),
        # per-layer weights stacked along a leading layer axis;
        # Q/K/V fused into one (H, 3H) weight per layer.
        "wqkv": dense(ks[2], (L, H, 3 * H)),
        "bqkv": jnp.zeros((L, 1, 3 * H), jnp.float32),
        "wo": dense(ks[5], (L, H, H)), "bo": jnp.zeros((L, 1, H), jnp.float32),
        "ln1_g": jnp.ones((L, 1, H), jnp.float32),
        "ln1_b": jnp.zeros((L, 1, H), jnp.float32),
        "w1": dense(ks[6], (L, H, F)), "b1": jnp.zeros((L, 1, F), jnp.float32),
        "w2": dense(ks[7], (L, F, H)), "b2": jnp.zeros((L, 1, H), jnp.float32),
        "ln2_g": jnp.ones((L, 1, H), jnp.float32),
        "ln2_b": jnp.zeros((L, 1, H), jnp.float32),
        "pooler_w": dense(ks[8], (H, H)),
        "pooler_b": jnp.zeros((1, H), jnp.float32),
        "cls_w": dense(ks[9], (H, NUM_LABELS)),
        "cls_b": jnp.zeros((1, NUM_LABELS), jnp.float32),
    }
    return params


# ------------------------------ forward (glue) --------------------------------
@functools.partial(jax.jit, static_argnames=())
def forward(params, input_ids, attention_mask, labels):
    B, S = input_ids.shape
    # TODO(synk): token_type embeddings and RoBERTa pad-aware position ids omitted.
    pos = jnp.arange(S, dtype=jnp.int32)
    embed = params["word_emb"][input_ids] + params["pos_emb"][pos][None, :, :]
    embed2d = embed.reshape(B * S, HIDDEN).astype(jnp.float32)

    # Additive attention mask pre-tiled per (batch, head) in the wrapper so the
    # kernel runs one softmax chain over (B*NH*S, S).
    neg = (1.0 - attention_mask.astype(jnp.float32)) * (-1e9)       # (B, S)
    add_mask = jnp.repeat(neg, NUM_HEADS * S, axis=0)                # (B*NH*S, S)

    # Row-expanded one-hot labels: nonzero only on CLS rows (b*SEQ).
    one_hot = jax.nn.one_hot(labels, NUM_LABELS, dtype=jnp.float32)  # (B, NL)
    onehot_all = jnp.zeros((B * S, NUM_LABELS), jnp.float32).at[
        jnp.arange(B) * S].set(one_hot)

    inputs = (
        embed2d, add_mask, onehot_all,
        params["emb_ln_g"], params["emb_ln_b"],
        params["wqkv"], params["bqkv"], params["wo"], params["bo"],
        params["ln1_g"], params["ln1_b"],
        params["w1"], params["b1"], params["w2"], params["b2"],
        params["ln2_g"], params["ln2_b"],
        params["pooler_w"], params["pooler_b"],
        params["cls_w"], params["cls_b"],
    )

    # Advisory cost estimate for XLA's scheduler around the custom call.
    flops_per_layer = (
        2 * B * S * HIDDEN * 3 * HIDDEN                     # fused QKV proj
        + 2 * B * NUM_HEADS * 2 * S * S * HEAD_DIM          # scores + p@v
        + 2 * B * S * HIDDEN * HIDDEN                       # output projection
        + 2 * 2 * B * S * HIDDEN * INTERMEDIATE             # FFN
    )
    flops = (NUM_LAYERS * flops_per_layer
             + 2 * B * S * HIDDEN * HIDDEN                  # pooler (all rows)
             + 2 * B * S * HIDDEN * NUM_LABELS)             # classifier
    transcendentals = (NUM_LAYERS * (B * NUM_HEADS * S * S + B * S * INTERMEDIATE)
                       + B * S * HIDDEN + B * S * NUM_LABELS)
    bytes_accessed = (sum(int(x.size) * x.dtype.itemsize for x in inputs)
                      + B * NUM_LABELS * 4 + 4)

    vmem = pl.BlockSpec(memory_space=pltpu.MemorySpace.VMEM)
    logits, loss = pl.pallas_call(
        fused_forward_kernel,
        out_shape=(jax.ShapeDtypeStruct((B, NUM_LABELS), jnp.float32),
                   jax.ShapeDtypeStruct((1, 1), jnp.float32)),
        in_specs=[vmem] * len(inputs),
        out_specs=(vmem, vmem),
        scratch_shapes=[
            pltpu.VMEM((SCORE_ROWS, SEQ), jnp.float32),   # stacked attn scores
            pltpu.VMEM((ROWS, HIDDEN), jnp.float32),      # per-head contexts
        ],
        cost_estimate=pl.CostEstimate(flops=flops,
                                      transcendentals=transcendentals,
                                      bytes_accessed=bytes_accessed),
    )(*inputs)
    return logits, loss[0, 0]


# ----------------------------------- main -------------------------------------
if __name__ == "__main__":
    key = jax.random.PRNGKey(0)
    k_param, k_ids, k_labels = jax.random.split(key, 3)

    params = init_params(k_param)
    input_ids = jax.random.randint(k_ids, (BATCH, SEQ), 0, VOCAB, dtype=jnp.int32)
    attention_mask = jnp.array(
        [[1, 1, 1, 1, 1, 1, 1, 1],
         [1, 1, 1, 1, 1, 1, 0, 0]], dtype=jnp.int32)
    labels = jax.random.randint(k_labels, (BATCH,), 0, NUM_LABELS, dtype=jnp.int32)

    logits, loss = forward(params, input_ids, attention_mask, labels)
    jax.block_until_ready((logits, loss))

    assert logits.shape == (BATCH, NUM_LABELS)
    assert loss.shape == ()
    assert bool(jnp.isfinite(loss))
    assert bool(jnp.all(jnp.isfinite(logits)))
    print("KERNEL_OK")
</pallas_src>

<mosaic_0001>
module attributes {stable_mosaic.version = 11 : i64} {
  func.func @fused_forward_kernel(%arg0: memref<16x64xf32, #tpu.memory_space<vmem>>, %arg1: memref<64x8xf32, #tpu.memory_space<vmem>>, %arg2: memref<16x3xf32, #tpu.memory_space<vmem>>, %arg3: memref<1x64xf32, #tpu.memory_space<vmem>>, %arg4: memref<1x64xf32, #tpu.memory_space<vmem>>, %arg5: memref<2x64x192xbf16, #tpu.memory_space<vmem>>, %arg6: memref<2x1x192xf32, #tpu.memory_space<vmem>>, %arg7: memref<2x64x64xbf16, #tpu.memory_space<vmem>>, %arg8: memref<2x1x64xf32, #tpu.memory_space<vmem>>, %arg9: memref<2x1x64xf32, #tpu.memory_space<vmem>>, %arg10: memref<2x1x64xf32, #tpu.memory_space<vmem>>, %arg11: memref<2x64x128xbf16, #tpu.memory_space<vmem>>, %arg12: memref<2x1x128xf32, #tpu.memory_space<vmem>>, %arg13: memref<2x128x64xbf16, #tpu.memory_space<vmem>>, %arg14: memref<2x1x64xf32, #tpu.memory_space<vmem>>, %arg15: memref<2x1x64xf32, #tpu.memory_space<vmem>>, %arg16: memref<2x1x64xf32, #tpu.memory_space<vmem>>, %arg17: memref<64x64xbf16, #tpu.memory_space<vmem>>, %arg18: memref<1x64xf32, #tpu.memory_space<vmem>>, %arg19: memref<64x3xbf16, #tpu.memory_space<vmem>>, %arg20: memref<1x3xf32, #tpu.memory_space<vmem>>, %arg21: memref<2x3xf32, #tpu.memory_space<vmem>>, %arg22: memref<1x1xf32, #tpu.memory_space<vmem>>, %arg23: memref<64x8xf32, #tpu.memory_space<vmem>>, %arg24: memref<16x64xf32, #tpu.memory_space<vmem>>) attributes {dimension_semantics = [], scalar_prefetch = 0 : i64, scratch_operands = 2 : i64, tpu.core_type = #tpu.core_type<tc>} {
    %c0 = arith.constant 0 : index
    %c0_0 = arith.constant 0 : index
    %0 = vector.load %arg0[%c0, %c0_0] : memref<16x64xf32, #tpu.memory_space<vmem>>, vector<16x64xf32>
    %c0_1 = arith.constant 0 : index
    %c0_2 = arith.constant 0 : index
    %1 = vector.load %arg3[%c0_1, %c0_2] : memref<1x64xf32, #tpu.memory_space<vmem>>, vector<1x64xf32>
    %c0_3 = arith.constant 0 : index
    %c0_4 = arith.constant 0 : index
    %2 = vector.load %arg4[%c0_3, %c0_4] : memref<1x64xf32, #tpu.memory_space<vmem>>, vector<1x64xf32>
    %cst = arith.constant dense<0.000000e+00> : vector<16xf32>
    %3 = vector.multi_reduction <add>, %0, %cst [1] : vector<16x64xf32> to vector<16xf32>
    %4 = vector.shape_cast %3 : vector<16xf32> to vector<16x1xf32>
    %cst_5 = arith.constant 6.400000e+01 : f32
    %5 = vector.broadcast %cst_5 : f32 to vector<16x1xf32>
    %6 = arith.divf %4, %5 : vector<16x1xf32>
    %7 = vector.broadcast %6 : vector<16x1xf32> to vector<16x64xf32>
    %8 = arith.subf %0, %7 : vector<16x64xf32>
    %9 = arith.mulf %8, %8 : vector<16x64xf32>
    %cst_6 = arith.constant dense<0.000000e+00> : vector<16xf32>
    %10 = vector.multi_reduction <add>, %9, %cst_6 [1] : vector<16x64xf32> to vector<16xf32>
    %11 = vector.shape_cast %10 : vector<16xf32> to vector<16x1xf32>
    %cst_7 = arith.constant 6.400000e+01 : f32
    %12 = vector.broadcast %cst_7 : f32 to vector<16x1xf32>
    %13 = arith.divf %11, %12 : vector<16x1xf32>
    %14 = vector.broadcast %6 : vector<16x1xf32> to vector<16x64xf32>
    %15 = arith.subf %0, %14 : vector<16x64xf32>
    %cst_8 = arith.constant 9.99999974E-6 : f32
    %16 = vector.broadcast %cst_8 : f32 to vector<16x1xf32>
    %17 = arith.addf %13, %16 : vector<16x1xf32>
    %18 = math.rsqrt %17 : vector<16x1xf32>
    %19 = vector.broadcast %18 : vector<16x1xf32> to vector<16x64xf32>
    %20 = arith.mulf %15, %19 : vector<16x64xf32>
    %21 = vector.broadcast %1 : vector<1x64xf32> to vector<16x64xf32>
    %22 = arith.mulf %20, %21 : vector<16x64xf32>
    %23 = vector.broadcast %2 : vector<1x64xf32> to vector<16x64xf32>
    %24 = arith.addf %22, %23 : vector<16x64xf32>
    %c0_9 = arith.constant 0 : index
    %c0_10 = arith.constant 0 : index
    %25 = vector.load %arg1[%c0_9, %c0_10] : memref<64x8xf32, #tpu.memory_space<vmem>>, vector<64x8xf32>
    %26 = arith.truncf %24 : vector<16x64xf32> to vector<16x64xbf16>
    %c0_11 = arith.constant 0 : index
    %c0_12 = arith.constant 0 : index
    %c0_13 = arith.constant 0 : index
    %27 = vector.load %arg5[%c0_11, %c0_12, %c0_13] : memref<2x64x192xbf16, #tpu.memory_space<vmem>>, vector<1x64x192xbf16>
    %28 = vector.shape_cast %27 : vector<1x64x192xbf16> to vector<64x192xbf16>
    %cst_14 = arith.constant dense<0.000000e+00> : vector<16x192xf32>
    %29 = tpu.matmul %26, %28, %cst_14 {dimension_numbers = #tpu.dot_dimension_numbers<[1], [0], [0], [1], [0, 0, 1, 1], [], []>} : vector<16x64xbf16>, vector<64x192xbf16>, vector<16x192xf32> -> vector<16x192xf32>
    %c0_15 = arith.constant 0 : index
    %c0_16 = arith.constant 0 : index
    %c0_17 = arith.constant 0 : index
    %30 = vector.load %arg6[%c0_15, %c0_16, %c0_17] : memref<2x1x192xf32, #tpu.memory_space<vmem>>, vector<1x1x192xf32>
    %31 = vector.shape_cast %30 : vector<1x1x192xf32> to vector<1x192xf32>
    %32 = vector.broadcast %31 : vector<1x192xf32> to vector<16x192xf32>
    %33 = arith.addf %29, %32 : vector<16x192xf32>
    %34 = arith.truncf %33 : vector<16x192xf32> to vector<16x192xbf16>
    %35 = vector.extract_strided_slice %34 {offsets = [0, 0], sizes = [8, 16], strides = [1, 1]} : vector<16x192xbf16> to vector<8x16xbf16>
    %36 = vector.extract_strided_slice %34 {offsets = [0, 64], sizes = [8, 16], strides = [1, 1]} : vector<16x192xbf16> to vector<8x16xbf16>
    %cst_18 = arith.constant dense<0.000000e+00> : vector<8x8xf32>
    %37 = tpu.matmul %35, %36, %cst_18 {dimension_numbers = #tpu.dot_dimension_numbers<[1], [1], [0], [0], [0, 0, 1, 0], [], []>} : vector<8x16xbf16>, vector<8x16xbf16>, vector<8x8xf32> -> vector<8x8xf32>
    %c0_19 = arith.constant 0 : index
    %c0_20 = arith.constant 0 : index
    %38 = vector.load %arg23[%c0_19, %c0_20] : memref<64x8xf32, #tpu.memory_space<vmem>>, vector<8x8xf32>
    tpu.vector_store %arg23[%c0_19, %c0_20], %37 {strides = array<i32>} : memref<64x8xf32, #tpu.memory_space<vmem>>, vector<8x8xf32>,
    %39 = vector.extract_strided_slice %34 {offsets = [0, 16], sizes = [8, 16], strides = [1, 1]} : vector<16x192xbf16> to vector<8x16xbf16>
    %40 = vector.extract_strided_slice %34 {offsets = [0, 80], sizes = [8, 16], strides = [1, 1]} : vector<16x192xbf16> to vector<8x16xbf16>
    %cst_21 = arith.constant dense<0.000000e+00> : vector<8x8xf32>
    %41 = tpu.matmul %39, %40, %cst_21 {dimension_numbers = #tpu.dot_dimension_numbers<[1], [1], [0], [0], [0, 0, 1, 0], [], []>} : vector<8x16xbf16>, vector<8x16xbf16>, vector<8x8xf32> -> vector<8x8xf32>
    %c8 = arith.constant 8 : index
    %c0_22 = arith.constant 0 : index
    %42 = vector.load %arg23[%c8, %c0_22] : memref<64x8xf32, #tpu.memory_space<vmem>>, vector<8x8xf32>
    tpu.vector_store %arg23[%c8, %c0_22], %41 {strides = array<i32>} : memref<64x8xf32, #tpu.memory_space<vmem>>, vector<8x8xf32>,
    %43 = vector.extract_strided_slice %34 {offsets = [0, 32], sizes = [8, 16], strides = [1, 1]} : vector<16x192xbf16> to vector<8x16xbf16>
    %44 = vector.extract_strided_slice %34 {offsets = [0, 96], sizes = [8, 16], strides = [1, 1]} : vector<16x192xbf16> to vector<8x16xbf16>
    %cst_23 = arith.constant dense<0.000000e+00> : vector<8x8xf32>
    %45 = tpu.matmul %43, %44, %cst_23 {dimension_numbers = #tpu.dot_dimension_numbers<[1], [1], [0], [0], [0, 0, 1, 0], [], []>} : vector<8x16xbf16>, vector<8x16xbf16>, vector<8x8xf32> -> vector<8x8xf32>
    %c16 = arith.constant 16 : index
    %c0_24 = arith.constant 0 : index
    %46 = vector.load %arg23[%c16, %c0_24] : memref<64x8xf32, #tpu.memory_space<vmem>>, vector<8x8xf32>
    tpu.vector_store %arg23[%c16, %c0_24], %45 {strides = array<i32>} : memref<64x8xf32, #tpu.memory_space<vmem>>, vector<8x8xf32>,
    %47 = vector.extract_strided_slice %34 {offsets = [0, 48], sizes = [8, 16], strides = [1, 1]} : vector<16x192xbf16> to vector<8x16xbf16>
    %48 = vector.extract_strided_slice %34 {offsets = [0, 112], sizes = [8, 16], strides = [1, 1]} : vector<16x192xbf16> to vector<8x16xbf16>
    %cst_25 = arith.constant dense<0.000000e+00> : vector<8x8xf32>
    %49 = tpu.matmul %47, %48, %cst_25 {dimension_numbers = #tpu.dot_dimension_numbers<[1], [1], [0], [0], [0, 0, 1, 0], [], []>} : vector<8x16xbf16>, vector<8x16xbf16>, vector<8x8xf32> -> vector<8x8xf32>
    %c24 = arith.constant 24 : index
    %c0_26 = arith.constant 0 : index
    %50 = vector.load %arg23[%c24, %c0_26] : memref<64x8xf32, #tpu.memory_space<vmem>>, vector<8x8xf32>
    tpu.vector_store %arg23[%c24, %c0_26], %49 {strides = array<i32>} : memref<64x8xf32, #tpu.memory_space<vmem>>, vector<8x8xf32>,
    %51 = vector.extract_strided_slice %34 {offsets = [8, 0], sizes = [8, 16], strides = [1, 1]} : vector<16x192xbf16> to vector<8x16xbf16>
    %52 = vector.extract_strided_slice %34 {offsets = [8, 64], sizes = [8, 16], strides = [1, 1]} : vector<16x192xbf16> to vector<8x16xbf16>
    %cst_27 = arith.constant dense<0.000000e+00> : vector<8x8xf32>
    %53 = tpu.matmul %51, %52, %cst_27 {dimension_numbers = #tpu.dot_dimension_numbers<[1], [1], [0], [0], [0, 0, 1, 0], [], []>} : vector<8x16xbf16>, vector<8x16xbf16>, vector<8x8xf32> -> vector<8x8xf32>
    %c32 = arith.constant 32 : index
    %c0_28 = arith.constant 0 : index
    %54 = vector.load %arg23[%c32, %c0_28] : memref<64x8xf32, #tpu.memory_space<vmem>>, vector<8x8xf32>
    tpu.vector_store %arg23[%c32, %c0_28], %53 {strides = array<i32>} : memref<64x8xf32, #tpu.memory_space<vmem>>, vector<8x8xf32>,
    %55 = vector.extract_strided_slice %34 {offsets = [8, 16], sizes = [8, 16], strides = [1, 1]} : vector<16x192xbf16> to vector<8x16xbf16>
    %56 = vector.extract_strided_slice %34 {offsets = [8, 80], sizes = [8, 16], strides = [1, 1]} : vector<16x192xbf16> to vector<8x16xbf16>
    %cst_29 = arith.constant dense<0.000000e+00> : vector<8x8xf32>
    %57 = tpu.matmul %55, %56, %cst_29 {dimension_numbers = #tpu.dot_dimension_numbers<[1], [1], [0], [0], [0, 0, 1, 0], [], []>} : vector<8x16xbf16>, vector<8x16xbf16>, vector<8x8xf32> -> vector<8x8xf32>
    %c40 = arith.constant 40 : index
    %c0_30 = arith.constant 0 : index
    %58 = vector.load %arg23[%c40, %c0_30] : memref<64x8xf32, #tpu.memory_space<vmem>>, vector<8x8xf32>
    tpu.vector_store %arg23[%c40, %c0_30], %57 {strides = array<i32>} : memref<64x8xf32, #tpu.memory_space<vmem>>, vector<8x8xf32>,
    %59 = vector.extract_strided_slice %34 {offsets = [8, 32], sizes = [8, 16], strides = [1, 1]} : vector<16x192xbf16> to vector<8x16xbf16>
    %60 = vector.extract_strided_slice %34 {offsets = [8, 96], sizes = [8, 16], strides = [1, 1]} : vector<16x192xbf16> to vector<8x16xbf16>
    %cst_31 = arith.constant dense<0.000000e+00> : vector<8x8xf32>
    %61 = tpu.matmul %59, %60, %cst_31 {dimension_numbers = #tpu.dot_dimension_numbers<[1], [1], [0], [0], [0, 0, 1, 0], [], []>} : vector<8x16xbf16>, vector<8x16xbf16>, vector<8x8xf32> -> vector<8x8xf32>
    %c48 = arith.constant 48 : index
    %c0_32 = arith.constant 0 : index
    %62 = vector.load %arg23[%c48, %c0_32] : memref<64x8xf32, #tpu.memory_space<vmem>>, vector<8x8xf32>
    tpu.vector_store %arg23[%c48, %c0_32], %61 {strides = array<i32>} : memref<64x8xf32, #tpu.memory_space<vmem>>, vector<8x8xf32>,
    %63 = vector.extract_strided_slice %34 {offsets = [8, 48], sizes = [8, 16], strides = [1, 1]} : vector<16x192xbf16> to vector<8x16xbf16>
    %64 = vector.extract_strided_slice %34 {offsets = [8, 112], sizes = [8, 16], strides = [1, 1]} : vector<16x192xbf16> to vector<8x16xbf16>
    %cst_33 = arith.constant dense<0.000000e+00> : vector<8x8xf32>
    %65 = tpu.matmul %63, %64, %cst_33 {dimension_numbers = #tpu.dot_dimension_numbers<[1], [1], [0], [0], [0, 0, 1, 0], [], []>} : vector<8x16xbf16>, vector<8x16xbf16>, vector<8x8xf32> -> vector<8x8xf32>
    %c56 = arith.constant 56 : index
    %c0_34 = arith.constant 0 : index
    %66 = vector.load %arg23[%c56, %c0_34] : memref<64x8xf32, #tpu.memory_space<vmem>>, vector<8x8xf32>
    tpu.vector_store %arg23[%c56, %c0_34], %65 {strides = array<i32>} : memref<64x8xf32, #tpu.memory_space<vmem>>, vector<8x8xf32>,
    %c0_35 = arith.constant 0 : index
    %c0_36 = arith.constant 0 : index
    %67 = vector.load %arg23[%c0_35, %c0_36] : memref<64x8xf32, #tpu.memory_space<vmem>>, vector<64x8xf32>
    %cst_37 = arith.constant 2.500000e-01 : f32
    %68 = vector.broadcast %cst_37 : f32 to vector<64x8xf32>
    %69 = arith.mulf %67, %68 : vector<64x8xf32>
    %70 = arith.addf %69, %25 : vector<64x8xf32>
    %cst_38 = arith.constant dense<0xFF800000> : vector<64xf32>
    %71 = vector.multi_reduction <maximumf>, %70, %cst_38 [1] : vector<64x8xf32> to vector<64xf32>
    %72 = vector.shape_cast %71 : vector<64xf32> to vector<64x1xf32>
    %73 = vector.broadcast %72 : vector<64x1xf32> to vector<64x8xf32>
    %74 = arith.subf %70, %73 : vector<64x8xf32>
    %75 = math.exp %74 : vector<64x8xf32>
    %cst_39 = arith.constant dense<0.000000e+00> : vector<64xf32>
    %76 = vector.multi_reduction <add>, %75, %cst_39 [1] : vector<64x8xf32> to vector<64xf32>
    %77 = vector.shape_cast %76 : vector<64xf32> to vector<64x1xf32>
    %78 = tpu.reciprocal %77 {approx = true} : vector<64x1xf32> -> vector<64x1xf32>
    %79 = vector.broadcast %78 : vector<64x1xf32> to vector<64x8xf32>
    %80 = arith.mulf %75, %79 : vector<64x8xf32>
    %81 = arith.truncf %80 : vector<64x8xf32> to vector<64x8xbf16>
    %82 = vector.extract_strided_slice %81 {offsets = [0, 0], sizes = [8, 8], strides = [1, 1]} : vector<64x8xbf16> to vector<8x8xbf16>
    %83 = vector.extract_strided_slice %34 {offsets = [0, 128], sizes = [8, 16], strides = [1, 1]} : vector<16x192xbf16> to vector<8x16xbf16>
    %cst_40 = arith.constant dense<0.000000e+00> : vector<8x16xf32>
    %84 = tpu.matmul %82, %83, %cst_40 {dimension_numbers = #tpu.dot_dimension_numbers<[1], [0], [0], [1], [0, 0, 1, 1], [], []>} : vector<8x8xbf16>, vector<8x16xbf16>, vector<8x16xf32> -> vector<8x16xf32>
    %c0_41 = arith.constant 0 : index
    %c0_42 = arith.constant 0 : index
    %85 = vector.load %arg24[%c0_41, %c0_42] : memref<16x64xf32, #tpu.memory_space<vmem>>, vector<8x16xf32>
    tpu.vector_store %arg24[%c0_41, %c0_42], %84 {strides = array<i32>} : memref<16x64xf32, #tpu.memory_space<vmem>>, vector<8x16xf32>,
    %86 = vector.extract_strided_slice %81 {offsets = [8, 0], sizes = [8, 8], strides = [1, 1]} : vector<64x8xbf16> to vector<8x8xbf16>
    %87 = vector.extract_strided_slice %34 {offsets = [0, 144], sizes = [8, 16], strides = [1, 1]} : vector<16x192xbf16> to vector<8x16xbf16>
    %cst_43 = arith.constant dense<0.000000e+00> : vector<8x16xf32>
    %88 = tpu.matmul %86, %87, %cst_43 {dimension_numbers = #tpu.dot_dimension_numbers<[1], [0], [0], [1], [0, 0, 1, 1], [], []>} : vector<8x8xbf16>, vector<8x16xbf16>, vector<8x16xf32> -> vector<8x16xf32>
    %c0_44 = arith.constant 0 : index
    %c16_45 = arith.constant 16 : index
    %89 = vector.load %arg24[%c0_44, %c16_45] : memref<16x64xf32, #tpu.memory_space<vmem>>, vector<8x16xf32>
    tpu.vector_store %arg24[%c0_44, %c16_45], %88 {strides = array<i32>} : memref<16x64xf32, #tpu.memory_space<vmem>>, vector<8x16xf32>,
    %90 = vector.extract_strided_slice %81 {offsets = [16, 0], sizes = [8, 8], strides = [1, 1]} : vector<64x8xbf16> to vector<8x8xbf16>
    %91 = vector.extract_strided_slice %34 {offsets = [0, 160], sizes = [8, 16], strides = [1, 1]} : vector<16x192xbf16> to vector<8x16xbf16>
    %cst_46 = arith.constant dense<0.000000e+00> : vector<8x16xf32>
    %92 = tpu.matmul %90, %91, %cst_46 {dimension_numbers = #tpu.dot_dimension_numbers<[1], [0], [0], [1], [0, 0, 1, 1], [], []>} : vector<8x8xbf16>, vector<8x16xbf16>, vector<8x16xf32> -> vector<8x16xf32>
    %c0_47 = arith.constant 0 : index
    %c32_48 = arith.constant 32 : index
    %93 = vector.load %arg24[%c0_47, %c32_48] : memref<16x64xf32, #tpu.memory_space<vmem>>, vector<8x16xf32>
    tpu.vector_store %arg24[%c0_47, %c32_48], %92 {strides = array<i32>} : memref<16x64xf32, #tpu.memory_space<vmem>>, vector<8x16xf32>,
    %94 = vector.extract_strided_slice %81 {offsets = [24, 0], sizes = [8, 8], strides = [1, 1]} : vector<64x8xbf16> to vector<8x8xbf16>
    %95 = vector.extract_strided_slice %34 {offsets = [0, 176], sizes = [8, 16], strides = [1, 1]} : vector<16x192xbf16> to vector<8x16xbf16>
    %cst_49 = arith.constant dense<0.000000e+00> : vector<8x16xf32>
    %96 = tpu.matmul %94, %95, %cst_49 {dimension_numbers = #tpu.dot_dimension_numbers<[1], [0], [0], [1], [0, 0, 1, 1], [], []>} : vector<8x8xbf16>, vector<8x16xbf16>, vector<8x16xf32> -> vector<8x16xf32>
    %c0_50 = arith.constant 0 : index
    %c48_51 = arith.constant 48 : index
    %97 = vector.load %arg24[%c0_50, %c48_51] : memref<16x64xf32, #tpu.memory_space<vmem>>, vector<8x16xf32>
    tpu.vector_store %arg24[%c0_50, %c48_51], %96 {strides = array<i32>} : memref<16x64xf32, #tpu.memory_space<vmem>>, vector<8x16xf32>,
    %98 = vector.extract_strided_slice %81 {offsets = [32, 0], sizes = [8, 8], strides = [1, 1]} : vector<64x8xbf16> to vector<8x8xbf16>
    %99 = vector.extract_strided_slice %34 {offsets = [8, 128], sizes = [8, 16], strides = [1, 1]} : vector<16x192xbf16> to vector<8x16xbf16>
    %cst_52 = arith.constant dense<0.000000e+00> : vector<8x16xf32>
    %100 = tpu.matmul %98, %99, %cst_52 {dimension_numbers = #tpu.dot_dimension_numbers<[1], [0], [0], [1], [0, 0, 1, 1], [], []>} : vector<8x8xbf16>, vector<8x16xbf16>, vector<8x16xf32> -> vector<8x16xf32>
    %c8_53 = arith.constant 8 : index
    %c0_54 = arith.constant 0 : index
    %101 = vector.load %arg24[%c8_53, %c0_54] : memref<16x64xf32, #tpu.memory_space<vmem>>, vector<8x16xf32>
    tpu.vector_store %arg24[%c8_53, %c0_54], %100 {strides = array<i32>} : memref<16x64xf32, #tpu.memory_space<vmem>>, vector<8x16xf32>,
    %102 = vector.extract_strided_slice %81 {offsets = [40, 0], sizes = [8, 8], strides = [1, 1]} : vector<64x8xbf16> to vector<8x8xbf16>
    %103 = vector.extract_strided_slice %34 {offsets = [8, 144], sizes = [8, 16], strides = [1, 1]} : vector<16x192xbf16> to vector<8x16xbf16>
    %cst_55 = arith.constant dense<0.000000e+00> : vector<8x16xf32>
    %104 = tpu.matmul %102, %103, %cst_55 {dimension_numbers = #tpu.dot_dimension_numbers<[1], [0], [0], [1], [0, 0, 1, 1], [], []>} : vector<8x8xbf16>, vector<8x16xbf16>, vector<8x16xf32> -> vector<8x16xf32>
    %c8_56 = arith.constant 8 : index
    %c16_57 = arith.constant 16 : index
    %105 = vector.load %arg24[%c8_56, %c16_57] : memref<16x64xf32, #tpu.memory_space<vmem>>, vector<8x16xf32>
    tpu.vector_store %arg24[%c8_56, %c16_57], %104 {strides = array<i32>} : memref<16x64xf32, #tpu.memory_space<vmem>>, vector<8x16xf32>,
    %106 = vector.extract_strided_slice %81 {offsets = [48, 0], sizes = [8, 8], strides = [1, 1]} : vector<64x8xbf16> to vector<8x8xbf16>
    %107 = vector.extract_strided_slice %34 {offsets = [8, 160], sizes = [8, 16], strides = [1, 1]} : vector<16x192xbf16> to vector<8x16xbf16>
    %cst_58 = arith.constant dense<0.000000e+00> : vector<8x16xf32>
    %108 = tpu.matmul %106, %107, %cst_58 {dimension_numbers = #tpu.dot_dimension_numbers<[1], [0], [0], [1], [0, 0, 1, 1], [], []>} : vector<8x8xbf16>, vector<8x16xbf16>, vector<8x16xf32> -> vector<8x16xf32>
    %c8_59 = arith.constant 8 : index
    %c32_60 = arith.constant 32 : index
    %109 = vector.load %arg24[%c8_59, %c32_60] : memref<16x64xf32, #tpu.memory_space<vmem>>, vector<8x16xf32>
    tpu.vector_store %arg24[%c8_59, %c32_60], %108 {strides = array<i32>} : memref<16x64xf32, #tpu.memory_space<vmem>>, vector<8x16xf32>,
    %110 = vector.extract_strided_slice %81 {offsets = [56, 0], sizes = [8, 8], strides = [1, 1]} : vector<64x8xbf16> to vector<8x8xbf16>
    %111 = vector.extract_strided_slice %34 {offsets = [8, 176], sizes = [8, 16], strides = [1, 1]} : vector<16x192xbf16> to vector<8x16xbf16>
    %cst_61 = arith.constant dense<0.000000e+00> : vector<8x16xf32>
    %112 = tpu.matmul %110, %111, %cst_61 {dimension_numbers = #tpu.dot_dimension_numbers<[1], [0], [0], [1], [0, 0, 1, 1], [], []>} : vector<8x8xbf16>, vector<8x16xbf16>, vector<8x16xf32> -> vector<8x16xf32>
    %c8_62 = arith.constant 8 : index
    %c48_63 = arith.constant 48 : index
    %113 = vector.load %arg24[%c8_62, %c48_63] : memref<16x64xf32, #tpu.memory_space<vmem>>, vector<8x16xf32>
    tpu.vector_store %arg24[%c8_62, %c48_63], %112 {strides = array<i32>} : memref<16x64xf32, #tpu.memory_space<vmem>>, vector<8x16xf32>,
    %c0_64 = arith.constant 0 : index
    %c0_65 = arith.constant 0 : index
    %114 = vector.load %arg24[%c0_64, %c0_65] : memref<16x64xf32, #tpu.memory_space<vmem>>, vector<16x64xf32>
    %115 = arith.truncf %114 : vector<16x64xf32> to vector<16x64xbf16>
    %c0_66 = arith.constant 0 : index
    %c0_67 = arith.constant 0 : index
    %c0_68 = arith.constant 0 : index
    %116 = vector.load %arg7[%c0_66, %c0_67, %c0_68] : memref<2x64x64xbf16, #tpu.memory_space<vmem>>, vector<1x64x64xbf16>
    %117 = vector.shape_cast %116 : vector<1x64x64xbf16> to vector<64x64xbf16>
    %cst_69 = arith.constant dense<0.000000e+00> : vector<16x64xf32>
    %118 = tpu.matmul %115, %117, %cst_69 {dimension_numbers = #tpu.dot_dimension_numbers<[1], [0], [0], [1], [0, 0, 1, 1], [], []>} : vector<16x64xbf16>, vector<64x64xbf16>, vector<16x64xf32> -> vector<16x64xf32>
    %c0_70 = arith.constant 0 : index
    %c0_71 = arith.constant 0 : index
    %c0_72 = arith.constant 0 : index
    %119 = vector.load %arg8[%c0_70, %c0_71, %c0_72] : memref<2x1x64xf32, #tpu.memory_space<vmem>>, vector<1x1x64xf32>
    %120 = vector.shape_cast %119 : vector<1x1x64xf32> to vector<1x64xf32>
    %121 = vector.broadcast %120 : vector<1x64xf32> to vector<16x64xf32>
    %122 = arith.addf %118, %121 : vector<16x64xf32>
    %123 = arith.addf %24, %122 : vector<16x64xf32>
    %c0_73 = arith.constant 0 : index
    %c0_74 = arith.constant 0 : index
    %c0_75 = arith.constant 0 : index
    %124 = vector.load %arg9[%c0_73, %c0_74, %c0_75] : memref<2x1x64xf32, #tpu.memory_space<vmem>>, vector<1x1x64xf32>
    %125 = vector.shape_cast %124 : vector<1x1x64xf32> to vector<1x64xf32>
    %c0_76 = arith.constant 0 : index
    %c0_77 = arith.constant 0 : index
    %c0_78 = arith.constant 0 : index
    %126 = vector.load %arg10[%c0_76, %c0_77, %c0_78] : memref<2x1x64xf32, #tpu.memory_space<vmem>>, vector<1x1x64xf32>
    %127 = vector.shape_cast %126 : vector<1x1x64xf32> to vector<1x64xf32>
    %cst_79 = arith.constant dense<0.000000e+00> : vector<16xf32>
    %128 = vector.multi_reduction <add>, %123, %cst_79 [1] : vector<16x64xf32> to vector<16xf32>
    %129 = vector.shape_cast %128 : vector<16xf32> to vector<16x1xf32>
    %cst_80 = arith.constant 6.400000e+01 : f32
    %130 = vector.broadcast %cst_80 : f32 to vector<16x1xf32>
    %131 = arith.divf %129, %130 : vector<16x1xf32>
    %132 = vector.broadcast %131 : vector<16x1xf32> to vector<16x64xf32>
    %133 = arith.subf %123, %132 : vector<16x64xf32>
    %134 = arith.mulf %133, %133 : vector<16x64xf32>
    %cst_81 = arith.constant dense<0.000000e+00> : vector<16xf32>
    %135 = vector.multi_reduction <add>, %134, %cst_81 [1] : vector<16x64xf32> to vector<16xf32>
    %136 = vector.shape_cast %135 : vector<16xf32> to vector<16x1xf32>
    %cst_82 = arith.constant 6.400000e+01 : f32
    %137 = vector.broadcast %cst_82 : f32 to vector<16x1xf32>
    %138 = arith.divf %136, %137 : vector<16x1xf32>
    %139 = vector.broadcast %131 : vector<16x1xf32> to vector<16x64xf32>
    %140 = arith.subf %123, %139 : vector<16x64xf32>
    %cst_83 = arith.constant 9.99999974E-6 : f32
    %141 = vector.broadcast %cst_83 : f32 to vector<16x1xf32>
    %142 = arith.addf %138, %141 : vector<16x1xf32>
    %143 = math.rsqrt %142 : vector<16x1xf32>
    %144 = vector.broadcast %143 : vector<16x1xf32> to vector<16x64xf32>
    %145 = arith.mulf %140, %144 : vector<16x64xf32>
    %146 = vector.broadcast %125 : vector<1x64xf32> to vector<16x64xf32>
    %147 = arith.mulf %145, %146 : vector<16x64xf32>
    %148 = vector.broadcast %127 : vector<1x64xf32> to vector<16x64xf32>
    %149 = arith.addf %147, %148 : vector<16x64xf32>
    %150 = arith.truncf %149 : vector<16x64xf32> to vector<16x64xbf16>
    %c0_84 = arith.constant 0 : index
    %c0_85 = arith.constant 0 : index
    %c0_86 = arith.constant 0 : index
    %151 = vector.load %arg11[%c0_84, %c0_85, %c0_86] : memref<2x64x128xbf16, #tpu.memory_space<vmem>>, vector<1x64x128xbf16>
    %152 = vector.shape_cast %151 : vector<1x64x128xbf16> to vector<64x128xbf16>
    %cst_87 = arith.constant dense<0.000000e+00> : vector<16x128xf32>
    %153 = tpu.matmul %150, %152, %cst_87 {dimension_numbers = #tpu.dot_dimension_numbers<[1], [0], [0], [1], [0, 0, 1, 1], [], []>} : vector<16x64xbf16>, vector<64x128xbf16>, vector<16x128xf32> -> vector<16x128xf32>
    %c0_88 = arith.constant 0 : index
    %c0_89 = arith.constant 0 : index
    %c0_90 = arith.constant 0 : index
    %154 = vector.load %arg12[%c0_88, %c0_89, %c0_90] : memref<2x1x128xf32, #tpu.memory_space<vmem>>, vector<1x1x128xf32>
    %155 = vector.shape_cast %154 : vector<1x1x128xf32> to vector<1x128xf32>
    %156 = vector.broadcast %155 : vector<1x128xf32> to vector<16x128xf32>
    %157 = arith.addf %153, %156 : vector<16x128xf32>
    %158 = arith.mulf %157, %157 : vector<16x128xf32>
    %159 = arith.mulf %157, %158 : vector<16x128xf32>
    %cst_91 = arith.constant 4.471500e-02 : f32
    %160 = vector.broadcast %cst_91 : f32 to vector<16x128xf32>
    %161 = arith.mulf %160, %159 : vector<16x128xf32>
    %162 = arith.addf %157, %161 : vector<16x128xf32>
    %cst_92 = arith.constant 0.797884583 : f32
    %163 = vector.broadcast %cst_92 : f32 to vector<16x128xf32>
    %164 = arith.mulf %163, %162 : vector<16x128xf32>
    %165 = math.tanh %164 : vector<16x128xf32>
    %cst_93 = arith.constant 1.000000e+00 : f32
    %166 = vector.broadcast %cst_93 : f32 to vector<16x128xf32>
    %167 = arith.addf %166, %165 : vector<16x128xf32>
    %cst_94 = arith.constant 5.000000e-01 : f32
    %168 = vector.broadcast %cst_94 : f32 to vector<16x128xf32>
    %169 = arith.mulf %168, %167 : vector<16x128xf32>
    %170 = arith.mulf %157, %169 : vector<16x128xf32>
    %171 = arith.truncf %170 : vector<16x128xf32> to vector<16x128xbf16>
    %c0_95 = arith.constant 0 : index
    %c0_96 = arith.constant 0 : index
    %c0_97 = arith.constant 0 : index
    %172 = vector.load %arg13[%c0_95, %c0_96, %c0_97] : memref<2x128x64xbf16, #tpu.memory_space<vmem>>, vector<1x128x64xbf16>
    %173 = vector.shape_cast %172 : vector<1x128x64xbf16> to vector<128x64xbf16>
    %cst_98 = arith.constant dense<0.000000e+00> : vector<16x64xf32>
    %174 = tpu.matmul %171, %173, %cst_98 {dimension_numbers = #tpu.dot_dimension_numbers<[1], [0], [0], [1], [0, 0, 1, 1], [], []>} : vector<16x128xbf16>, vector<128x64xbf16>, vector<16x64xf32> -> vector<16x64xf32>
    %c0_99 = arith.constant 0 : index
    %c0_100 = arith.constant 0 : index
    %c0_101 = arith.constant 0 : index
    %175 = vector.load %arg14[%c0_99, %c0_100, %c0_101] : memref<2x1x64xf32, #tpu.memory_space<vmem>>, vector<1x1x64xf32>
    %176 = vector.shape_cast %175 : vector<1x1x64xf32> to vector<1x64xf32>
    %177 = vector.broadcast %176 : vector<1x64xf32> to vector<16x64xf32>
    %178 = arith.addf %174, %177 : vector<16x64xf32>
    %179 = arith.addf %149, %178 : vector<16x64xf32>
    %c0_102 = arith.constant 0 : index
    %c0_103 = arith.constant 0 : index
    %c0_104 = arith.constant 0 : index
    %180 = vector.load %arg15[%c0_102, %c0_103, %c0_104] : memref<2x1x64xf32, #tpu.memory_space<vmem>>, vector<1x1x64xf32>
    %181 = vector.shape_cast %180 : vector<1x1x64xf32> to vector<1x64xf32>
    %c0_105 = arith.constant 0 : index
    %c0_106 = arith.constant 0 : index
    %c0_107 = arith.constant 0 : index
    %182 = vector.load %arg16[%c0_105, %c0_106, %c0_107] : memref<2x1x64xf32, #tpu.memory_space<vmem>>, vector<1x1x64xf32>
    %183 = vector.shape_cast %182 : vector<1x1x64xf32> to vector<1x64xf32>
    %cst_108 = arith.constant dense<0.000000e+00> : vector<16xf32>
    %184 = vector.multi_reduction <add>, %179, %cst_108 [1] : vector<16x64xf32> to vector<16xf32>
    %185 = vector.shape_cast %184 : vector<16xf32> to vector<16x1xf32>
    %cst_109 = arith.constant 6.400000e+01 : f32
    %186 = vector.broadcast %cst_109 : f32 to vector<16x1xf32>
    %187 = arith.divf %185, %186 : vector<16x1xf32>
    %188 = vector.broadcast %187 : vector<16x1xf32> to vector<16x64xf32>
    %189 = arith.subf %179, %188 : vector<16x64xf32>
    %190 = arith.mulf %189, %189 : vector<16x64xf32>
    %cst_110 = arith.constant dense<0.000000e+00> : vector<16xf32>
    %191 = vector.multi_reduction <add>, %190, %cst_110 [1] : vector<16x64xf32> to vector<16xf32>
    %192 = vector.shape_cast %191 : vector<16xf32> to vector<16x1xf32>
    %cst_111 = arith.constant 6.400000e+01 : f32
    %193 = vector.broadcast %cst_111 : f32 to vector<16x1xf32>
    %194 = arith.divf %192, %193 : vector<16x1xf32>
    %195 = vector.broadcast %187 : vector<16x1xf32> to vector<16x64xf32>
    %196 = arith.subf %179, %195 : vector<16x64xf32>
    %cst_112 = arith.constant 9.99999974E-6 : f32
    %197 = vector.broadcast %cst_112 : f32 to vector<16x1xf32>
    %198 = arith.addf %194, %197 : vector<16x1xf32>
    %199 = math.rsqrt %198 : vector<16x1xf32>
    %200 = vector.broadcast %199 : vector<16x1xf32> to vector<16x64xf32>
    %201 = arith.mulf %196, %200 : vector<16x64xf32>
    %202 = vector.broadcast %181 : vector<1x64xf32> to vector<16x64xf32>
    %203 = arith.mulf %201, %202 : vector<16x64xf32>
    %204 = vector.broadcast %183 : vector<1x64xf32> to vector<16x64xf32>
    %205 = arith.addf %203, %204 : vector<16x64xf32>
    %206 = arith.truncf %205 : vector<16x64xf32> to vector<16x64xbf16>
    %c1 = arith.constant 1 : index
    %c0_113 = arith.constant 0 : index
    %c0_114 = arith.constant 0 : index
    %207 = vector.load %arg5[%c1, %c0_113, %c0_114] : memref<2x64x192xbf16, #tpu.memory_space<vmem>>, vector<1x64x192xbf16>
    %208 = vector.shape_cast %207 : vector<1x64x192xbf16> to vector<64x192xbf16>
    %cst_115 = arith.constant dense<0.000000e+00> : vector<16x192xf32>
    %209 = tpu.matmul %206, %208, %cst_115 {dimension_numbers = #tpu.dot_dimension_numbers<[1], [0], [0], [1], [0, 0, 1, 1], [], []>} : vector<16x64xbf16>, vector<64x192xbf16>, vector<16x192xf32> -> vector<16x192xf32>
    %c1_116 = arith.constant 1 : index
    %c0_117 = arith.constant 0 : index
    %c0_118 = arith.constant 0 : index
    %210 = vector.load %arg6[%c1_116, %c0_117, %c0_118] : memref<2x1x192xf32, #tpu.memory_space<vmem>>, vector<1x1x192xf32>
    %211 = vector.shape_cast %210 : vector<1x1x192xf32> to vector<1x192xf32>
    %212 = vector.broadcast %211 : vector<1x192xf32> to vector<16x192xf32>
    %213 = arith.addf %209, %212 : vector<16x192xf32>
    %214 = arith.truncf %213 : vector<16x192xf32> to vector<16x192xbf16>
    %215 = vector.extract_strided_slice %214 {offsets = [0, 0], sizes = [8, 16], strides = [1, 1]} : vector<16x192xbf16> to vector<8x16xbf16>
    %216 = vector.extract_strided_slice %214 {offsets = [0, 64], sizes = [8, 16], strides = [1, 1]} : vector<16x192xbf16> to vector<8x16xbf16>
    %cst_119 = arith.constant dense<0.000000e+00> : vector<8x8xf32>
    %217 = tpu.matmul %215, %216, %cst_119 {dimension_numbers = #tpu.dot_dimension_numbers<[1], [1], [0], [0], [0, 0, 1, 0], [], []>} : vector<8x16xbf16>, vector<8x16xbf16>, vector<8x8xf32> -> vector<8x8xf32>
    %c0_120 = arith.constant 0 : index
    %c0_121 = arith.constant 0 : index
    %218 = vector.load %arg23[%c0_120, %c0_121] : memref<64x8xf32, #tpu.memory_space<vmem>>, vector<8x8xf32>
    tpu.vector_store %arg23[%c0_120, %c0_121], %217 {strides = array<i32>} : memref<64x8xf32, #tpu.memory_space<vmem>>, vector<8x8xf32>,
    %219 = vector.extract_strided_slice %214 {offsets = [0, 16], sizes = [8, 16], strides = [1, 1]} : vector<16x192xbf16> to vector<8x16xbf16>
    %220 = vector.extract_strided_slice %214 {offsets = [0, 80], sizes = [8, 16], strides = [1, 1]} : vector<16x192xbf16> to vector<8x16xbf16>
    %cst_122 = arith.constant dense<0.000000e+00> : vector<8x8xf32>
    %221 = tpu.matmul %219, %220, %cst_122 {dimension_numbers = #tpu.dot_dimension_numbers<[1], [1], [0], [0], [0, 0, 1, 0], [], []>} : vector<8x16xbf16>, vector<8x16xbf16>, vector<8x8xf32> -> vector<8x8xf32>
    %c8_123 = arith.constant 8 : index
    %c0_124 = arith.constant 0 : index
    %222 = vector.load %arg23[%c8_123, %c0_124] : memref<64x8xf32, #tpu.memory_space<vmem>>, vector<8x8xf32>
    tpu.vector_store %arg23[%c8_123, %c0_124], %221 {strides = array<i32>} : memref<64x8xf32, #tpu.memory_space<vmem>>, vector<8x8xf32>,
    %223 = vector.extract_strided_slice %214 {offsets = [0, 32], sizes = [8, 16], strides = [1, 1]} : vector<16x192xbf16> to vector<8x16xbf16>
    %224 = vector.extract_strided_slice %214 {offsets = [0, 96], sizes = [8, 16], strides = [1, 1]} : vector<16x192xbf16> to vector<8x16xbf16>
    %cst_125 = arith.constant dense<0.000000e+00> : vector<8x8xf32>
    %225 = tpu.matmul %223, %224, %cst_125 {dimension_numbers = #tpu.dot_dimension_numbers<[1], [1], [0], [0], [0, 0, 1, 0], [], []>} : vector<8x16xbf16>, vector<8x16xbf16>, vector<8x8xf32> -> vector<8x8xf32>
    %c16_126 = arith.constant 16 : index
    %c0_127 = arith.constant 0 : index
    %226 = vector.load %arg23[%c16_126, %c0_127] : memref<64x8xf32, #tpu.memory_space<vmem>>, vector<8x8xf32>
    tpu.vector_store %arg23[%c16_126, %c0_127], %225 {strides = array<i32>} : memref<64x8xf32, #tpu.memory_space<vmem>>, vector<8x8xf32>,
    %227 = vector.extract_strided_slice %214 {offsets = [0, 48], sizes = [8, 16], strides = [1, 1]} : vector<16x192xbf16> to vector<8x16xbf16>
    %228 = vector.extract_strided_slice %214 {offsets = [0, 112], sizes = [8, 16], strides = [1, 1]} : vector<16x192xbf16> to vector<8x16xbf16>
    %cst_128 = arith.constant dense<0.000000e+00> : vector<8x8xf32>
    %229 = tpu.matmul %227, %228, %cst_128 {dimension_numbers = #tpu.dot_dimension_numbers<[1], [1], [0], [0], [0, 0, 1, 0], [], []>} : vector<8x16xbf16>, vector<8x16xbf16>, vector<8x8xf32> -> vector<8x8xf32>
    %c24_129 = arith.constant 24 : index
    %c0_130 = arith.constant 0 : index
    %230 = vector.load %arg23[%c24_129, %c0_130] : memref<64x8xf32, #tpu.memory_space<vmem>>, vector<8x8xf32>
    tpu.vector_store %arg23[%c24_129, %c0_130], %229 {strides = array<i32>} : memref<64x8xf32, #tpu.memory_space<vmem>>, vector<8x8xf32>,
    %231 = vector.extract_strided_slice %214 {offsets = [8, 0], sizes = [8, 16], strides = [1, 1]} : vector<16x192xbf16> to vector<8x16xbf16>
    %232 = vector.extract_strided_slice %214 {offsets = [8, 64], sizes = [8, 16], strides = [1, 1]} : vector<16x192xbf16> to vector<8x16xbf16>
    %cst_131 = arith.constant dense<0.000000e+00> : vector<8x8xf32>
    %233 = tpu.matmul %231, %232, %cst_131 {dimension_numbers = #tpu.dot_dimension_numbers<[1], [1], [0], [0], [0, 0, 1, 0], [], []>} : vector<8x16xbf16>, vector<8x16xbf16>, vector<8x8xf32> -> vector<8x8xf32>
    %c32_132 = arith.constant 32 : index
    %c0_133 = arith.constant 0 : index
    %234 = vector.load %arg23[%c32_132, %c0_133] : memref<64x8xf32, #tpu.memory_space<vmem>>, vector<8x8xf32>
    tpu.vector_store %arg23[%c32_132, %c0_133], %233 {strides = array<i32>} : memref<64x8xf32, #tpu.memory_space<vmem>>, vector<8x8xf32>,
    %235 = vector.extract_strided_slice %214 {offsets = [8, 16], sizes = [8, 16], strides = [1, 1]} : vector<16x192xbf16> to vector<8x16xbf16>
    %236 = vector.extract_strided_slice %214 {offsets = [8, 80], sizes = [8, 16], strides = [1, 1]} : vector<16x192xbf16> to vector<8x16xbf16>
    %cst_134 = arith.constant dense<0.000000e+00> : vector<8x8xf32>
    %237 = tpu.matmul %235, %236, %cst_134 {dimension_numbers = #tpu.dot_dimension_numbers<[1], [1], [0], [0], [0, 0, 1, 0], [], []>} : vector<8x16xbf16>, vector<8x16xbf16>, vector<8x8xf32> -> vector<8x8xf32>
    %c40_135 = arith.constant 40 : index
    %c0_136 = arith.constant 0 : index
    %238 = vector.load %arg23[%c40_135, %c0_136] : memref<64x8xf32, #tpu.memory_space<vmem>>, vector<8x8xf32>
    tpu.vector_store %arg23[%c40_135, %c0_136], %237 {strides = array<i32>} : memref<64x8xf32, #tpu.memory_space<vmem>>, vector<8x8xf32>,
    %239 = vector.extract_strided_slice %214 {offsets = [8, 32], sizes = [8, 16], strides = [1, 1]} : vector<16x192xbf16> to vector<8x16xbf16>
    %240 = vector.extract_strided_slice %214 {offsets = [8, 96], sizes = [8, 16], strides = [1, 1]} : vector<16x192xbf16> to vector<8x16xbf16>
    %cst_137 = arith.constant dense<0.000000e+00> : vector<8x8xf32>
    %241 = tpu.matmul %239, %240, %cst_137 {dimension_numbers = #tpu.dot_dimension_numbers<[1], [1], [0], [0], [0, 0, 1, 0], [], []>} : vector<8x16xbf16>, vector<8x16xbf16>, vector<8x8xf32> -> vector<8x8xf32>
    %c48_138 = arith.constant 48 : index
    %c0_139 = arith.constant 0 : index
    %242 = vector.load %arg23[%c48_138, %c0_139] : memref<64x8xf32, #tpu.memory_space<vmem>>, vector<8x8xf32>
    tpu.vector_store %arg23[%c48_138, %c0_139], %241 {strides = array<i32>} : memref<64x8xf32, #tpu.memory_space<vmem>>, vector<8x8xf32>,
    %243 = vector.extract_strided_slice %214 {offsets = [8, 48], sizes = [8, 16], strides = [1, 1]} : vector<16x192xbf16> to vector<8x16xbf16>
    %244 = vector.extract_strided_slice %214 {offsets = [8, 112], sizes = [8, 16], strides = [1, 1]} : vector<16x192xbf16> to vector<8x16xbf16>
    %cst_140 = arith.constant dense<0.000000e+00> : vector<8x8xf32>
    %245 = tpu.matmul %243, %244, %cst_140 {dimension_numbers = #tpu.dot_dimension_numbers<[1], [1], [0], [0], [0, 0, 1, 0], [], []>} : vector<8x16xbf16>, vector<8x16xbf16>, vector<8x8xf32> -> vector<8x8xf32>
    %c56_141 = arith.constant 56 : index
    %c0_142 = arith.constant 0 : index
    %246 = vector.load %arg23[%c56_141, %c0_142] : memref<64x8xf32, #tpu.memory_space<vmem>>, vector<8x8xf32>
    tpu.vector_store %arg23[%c56_141, %c0_142], %245 {strides = array<i32>} : memref<64x8xf32, #tpu.memory_space<vmem>>, vector<8x8xf32>,
    %c0_143 = arith.constant 0 : index
    %c0_144 = arith.constant 0 : index
    %247 = vector.load %arg23[%c0_143, %c0_144] : memref<64x8xf32, #tpu.memory_space<vmem>>, vector<64x8xf32>
    %cst_145 = arith.constant 2.500000e-01 : f32
    %248 = vector.broadcast %cst_145 : f32 to vector<64x8xf32>
    %249 = arith.mulf %247, %248 : vector<64x8xf32>
    %250 = arith.addf %249, %25 : vector<64x8xf32>
    %cst_146 = arith.constant dense<0xFF800000> : vector<64xf32>
    %251 = vector.multi_reduction <maximumf>, %250, %cst_146 [1] : vector<64x8xf32> to vector<64xf32>
    %252 = vector.shape_cast %251 : vector<64xf32> to vector<64x1xf32>
    %253 = vector.broadcast %252 : vector<64x1xf32> to vector<64x8xf32>
    %254 = arith.subf %250, %253 : vector<64x8xf32>
    %255 = math.exp %254 : vector<64x8xf32>
    %cst_147 = arith.constant dense<0.000000e+00> : vector<64xf32>
    %256 = vector.multi_reduction <add>, %255, %cst_147 [1] : vector<64x8xf32> to vector<64xf32>
    %257 = vector.shape_cast %256 : vector<64xf32> to vector<64x1xf32>
    %258 = tpu.reciprocal %257 {approx = true} : vector<64x1xf32> -> vector<64x1xf32>
    %259 = vector.broadcast %258 : vector<64x1xf32> to vector<64x8xf32>
    %260 = arith.mulf %255, %259 : vector<64x8xf32>
    %261 = arith.truncf %260 : vector<64x8xf32> to vector<64x8xbf16>
    %262 = vector.extract_strided_slice %261 {offsets = [0, 0], sizes = [8, 8], strides = [1, 1]} : vector<64x8xbf16> to vector<8x8xbf16>
    %263 = vector.extract_strided_slice %214 {offsets = [0, 128], sizes = [8, 16], strides = [1, 1]} : vector<16x192xbf16> to vector<8x16xbf16>
    %cst_148 = arith.constant dense<0.000000e+00> : vector<8x16xf32>
    %264 = tpu.matmul %262, %263, %cst_148 {dimension_numbers = #tpu.dot_dimension_numbers<[1], [0], [0], [1], [0, 0, 1, 1], [], []>} : vector<8x8xbf16>, vector<8x16xbf16>, vector<8x16xf32> -> vector<8x16xf32>
    %c0_149 = arith.constant 0 : index
    %c0_150 = arith.constant 0 : index
    %265 = vector.load %arg24[%c0_149, %c0_150] : memref<16x64xf32, #tpu.memory_space<vmem>>, vector<8x16xf32>
    tpu.vector_store %arg24[%c0_149, %c0_150], %264 {strides = array<i32>} : memref<16x64xf32, #tpu.memory_space<vmem>>, vector<8x16xf32>,
    %266 = vector.extract_strided_slice %261 {offsets = [8, 0], sizes = [8, 8], strides = [1, 1]} : vector<64x8xbf16> to vector<8x8xbf16>
    %267 = vector.extract_strided_slice %214 {offsets = [0, 144], sizes = [8, 16], strides = [1, 1]} : vector<16x192xbf16> to vector<8x16xbf16>
    %cst_151 = arith.constant dense<0.000000e+00> : vector<8x16xf32>
    %268 = tpu.matmul %266, %267, %cst_151 {dimension_numbers = #tpu.dot_dimension_numbers<[1], [0], [0], [1], [0, 0, 1, 1], [], []>} : vector<8x8xbf16>, vector<8x16xbf16>, vector<8x16xf32> -> vector<8x16xf32>
    %c0_152 = arith.constant 0 : index
    %c16_153 = arith.constant 16 : index
    %269 = vector.load %arg24[%c0_152, %c16_153] : memref<16x64xf32, #tpu.memory_space<vmem>>, vector<8x16xf32>
    tpu.vector_store %arg24[%c0_152, %c16_153], %268 {strides = array<i32>} : memref<16x64xf32, #tpu.memory_space<vmem>>, vector<8x16xf32>,
    %270 = vector.extract_strided_slice %261 {offsets = [16, 0], sizes = [8, 8], strides = [1, 1]} : vector<64x8xbf16> to vector<8x8xbf16>
    %271 = vector.extract_strided_slice %214 {offsets = [0, 160], sizes = [8, 16], strides = [1, 1]} : vector<16x192xbf16> to vector<8x16xbf16>
    %cst_154 = arith.constant dense<0.000000e+00> : vector<8x16xf32>
    %272 = tpu.matmul %270, %271, %cst_154 {dimension_numbers = #tpu.dot_dimension_numbers<[1], [0], [0], [1], [0, 0, 1, 1], [], []>} : vector<8x8xbf16>, vector<8x16xbf16>, vector<8x16xf32> -> vector<8x16xf32>
    %c0_155 = arith.constant 0 : index
    %c32_156 = arith.constant 32 : index
    %273 = vector.load %arg24[%c0_155, %c32_156] : memref<16x64xf32, #tpu.memory_space<vmem>>, vector<8x16xf32>
    tpu.vector_store %arg24[%c0_155, %c32_156], %272 {strides = array<i32>} : memref<16x64xf32, #tpu.memory_space<vmem>>, vector<8x16xf32>,
    %274 = vector.extract_strided_slice %261 {offsets = [24, 0], sizes = [8, 8], strides = [1, 1]} : vector<64x8xbf16> to vector<8x8xbf16>
    %275 = vector.extract_strided_slice %214 {offsets = [0, 176], sizes = [8, 16], strides = [1, 1]} : vector<16x192xbf16> to vector<8x16xbf16>
    %cst_157 = arith.constant dense<0.000000e+00> : vector<8x16xf32>
    %276 = tpu.matmul %274, %275, %cst_157 {dimension_numbers = #tpu.dot_dimension_numbers<[1], [0], [0], [1], [0, 0, 1, 1], [], []>} : vector<8x8xbf16>, vector<8x16xbf16>, vector<8x16xf32> -> vector<8x16xf32>
    %c0_158 = arith.constant 0 : index
    %c48_159 = arith.constant 48 : index
    %277 = vector.load %arg24[%c0_158, %c48_159] : memref<16x64xf32, #tpu.memory_space<vmem>>, vector<8x16xf32>
    tpu.vector_store %arg24[%c0_158, %c48_159], %276 {strides = array<i32>} : memref<16x64xf32, #tpu.memory_space<vmem>>, vector<8x16xf32>,
    %278 = vector.extract_strided_slice %261 {offsets = [32, 0], sizes = [8, 8], strides = [1, 1]} : vector<64x8xbf16> to vector<8x8xbf16>
    %279 = vector.extract_strided_slice %214 {offsets = [8, 128], sizes = [8, 16], strides = [1, 1]} : vector<16x192xbf16> to vector<8x16xbf16>
    %cst_160 = arith.constant dense<0.000000e+00> : vector<8x16xf32>
    %280 = tpu.matmul %278, %279, %cst_160 {dimension_numbers = #tpu.dot_dimension_numbers<[1], [0], [0], [1], [0, 0, 1, 1], [], []>} : vector<8x8xbf16>, vector<8x16xbf16>, vector<8x16xf32> -> vector<8x16xf32>
    %c8_161 = arith.constant 8 : index
    %c0_162 = arith.constant 0 : index
    %281 = vector.load %arg24[%c8_161, %c0_162] : memref<16x64xf32, #tpu.memory_space<vmem>>, vector<8x16xf32>
    tpu.vector_store %arg24[%c8_161, %c0_162], %280 {strides = array<i32>} : memref<16x64xf32, #tpu.memory_space<vmem>>, vector<8x16xf32>,
    %282 = vector.extract_strided_slice %261 {offsets = [40, 0], sizes = [8, 8], strides = [1, 1]} : vector<64x8xbf16> to vector<8x8xbf16>
    %283 = vector.extract_strided_slice %214 {offsets = [8, 144], sizes = [8, 16], strides = [1, 1]} : vector<16x192xbf16> to vector<8x16xbf16>
    %cst_163 = arith.constant dense<0.000000e+00> : vector<8x16xf32>
    %284 = tpu.matmul %282, %283, %cst_163 {dimension_numbers = #tpu.dot_dimension_numbers<[1], [0], [0], [1], [0, 0, 1, 1], [], []>} : vector<8x8xbf16>, vector<8x16xbf16>, vector<8x16xf32> -> vector<8x16xf32>
    %c8_164 = arith.constant 8 : index
    %c16_165 = arith.constant 16 : index
    %285 = vector.load %arg24[%c8_164, %c16_165] : memref<16x64xf32, #tpu.memory_space<vmem>>, vector<8x16xf32>
    tpu.vector_store %arg24[%c8_164, %c16_165], %284 {strides = array<i32>} : memref<16x64xf32, #tpu.memory_space<vmem>>, vector<8x16xf32>,
    %286 = vector.extract_strided_slice %261 {offsets = [48, 0], sizes = [8, 8], strides = [1, 1]} : vector<64x8xbf16> to vector<8x8xbf16>
    %287 = vector.extract_strided_slice %214 {offsets = [8, 160], sizes = [8, 16], strides = [1, 1]} : vector<16x192xbf16> to vector<8x16xbf16>
    %cst_166 = arith.constant dense<0.000000e+00> : vector<8x16xf32>
    %288 = tpu.matmul %286, %287, %cst_166 {dimension_numbers = #tpu.dot_dimension_numbers<[1], [0], [0], [1], [0, 0, 1, 1], [], []>} : vector<8x8xbf16>, vector<8x16xbf16>, vector<8x16xf32> -> vector<8x16xf32>
    %c8_167 = arith.constant 8 : index
    %c32_168 = arith.constant 32 : index
    %289 = vector.load %arg24[%c8_167, %c32_168] : memref<16x64xf32, #tpu.memory_space<vmem>>, vector<8x16xf32>
    tpu.vector_store %arg24[%c8_167, %c32_168], %288 {strides = array<i32>} : memref<16x64xf32, #tpu.memory_space<vmem>>, vector<8x16xf32>,
    %290 = vector.extract_strided_slice %261 {offsets = [56, 0], sizes = [8, 8], strides = [1, 1]} : vector<64x8xbf16> to vector<8x8xbf16>
    %291 = vector.extract_strided_slice %214 {offsets = [8, 176], sizes = [8, 16], strides = [1, 1]} : vector<16x192xbf16> to vector<8x16xbf16>
    %cst_169 = arith.constant dense<0.000000e+00> : vector<8x16xf32>
    %292 = tpu.matmul %290, %291, %cst_169 {dimension_numbers = #tpu.dot_dimension_numbers<[1], [0], [0], [1], [0, 0, 1, 1], [], []>} : vector<8x8xbf16>, vector<8x16xbf16>, vector<8x16xf32> -> vector<8x16xf32>
    %c8_170 = arith.constant 8 : index
    %c48_171 = arith.constant 48 : index
    %293 = vector.load %arg24[%c8_170, %c48_171] : memref<16x64xf32, #tpu.memory_space<vmem>>, vector<8x16xf32>
    tpu.vector_store %arg24[%c8_170, %c48_171], %292 {strides = array<i32>} : memref<16x64xf32, #tpu.memory_space<vmem>>, vector<8x16xf32>,
    %c0_172 = arith.constant 0 : index
    %c0_173 = arith.constant 0 : index
    %294 = vector.load %arg24[%c0_172, %c0_173] : memref<16x64xf32, #tpu.memory_space<vmem>>, vector<16x64xf32>
    %295 = arith.truncf %294 : vector<16x64xf32> to vector<16x64xbf16>
    %c1_174 = arith.constant 1 : index
    %c0_175 = arith.constant 0 : index
    %c0_176 = arith.constant 0 : index
    %296 = vector.load %arg7[%c1_174, %c0_175, %c0_176] : memref<2x64x64xbf16, #tpu.memory_space<vmem>>, vector<1x64x64xbf16>
    %297 = vector.shape_cast %296 : vector<1x64x64xbf16> to vector<64x64xbf16>
    %cst_177 = arith.constant dense<0.000000e+00> : vector<16x64xf32>
    %298 = tpu.matmul %295, %297, %cst_177 {dimension_numbers = #tpu.dot_dimension_numbers<[1], [0], [0], [1], [0, 0, 1, 1], [], []>} : vector<16x64xbf16>, vector<64x64xbf16>, vector<16x64xf32> -> vector<16x64xf32>
    %c1_178 = arith.constant 1 : index
    %c0_179 = arith.constant 0 : index
    %c0_180 = arith.constant 0 : index
    %299 = vector.load %arg8[%c1_178, %c0_179, %c0_180] : memref<2x1x64xf32, #tpu.memory_space<vmem>>, vector<1x1x64xf32>
    %300 = vector.shape_cast %299 : vector<1x1x64xf32> to vector<1x64xf32>
    %301 = vector.broadcast %300 : vector<1x64xf32> to vector<16x64xf32>
    %302 = arith.addf %298, %301 : vector<16x64xf32>
    %303 = arith.addf %205, %302 : vector<16x64xf32>
    %c1_181 = arith.constant 1 : index
    %c0_182 = arith.constant 0 : index
    %c0_183 = arith.constant 0 : index
    %304 = vector.load %arg9[%c1_181, %c0_182, %c0_183] : memref<2x1x64xf32, #tpu.memory_space<vmem>>, vector<1x1x64xf32>
    %305 = vector.shape_cast %304 : vector<1x1x64xf32> to vector<1x64xf32>
    %c1_184 = arith.constant 1 : index
    %c0_185 = arith.constant 0 : index
    %c0_186 = arith.constant 0 : index
    %306 = vector.load %arg10[%c1_184, %c0_185, %c0_186] : memref<2x1x64xf32, #tpu.memory_space<vmem>>, vector<1x1x64xf32>
    %307 = vector.shape_cast %306 : vector<1x1x64xf32> to vector<1x64xf32>
    %cst_187 = arith.constant dense<0.000000e+00> : vector<16xf32>
    %308 = vector.multi_reduction <add>, %303, %cst_187 [1] : vector<16x64xf32> to vector<16xf32>
    %309 = vector.shape_cast %308 : vector<16xf32> to vector<16x1xf32>
    %cst_188 = arith.constant 6.400000e+01 : f32
    %310 = vector.broadcast %cst_188 : f32 to vector<16x1xf32>
    %311 = arith.divf %309, %310 : vector<16x1xf32>
    %312 = vector.broadcast %311 : vector<16x1xf32> to vector<16x64xf32>
    %313 = arith.subf %303, %312 : vector<16x64xf32>
    %314 = arith.mulf %313, %313 : vector<16x64xf32>
    %cst_189 = arith.constant dense<0.000000e+00> : vector<16xf32>
    %315 = vector.multi_reduction <add>, %314, %cst_189 [1] : vector<16x64xf32> to vector<16xf32>
    %316 = vector.shape_cast %315 : vector<16xf32> to vector<16x1xf32>
    %cst_190 = arith.constant 6.400000e+01 : f32
    %317 = vector.broadcast %cst_190 : f32 to vector<16x1xf32>
    %318 = arith.divf %316, %317 : vector<16x1xf32>
    %319 = vector.broadcast %311 : vector<16x1xf32> to vector<16x64xf32>
    %320 = arith.subf %303, %319 : vector<16x64xf32>
    %cst_191 = arith.constant 9.99999974E-6 : f32
    %321 = vector.broadcast %cst_191 : f32 to vector<16x1xf32>
    %322 = arith.addf %318, %321 : vector<16x1xf32>
    %323 = math.rsqrt %322 : vector<16x1xf32>
    %324 = vector.broadcast %323 : vector<16x1xf32> to vector<16x64xf32>
    %325 = arith.mulf %320, %324 : vector<16x64xf32>
    %326 = vector.broadcast %305 : vector<1x64xf32> to vector<16x64xf32>
    %327 = arith.mulf %325, %326 : vector<16x64xf32>
    %328 = vector.broadcast %307 : vector<1x64xf32> to vector<16x64xf32>
    %329 = arith.addf %327, %328 : vector<16x64xf32>
    %330 = arith.truncf %329 : vector<16x64xf32> to vector<16x64xbf16>
    %c1_192 = arith.constant 1 : index
    %c0_193 = arith.constant 0 : index
    %c0_194 = arith.constant 0 : index
    %331 = vector.load %arg11[%c1_192, %c0_193, %c0_194] : memref<2x64x128xbf16, #tpu.memory_space<vmem>>, vector<1x64x128xbf16>
    %332 = vector.shape_cast %331 : vector<1x64x128xbf16> to vector<64x128xbf16>
    %cst_195 = arith.constant dense<0.000000e+00> : vector<16x128xf32>
    %333 = tpu.matmul %330, %332, %cst_195 {dimension_numbers = #tpu.dot_dimension_numbers<[1], [0], [0], [1], [0, 0, 1, 1], [], []>} : vector<16x64xbf16>, vector<64x128xbf16>, vector<16x128xf32> -> vector<16x128xf32>
    %c1_196 = arith.constant 1 : index
    %c0_197 = arith.constant 0 : index
    %c0_198 = arith.constant 0 : index
    %334 = vector.load %arg12[%c1_196, %c0_197, %c0_198] : memref<2x1x128xf32, #tpu.memory_space<vmem>>, vector<1x1x128xf32>
    %335 = vector.shape_cast %334 : vector<1x1x128xf32> to vector<1x128xf32>
    %336 = vector.broadcast %335 : vector<1x128xf32> to vector<16x128xf32>
    %337 = arith.addf %333, %336 : vector<16x128xf32>
    %338 = arith.mulf %337, %337 : vector<16x128xf32>
    %339 = arith.mulf %337, %338 : vector<16x128xf32>
    %cst_199 = arith.constant 4.471500e-02 : f32
    %340 = vector.broadcast %cst_199 : f32 to vector<16x128xf32>
    %341 = arith.mulf %340, %339 : vector<16x128xf32>
    %342 = arith.addf %337, %341 : vector<16x128xf32>
    %cst_200 = arith.constant 0.797884583 : f32
    %343 = vector.broadcast %cst_200 : f32 to vector<16x128xf32>
    %344 = arith.mulf %343, %342 : vector<16x128xf32>
    %345 = math.tanh %344 : vector<16x128xf32>
    %cst_201 = arith.constant 1.000000e+00 : f32
    %346 = vector.broadcast %cst_201 : f32 to vector<16x128xf32>
    %347 = arith.addf %346, %345 : vector<16x128xf32>
    %cst_202 = arith.constant 5.000000e-01 : f32
    %348 = vector.broadcast %cst_202 : f32 to vector<16x128xf32>
    %349 = arith.mulf %348, %347 : vector<16x128xf32>
    %350 = arith.mulf %337, %349 : vector<16x128xf32>
    %351 = arith.truncf %350 : vector<16x128xf32> to vector<16x128xbf16>
    %c1_203 = arith.constant 1 : index
    %c0_204 = arith.constant 0 : index
    %c0_205 = arith.constant 0 : index
    %352 = vector.load %arg13[%c1_203, %c0_204, %c0_205] : memref<2x128x64xbf16, #tpu.memory_space<vmem>>, vector<1x128x64xbf16>
    %353 = vector.shape_cast %352 : vector<1x128x64xbf16> to vector<128x64xbf16>
    %cst_206 = arith.constant dense<0.000000e+00> : vector<16x64xf32>
    %354 = tpu.matmul %351, %353, %cst_206 {dimension_numbers = #tpu.dot_dimension_numbers<[1], [0], [0], [1], [0, 0, 1, 1], [], []>} : vector<16x128xbf16>, vector<128x64xbf16>, vector<16x64xf32> -> vector<16x64xf32>
    %c1_207 = arith.constant 1 : index
    %c0_208 = arith.constant 0 : index
    %c0_209 = arith.constant 0 : index
    %355 = vector.load %arg14[%c1_207, %c0_208, %c0_209] : memref<2x1x64xf32, #tpu.memory_space<vmem>>, vector<1x1x64xf32>
    %356 = vector.shape_cast %355 : vector<1x1x64xf32> to vector<1x64xf32>
    %357 = vector.broadcast %356 : vector<1x64xf32> to vector<16x64xf32>
    %358 = arith.addf %354, %357 : vector<16x64xf32>
    %359 = arith.addf %329, %358 : vector<16x64xf32>
    %c1_210 = arith.constant 1 : index
    %c0_211 = arith.constant 0 : index
    %c0_212 = arith.constant 0 : index
    %360 = vector.load %arg15[%c1_210, %c0_211, %c0_212] : memref<2x1x64xf32, #tpu.memory_space<vmem>>, vector<1x1x64xf32>
    %361 = vector.shape_cast %360 : vector<1x1x64xf32> to vector<1x64xf32>
    %c1_213 = arith.constant 1 : index
    %c0_214 = arith.constant 0 : index
    %c0_215 = arith.constant 0 : index
    %362 = vector.load %arg16[%c1_213, %c0_214, %c0_215] : memref<2x1x64xf32, #tpu.memory_space<vmem>>, vector<1x1x64xf32>
    %363 = vector.shape_cast %362 : vector<1x1x64xf32> to vector<1x64xf32>
    %cst_216 = arith.constant dense<0.000000e+00> : vector<16xf32>
    %364 = vector.multi_reduction <add>, %359, %cst_216 [1] : vector<16x64xf32> to vector<16xf32>
    %365 = vector.shape_cast %364 : vector<16xf32> to vector<16x1xf32>
    %cst_217 = arith.constant 6.400000e+01 : f32
    %366 = vector.broadcast %cst_217 : f32 to vector<16x1xf32>
    %367 = arith.divf %365, %366 : vector<16x1xf32>
    %368 = vector.broadcast %367 : vector<16x1xf32> to vector<16x64xf32>
    %369 = arith.subf %359, %368 : vector<16x64xf32>
    %370 = arith.mulf %369, %369 : vector<16x64xf32>
    %cst_218 = arith.constant dense<0.000000e+00> : vector<16xf32>
    %371 = vector.multi_reduction <add>, %370, %cst_218 [1] : vector<16x64xf32> to vector<16xf32>
    %372 = vector.shape_cast %371 : vector<16xf32> to vector<16x1xf32>
    %cst_219 = arith.constant 6.400000e+01 : f32
    %373 = vector.broadcast %cst_219 : f32 to vector<16x1xf32>
    %374 = arith.divf %372, %373 : vector<16x1xf32>
    %375 = vector.broadcast %367 : vector<16x1xf32> to vector<16x64xf32>
    %376 = arith.subf %359, %375 : vector<16x64xf32>
    %cst_220 = arith.constant 9.99999974E-6 : f32
    %377 = vector.broadcast %cst_220 : f32 to vector<16x1xf32>
    %378 = arith.addf %374, %377 : vector<16x1xf32>
    %379 = math.rsqrt %378 : vector<16x1xf32>
    %380 = vector.broadcast %379 : vector<16x1xf32> to vector<16x64xf32>
    %381 = arith.mulf %376, %380 : vector<16x64xf32>
    %382 = vector.broadcast %361 : vector<1x64xf32> to vector<16x64xf32>
    %383 = arith.mulf %381, %382 : vector<16x64xf32>
    %384 = vector.broadcast %363 : vector<1x64xf32> to vector<16x64xf32>
    %385 = arith.addf %383, %384 : vector<16x64xf32>
    %386 = arith.truncf %385 : vector<16x64xf32> to vector<16x64xbf16>
    %c0_221 = arith.constant 0 : index
    %c0_222 = arith.constant 0 : index
    %387 = vector.load %arg17[%c0_221, %c0_222] : memref<64x64xbf16, #tpu.memory_space<vmem>>, vector<64x64xbf16>
    %cst_223 = arith.constant dense<0.000000e+00> : vector<16x64xf32>
    %388 = tpu.matmul %386, %387, %cst_223 {dimension_numbers = #tpu.dot_dimension_numbers<[1], [0], [0], [1], [0, 0, 1, 1], [], []>} : vector<16x64xbf16>, vector<64x64xbf16>, vector<16x64xf32> -> vector<16x64xf32>
    %c0_224 = arith.constant 0 : index
    %c0_225 = arith.constant 0 : index
    %389 = vector.load %arg18[%c0_224, %c0_225] : memref<1x64xf32, #tpu.memory_space<vmem>>, vector<1x64xf32>
    %390 = vector.broadcast %389 : vector<1x64xf32> to vector<16x64xf32>
    %391 = arith.addf %388, %390 : vector<16x64xf32>
    %392 = math.tanh %391 : vector<16x64xf32>
    %393 = arith.truncf %392 : vector<16x64xf32> to vector<16x64xbf16>
    %c0_226 = arith.constant 0 : index
    %c0_227 = arith.constant 0 : index
    %394 = vector.load %arg19[%c0_226, %c0_227] : memref<64x3xbf16, #tpu.memory_space<vmem>>, vector<64x3xbf16>
    %cst_228 = arith.constant dense<0.000000e+00> : vector<16x3xf32>
    %395 = tpu.matmul %393, %394, %cst_228 {dimension_numbers = #tpu.dot_dimension_numbers<[1], [0], [0], [1], [0, 0, 1, 1], [], []>} : vector<16x64xbf16>, vector<64x3xbf16>, vector<16x3xf32> -> vector<16x3xf32>
    %c0_229 = arith.constant 0 : index
    %c0_230 = arith.constant 0 : index
    %396 = vector.load %arg20[%c0_229, %c0_230] : memref<1x3xf32, #tpu.memory_space<vmem>>, vector<1x3xf32>
    %397 = vector.broadcast %396 : vector<1x3xf32> to vector<16x3xf32>
    %398 = arith.addf %395, %397 : vector<16x3xf32>
    %399 = vector.extract_strided_slice %398 {offsets = [0, 0], sizes = [1, 3], strides = [1, 1]} : vector<16x3xf32> to vector<1x3xf32>
    %c0_231 = arith.constant 0 : index
    %c0_232 = arith.constant 0 : index
    %400 = vector.load %arg21[%c0_231, %c0_232] : memref<2x3xf32, #tpu.memory_space<vmem>>, vector<1x3xf32>
    tpu.vector_store %arg21[%c0_231, %c0_232], %399 {strides = array<i32>} : memref<2x3xf32, #tpu.memory_space<vmem>>, vector<1x3xf32>,
    %401 = vector.extract_strided_slice %398 {offsets = [8, 0], sizes = [1, 3], strides = [1, 1]} : vector<16x3xf32> to vector<1x3xf32>
    %c1_233 = arith.constant 1 : index
    %c0_234 = arith.constant 0 : index
    %402 = vector.load %arg21[%c1_233, %c0_234] : memref<2x3xf32, #tpu.memory_space<vmem>>, vector<1x3xf32>
    tpu.vector_store %arg21[%c1_233, %c0_234], %401 {strides = array<i32>} : memref<2x3xf32, #tpu.memory_space<vmem>>, vector<1x3xf32>,
    %cst_235 = arith.constant dense<0xFF800000> : vector<16xf32>
    %403 = vector.multi_reduction <maximumf>, %398, %cst_235 [1] : vector<16x3xf32> to vector<16xf32>
    %404 = vector.shape_cast %403 : vector<16xf32> to vector<16x1xf32>
    %405 = vector.broadcast %404 : vector<16x1xf32> to vector<16x3xf32>
    %406 = arith.subf %398, %405 : vector<16x3xf32>
    %407 = math.exp %406 : vector<16x3xf32>
    %cst_236 = arith.constant dense<0.000000e+00> : vector<16xf32>
    %408 = vector.multi_reduction <add>, %407, %cst_236 [1] : vector<16x3xf32> to vector<16xf32>
    %409 = vector.shape_cast %408 : vector<16xf32> to vector<16x1xf32>
    %410 = math.log %409 : vector<16x1xf32>
    %411 = vector.broadcast %410 : vector<16x1xf32> to vector<16x3xf32>
    %412 = arith.subf %406, %411 : vector<16x3xf32>
    %c0_237 = arith.constant 0 : index
    %c0_238 = arith.constant 0 : index
    %413 = vector.load %arg2[%c0_237, %c0_238] : memref<16x3xf32, #tpu.memory_space<vmem>>, vector<16x3xf32>
    %414 = arith.mulf %413, %412 : vector<16x3xf32>
    %415 = vector.shape_cast %414 : vector<16x3xf32> to vector<1x16x3xf32>
    %cst_239 = arith.constant dense<0.000000e+00> : vector<1xf32>
    %416 = vector.multi_reduction <add>, %415, %cst_239 [1, 2] : vector<1x16x3xf32> to vector<1xf32>
    %417 = vector.shape_cast %416 : vector<1xf32> to vector<1x1x1xf32>
    %418 = vector.extract %417[0, 0, 0] : f32 from vector<1x1x1xf32>
    %cst_240 = arith.constant 0.000000e+00 : f32
    %419 = arith.subf %cst_240, %418 : f32
    %cst_241 = arith.constant 2.000000e+00 : f32
    %420 = arith.divf %419, %cst_241 : f32
    %421 = vector.broadcast %420 : f32 to vector<1x1xf32>
    %c0_242 = arith.constant 0 : index
    %c0_243 = arith.constant 0 : index
    %422 = vector.load %arg22[%c0_242, %c0_243] : memref<1x1xf32, #tpu.memory_space<vmem>>, vector<1x1xf32>
    tpu.vector_store %arg22[%c0_242, %c0_243], %421 {strides = array<i32>} : memref<1x1xf32, #tpu.memory_space<vmem>>, vector<1x1xf32>,
    return
  }
}

</mosaic_0001>

<llo_original>
// kernel: forward.1
$region0: #{forward.1}
  #allocation0 [shape = 'u32[]', space=smem, size = 0x4, offset = 0x4, fixed_abs, tag = 'smem constant byte address 0x4 - core index']
  #allocation1 [shape = 'u32[144,128]{1,0:T(1,128)}', space=vmem, size = 0x12000, scoped, tag = 'internal scratch']
  #allocation2 [shape = 'f32[64,8]{1,0:T(8,128)}', space=vmem, size = 0x8000, scoped, tag = 'scratch operand']
  #allocation3 [shape = 'f32[16,64]{1,0:T(8,128)}', space=vmem, size = 0x2000, scoped, tag = 'scratch operand']
  %s0 = inlined_call_operand.vmem [shape: f32[16,64], index: 0, kind: input, shape index: {}]
  %s1 = inlined_call_operand.vmem [shape: f32[64,8], index: 1, kind: input, shape index: {}]
  %s2 = inlined_call_operand.vmem [shape: f32[16,3], index: 2, kind: input, shape index: {}]
  %s3 = inlined_call_operand.vmem [shape: f32[1,64], index: 3, kind: input, shape index: {}]
  %s4 = inlined_call_operand.vmem [shape: f32[1,64], index: 4, kind: input, shape index: {}]
  %s5 = inlined_call_operand.vmem [shape: bf16[2,64,192], index: 5, kind: input, shape index: {}]
  %s6 = inlined_call_operand.vmem [shape: f32[2,1,192], index: 6, kind: input, shape index: {}]
  %s7 = inlined_call_operand.vmem [shape: bf16[2,64,64], index: 7, kind: input, shape index: {}]
  %s8 = inlined_call_operand.vmem [shape: f32[2,1,64], index: 8, kind: input, shape index: {}]
  %s9 = inlined_call_operand.vmem [shape: f32[2,1,64], index: 9, kind: input, shape index: {}]
  %s10 = inlined_call_operand.vmem [shape: f32[2,1,64], index: 10, kind: input, shape index: {}]
  %s11 = inlined_call_operand.vmem [shape: bf16[2,64,128], index: 11, kind: input, shape index: {}]
  %s12 = inlined_call_operand.vmem [shape: f32[2,1,128], index: 12, kind: input, shape index: {}]
  %s13 = inlined_call_operand.vmem [shape: bf16[2,128,64], index: 13, kind: input, shape index: {}]
  %s14 = inlined_call_operand.vmem [shape: f32[2,1,64], index: 14, kind: input, shape index: {}]
  %s15 = inlined_call_operand.vmem [shape: f32[2,1,64], index: 15, kind: input, shape index: {}]
  %s16 = inlined_call_operand.vmem [shape: f32[2,1,64], index: 16, kind: input, shape index: {}]
  %s17 = inlined_call_operand.vmem [shape: bf16[64,64], index: 17, kind: input, shape index: {}]
  %s18 = inlined_call_operand.vmem [shape: f32[1,64], index: 18, kind: input, shape index: {}]
  %s19 = inlined_call_operand.vmem [shape: bf16[64,3], index: 19, kind: input, shape index: {}]
  %s20 = inlined_call_operand.vmem [shape: f32[1,3], index: 20, kind: input, shape index: {}]
  %s21 = inlined_call_operand.hbm [shape: f32[2,3], index: 21, kind: output, shape index: {0}]
  %s22 = inlined_call_operand.hbm [shape: f32[1,1], index: 22, kind: output, shape index: {1}]
  %23 = xla_tuple %s21, %s22
  %s24 = sld [smem:[#allocation0]]
  $region102: #{forward.1} parent=0
    _
  %s26 = ssub.s32 1, %s24
  %s27 = scalar_select 0, %s26, %s24
  $region1: #{forward.1} parent=0
    #allocation4 [shape = 'u8[1024]{0}', space=vmem, size = 0x400, scoped, tag = 'output window, operand 0, single buffered']
    #allocation5 [shape = 's32[1]{0}', space=sflag, size = 0x4, scoped, tag = 'scoped memory for forward.1']
    #allocation6 [shape = 'u8[512]{0}', space=vmem, size = 0x400, scoped, tag = 'output window, operand 1, single buffered']
    #allocation7 [shape = 's32[1]{0}', space=sflag, size = 0x4, scoped, tag = 'scoped memory for forward.1']
    %28 = vsyncpa [#allocation5], 0
    %29 = vsyncpa [#allocation7], 0
    // Predicated region
    $region2: #{forward.1} parent=1 // pred_check
      _
    $region3: #{forward.1} parent=1 // pred_check_branch
      %31 = sbr.rel (0) target = $region5
    $region4: #{forward.1} parent=1 // pred_region
      _
    $region5: #{forward.1} parent=1 // pred_fallthru
      _
    // Predicated region
    $region6: #{forward.1} parent=1 // pred_check
      _
    $region7: #{forward.1} parent=1 // pred_check_branch
      %33 = sbr.rel (0) target = $region9
    $region8: #{forward.1} parent=1 // pred_region
      _
    $region9: #{forward.1} parent=1 // pred_fallthru
      _
    // Predicated region
    $region10: #{forward.1} parent=1 // pred_check
      _
    $region11: #{forward.1} parent=1 // pred_check_branch
      %35 = sbr.rel (0) target = $region13
    $region12: #{forward.1} parent=1 // pred_region
      _
    $region13: #{forward.1} parent=1 // pred_fallthru
      _
    // Predicated region
    $region14: #{forward.1} parent=1 // pred_check
      _
    $region15: #{forward.1} parent=1 // pred_check_branch
      %37 = sbr.rel (0) target = $region17
    $region16: #{forward.1} parent=1 // pred_region
      _
    $region17: #{forward.1} parent=1 // pred_fallthru
      _
    // Predicated region
    $region18: #{forward.1} parent=1 // pred_check
      _
    $region19: #{forward.1} parent=1 // pred_check_branch
      %39 = sbr.rel (0) target = $region21
    $region20: #{forward.1} parent=1 // pred_region
      _
    $region21: #{forward.1} parent=1 // pred_fallthru
      _
    // Predicated region
    $region22: #{forward.1} parent=1 // pred_check
      _
    $region23: #{forward.1} parent=1 // pred_check_branch
      %41 = sbr.rel (0) target = $region25
    $region24: #{forward.1} parent=1 // pred_region
      _
    $region25: #{forward.1} parent=1 // pred_fallthru
      _
    // Predicated region
    $region26: #{forward.1} parent=1 // pred_check
      _
    $region27: #{forward.1} parent=1 // pred_check_branch
      %43 = sbr.rel (0) target = $region29
    $region28: #{forward.1} parent=1 // pred_region
      _
    $region29: #{forward.1} parent=1 // pred_fallthru
      _
    // Predicated region
    $region30: #{forward.1} parent=1 // pred_check
      _
    $region31: #{forward.1} parent=1 // pred_check_branch
      %45 = sbr.rel (0) target = $region33
    $region32: #{forward.1} parent=1 // pred_region
      _
    $region33: #{forward.1} parent=1 // pred_fallthru
      _
    // Predicated region
    $region34: #{forward.1} parent=1 // pred_check
      _
    $region35: #{forward.1} parent=1 // pred_check_branch
      %47 = sbr.rel (0) target = $region37
    $region36: #{forward.1} parent=1 // pred_region
      _
    $region37: #{forward.1} parent=1 // pred_fallthru
      _
    // Predicated region
    $region38: #{forward.1} parent=1 // pred_check
      _
    $region39: #{forward.1} parent=1 // pred_check_branch
      %49 = sbr.rel (0) target = $region41
    $region40: #{forward.1} parent=1 // pred_region
      _
    $region41: #{forward.1} parent=1 // pred_fallthru
      _
    // Predicated region
    $region42: #{forward.1} parent=1 // pred_check
      _
    $region43: #{forward.1} parent=1 // pred_check_branch
      %51 = sbr.rel (0) target = $region45
    $region44: #{forward.1} parent=1 // pred_region
      _
    $region45: #{forward.1} parent=1 // pred_fallthru
      _
    // Predicated region
    $region46: #{forward.1} parent=1 // pred_check
      _
    $region47: #{forward.1} parent=1 // pred_check_branch
      %53 = sbr.rel (0) target = $region49
    $region48: #{forward.1} parent=1 // pred_region
      _
    $region49: #{forward.1} parent=1 // pred_fallthru
      _
    // Predicated region
    $region50: #{forward.1} parent=1 // pred_check
      _
    $region51: #{forward.1} parent=1 // pred_check_branch
      %55 = sbr.rel (0) target = $region53
    $region52: #{forward.1} parent=1 // pred_region
      _
    $region53: #{forward.1} parent=1 // pred_fallthru
      _
    // Predicated region
    $region54: #{forward.1} parent=1 // pred_check
      _
    $region55: #{forward.1} parent=1 // pred_check_branch
      %57 = sbr.rel (0) target = $region57
    $region56: #{forward.1} parent=1 // pred_region
      _
    $region57: #{forward.1} parent=1 // pred_fallthru
      _
    // Predicated region
    $region58: #{forward.1} parent=1 // pred_check
      _
    $region59: #{forward.1} parent=1 // pred_check_branch
      %59 = sbr.rel (0) target = $region61
    $region60: #{forward.1} parent=1 // pred_region
      _
    $region61: #{forward.1} parent=1 // pred_fallthru
      _
    // Predicated region
    $region62: #{forward.1} parent=1 // pred_check
      _
    $region63: #{forward.1} parent=1 // pred_check_branch
      %61 = sbr.rel (0) target = $region65
    $region64: #{forward.1} parent=1 // pred_region
      _
    $region65: #{forward.1} parent=1 // pred_fallthru
      _
    // Predicated region
    $region66: #{forward.1} parent=1 // pred_check
      _
    $region67: #{forward.1} parent=1 // pred_check_branch
      %63 = sbr.rel (0) target = $region69
    $region68: #{forward.1} parent=1 // pred_region
      _
    $region69: #{forward.1} parent=1 // pred_fallthru
      _
    // Predicated region
    $region70: #{forward.1} parent=1 // pred_check
      _
    $region71: #{forward.1} parent=1 // pred_check_branch
      %65 = sbr.rel (0) target = $region73
    $region72: #{forward.1} parent=1 // pred_region
      _
    $region73: #{forward.1} parent=1 // pred_fallthru
      _
    // Predicated region
    $region74: #{forward.1} parent=1 // pred_check
      _
    $region75: #{forward.1} parent=1 // pred_check_branch
      %67 = sbr.rel (0) target = $region77
    $region76: #{forward.1} parent=1 // pred_region
      _
    $region77: #{forward.1} parent=1 // pred_fallthru
      _
    // Predicated region
    $region78: #{forward.1} parent=1 // pred_check
      _
    $region79: #{forward.1} parent=1 // pred_check_branch
      %69 = sbr.rel (0) target = $region81
    $region80: #{forward.1} parent=1 // pred_region
      _
    $region81: #{forward.1} parent=1 // pred_fallthru
      _
    // Predicated region
    $region82: #{forward.1} parent=1 // pred_check
      _
    $region83: #{forward.1} parent=1 // pred_check_branch
      %71 = sbr.rel (0) target = $region85
    $region84: #{forward.1} parent=1 // pred_region
      _
    $region85: #{forward.1} parent=1 // pred_fallthru
      _
    %v73 = vld [vmem:[%s0] sm:$0xff]
    %v74 = vld [vmem:[%s0 + $0x8] sm:$0xff]
    %v75 = vld [vmem:[%s3] sm:$0x1]
    %v76 = vld [vmem:[%s4] sm:$0x1]
    %vm77 = vcmask 523264
    %v78 = vsel %vm77, %v73, 0.0
    %79 = vadd.xlane.f32.xlu0 %v78
    %v80 = vpop.xlane.xlu0 %79
    %v81 = vsel %vm77, %v74, 0.0
    %82 = vadd.xlane.f32.xlu0 %v81
    %v83 = vpop.xlane.xlu0 %82
    %v84 = vrcp.pop 64.0
    %v85 = vmul.f32 %v80, %v84
    %v86 = vmul.f32 %v83, %v84
    %v87 = vsub.f32 %v73, %v85
    %v88 = vsub.f32 %v74, %v86
    %v89 = vmul.f32 %v87, %v87
    %v90 = vmul.f32 %v88, %v88
    %v91 = vsel %vm77, %v89, 0.0
    %92 = vadd.xlane.f32.xlu0 %v91
    %v93 = vpop.xlane.xlu0 %92
    %v94 = vsel %vm77, %v90, 0.0
    %95 = vadd.xlane.f32.xlu0 %v94
    %v96 = vpop.xlane.xlu0 %95
    %v97 = vmul.f32 %v93, %v84
    %v98 = vmul.f32 %v96, %v84
    %v99 = vadd.f32 %v97, 1e-05
    %v100 = vadd.f32 %v98, 1e-05
    %v101 = vrsqrt.pop %v99
    %v102 = vrsqrt.pop %v100
    %v103 = vmul.f32 %v87, %v101
    %v104 = vmul.f32 %v88, %v102
    %v106 = vlaneseq
    %v107 = vshrl.u32 %v106, 7
    %v108 = vsub.s32 0, %v107
    %v109 = vrot.slane %v75, %v108
    %v111 = vmul.f32 %v103, %v109
    %v112 = vmul.f32 %v104, %v109
    %v114 = vlaneseq
    %v115 = vshrl.u32 %v114, 7
    %v116 = vsub.s32 0, %v115
    %v117 = vrot.slane %v76, %v116
    %v119 = vadd.f32 %v111, %v117
    %v120 = vadd.f32 %v112, %v117
    %v121 = vld [vmem:[%s1] sm:$0xff]
    %v122 = vld [vmem:[%s1 + $0x8] sm:$0xff]
    %v123 = vld [vmem:[%s1 + $0x10] sm:$0xff]
    %v124 = vld [vmem:[%s1 + $0x18] sm:$0xff]
    %v125 = vld [vmem:[%s1 + $0x20] sm:$0xff]
    %v126 = vld [vmem:[%s1 + $0x28] sm:$0xff]
    %v127 = vld [vmem:[%s1 + $0x30] sm:$0xff]
    %v128 = vld [vmem:[%s1 + $0x38] sm:$0xff]
    %v129 = vpack.c.bf16 %v120, %v119
    %v130 = vld [vmem:[%s5] sm:$0xff]
    %v131 = vld [vmem:[%s5 + $0x8] sm:$0xff]
    %v132 = vld [vmem:[%s5 + $0x10] sm:$0xff]
    %v133 = vld [vmem:[%s5 + $0x18] sm:$0xff]
    %v134 = vld [vmem:[%s5 + $0x20] sm:$0xff]
    %v135 = vld [vmem:[%s5 + $0x28] sm:$0xff]
    %v136 = vld [vmem:[%s5 + $0x30] sm:$0xff]
    %v137 = vld [vmem:[%s5 + $0x38] sm:$0xff]
    %v138 = vld [vmem:[%s6] sm:$0x3]
    %v140 = vlaneseq
    %v141 = vshrl.u32 %v140, 7
    %v142 = vsub.s32 0, %v141
    %v143 = vrot.slane %v138, %v142
    %v144 = vlaneseq
    %v145 = vshrl.u32 %v144, 7
    %v146 = vsub.s32 1, %v145
    %v147 = vrot.slane %v138, %v146
    %v158 = vunpack.c.l.b16 %v130
    %v159 = vunpack.c.h.b16 %v130
    %v160 = vunpack.c.l.b16 %v131
    %v161 = vunpack.c.h.b16 %v131
    %v162 = vunpack.c.l.b16 %v132
    %v163 = vunpack.c.h.b16 %v132
    %v164 = vunpack.c.l.b16 %v133
    %v165 = vunpack.c.h.b16 %v133
    %v166 = vunpack.c.l.b16 %v134
    %v167 = vunpack.c.h.b16 %v134
    %v168 = vunpack.c.l.b16 %v135
    %v169 = vunpack.c.h.b16 %v135
    %v170 = vunpack.c.l.b16 %v136
    %v171 = vunpack.c.h.b16 %v136
    %v172 = vunpack.c.l.b16 %v137
    %v173 = vunpack.c.h.b16 %v137
    %v174 = vpack.c.b16 %v160, %v158
    %v175 = vpack.c.b16 %v161, %v159
    %v176 = vpack.c.b16 %v164, %v162
    %v177 = vpack.c.b16 %v165, %v163
    %v178 = vpack.c.b16 %v168, %v166
    %v179 = vpack.c.b16 %v169, %v167
    %v180 = vpack.c.b16 %v172, %v170
    %v181 = vpack.c.b16 %v173, %v171
    %v191 = vsel %vm77, %v129, 0
    %193 = vmatprep.subr.bf16.mxu0 %v175
    %194 = vmatpush1.bf16.msra.mxu0 %v174
    %195 = vmatprep.subr.bf16.mxu0 %v177
    %196 = vmatpush1.bf16.msra.mxu0 %v176
    %197 = vmatprep.subr.bf16.mxu0 %v179
    %198 = vmatpush1.bf16.msra.mxu0 %v178
    %199 = vmatprep.subr.bf16.mxu0 %v181
    %200 = vmatpush1.bf16.msra.mxu0 %v180
    %201 = vmatprep.subr.bf16.mxu0 0
    %202 = vmatpush1.bf16.msra.mxu0 0
    %203 = vmatprep.subr.bf16.mxu0 0
    %204 = vmatpush1.bf16.msra.mxu0 0
    %205 = vmatprep.subr.bf16.mxu0 0
    %206 = vmatpush1.bf16.msra.mxu0 0
    %207 = vmatprep.subr.bf16.mxu0 0
    %208 = vmatpush1.bf16.msra.mxu0 0
    %209 = vmatprep.subr.bf16.mxu0 0
    %210 = vmatpush1.bf16.msra.mxu0 0
    %211 = vmatprep.subr.bf16.mxu0 0
    %212 = vmatpush1.bf16.msra.mxu0 0
    %213 = vmatprep.subr.bf16.mxu0 0
    %214 = vmatpush1.bf16.msra.mxu0 0
    %215 = vmatprep.subr.bf16.mxu0 0
    %216 = vmatpush1.bf16.msra.mxu0 0
    %217 = vmatprep.subr.bf16.mxu0 0
    %218 = vmatpush1.bf16.msra.mxu0 0
    %219 = vmatprep.subr.bf16.mxu0 0
    %220 = vmatpush1.bf16.msra.mxu0 0
    %221 = vmatprep.subr.bf16.mxu0 0
    %222 = vmatpush1.bf16.msra.mxu0 0
    %223 = vmatprep.subr.bf16.mxu0 0
    %224 = vmatpush1.bf16.msra.mxu0 0
    %225 = vmatprep.mubr.bf16.mxu0 0
    %226 = vmatmul.mubr.bf16.gmra.mrb[0].mxu0 %v191
    %v227 = vpop.f32.mrb[0].mxu0
    %v228 = vadd.f32 %v143, %v227
    %v229 = vpop.f32.mrb[0].mxu0
    %v230 = vadd.f32 %v147, %v229
    %v231 = vpop.f32.mrb[0].mxu0
    %v232 = vadd.f32 %v143, %v231
    %v233 = vpop.f32.mrb[0].mxu0
    %v234 = vadd.f32 %v147, %v233
    %235 = vdwg.mxu0
    %v236 = vpack.c.bf16 %v232, %v228
    %v237 = vpack.c.bf16 %v234, %v230
    %239 = vrot.lane.b32.xlu0 %v236, 64
    %v240 = vpop.permute.xlu0 %239
    %vm241 = vcmask 130048
    %v243 = vsel %vm241, %v236, 0
    %v246 = vsel %vm241, %v240, 0
    %248 = vmatprep.subr.bf16.mxu0 0
    %249 = vmatpush1.bf16.xpose.msra.mxu0 %v246
    %250 = vmatprep.subr.bf16.mxu0 0
    %251 = vmatpush1.bf16.xpose.msra.mxu0 0
    %252 = vmatprep.subr.bf16.mxu0 0
    %253 = vmatpush1.bf16.xpose.msra.mxu0 0
    %254 = vmatprep.subr.bf16.mxu0 0
    %255 = vmatpush1.bf16.xpose.msra.mxu0 0
    %256 = vmatprep.subr.bf16.mxu0 0
    %257 = vmatpush1.bf16.xpose.msra.mxu0 0
    %258 = vmatprep.subr.bf16.mxu0 0
    %259 = vmatpush1.bf16.xpose.msra.mxu0 0
    %260 = vmatprep.subr.bf16.mxu0 0
    %261 = vmatpush1.bf16.xpose.msra.mxu0 0
    %262 = vmatprep.subr.bf16.mxu0 0
    %263 = vmatpush1.bf16.xpose.msra.mxu0 0
    %264 = vmatprep.subr.bf16.mxu0 0
    %265 = vmatpush1.bf16.xpose.msra.mxu0 0
    %266 = vmatprep.subr.bf16.mxu0 0
    %267 = vmatpush1.bf16.xpose.msra.mxu0 0
    %268 = vmatprep.subr.bf16.mxu0 0
    %269 = vmatpush1.bf16.xpose.msra.mxu0 0
    %270 = vmatprep.subr.bf16.mxu0 0
    %271 = vmatpush1.bf16.xpose.msra.mxu0 0
    %272 = vmatprep.subr.bf16.mxu0 0
    %273 = vmatpush1.bf16.xpose.msra.mxu0 0
    %274 = vmatprep.subr.bf16.mxu0 0
    %275 = vmatpush1.bf16.xpose.msra.mxu0 0
    %276 = vmatprep.subr.bf16.mxu0 0
    %277 = vmatpush1.bf16.xpose.msra.mxu0 0
    %278 = vmatprep.subr.bf16.mxu0 0
    %279 = vmatpush1.bf16.xpose.msra.mxu0 0
    %280 = vmatprep.mubr.bf16.mxu0 0
    %281 = vmatmul.mubr.bf16.gmra.mrb[0].mxu0 %v243
    %v282 = vpop.f32.mrb[0].mxu0
    %v283 = vadd.f32 0.0, %v282
    %v284 = vpop.f32.mrb[0].mxu0
    %v285 = vpop.f32.mrb[0].mxu0
    %v286 = vpop.f32.mrb[0].mxu0
    %287 = vdwg.mxu0
    %vm288 = vcmask 64512
    %289 = vst.msk [vmem:[#allocation2] sm:$0xff] %vm288, %v283
    %290 = vrot.lane.b32.xlu0 %v236, 112
    %v291 = vpop.permute.xlu0 %290
    %292 = vrot.lane.b32.xlu0 %v236, 48
    %v293 = vpop.permute.xlu0 %292
    %v295 = vsel %vm241, %v291, 0
    %v298 = vsel %vm241, %v293, 0
    %300 = vmatprep.subr.bf16.mxu0 0
    %301 = vmatpush1.bf16.xpose.msra.mxu0 %v298
    %302 = vmatprep.subr.bf16.mxu0 0
    %303 = vmatpush1.bf16.xpose.msra.mxu0 0
    %304 = vmatprep.subr.bf16.mxu0 0
    %305 = vmatpush1.bf16.xpose.msra.mxu0 0
    %306 = vmatprep.subr.bf16.mxu0 0
    %307 = vmatpush1.bf16.xpose.msra.mxu0 0
    %308 = vmatprep.subr.bf16.mxu0 0
    %309 = vmatpush1.bf16.xpose.msra.mxu0 0
    %310 = vmatprep.subr.bf16.mxu0 0
    %311 = vmatpush1.bf16.xpose.msra.mxu0 0
    %312 = vmatprep.subr.bf16.mxu0 0
    %313 = vmatpush1.bf16.xpose.msra.mxu0 0
    %314 = vmatprep.subr.bf16.mxu0 0
    %315 = vmatpush1.bf16.xpose.msra.mxu0 0
    %316 = vmatprep.subr.bf16.mxu0 0
    %317 = vmatpush1.bf16.xpose.msra.mxu0 0
    %318 = vmatprep.subr.bf16.mxu0 0
    %319 = vmatpush1.bf16.xpose.msra.mxu0 0
    %320 = vmatprep.subr.bf16.mxu0 0
    %321 = vmatpush1.bf16.xpose.msra.mxu0 0
    %322 = vmatprep.subr.bf16.mxu0 0
    %323 = vmatpush1.bf16.xpose.msra.mxu0 0
    %324 = vmatprep.subr.bf16.mxu0 0
    %325 = vmatpush1.bf16.xpose.msra.mxu0 0
    %326 = vmatprep.subr.bf16.mxu0 0
    %327 = vmatpush1.bf16.xpose.msra.mxu0 0
    %328 = vmatprep.subr.bf16.mxu0 0
    %329 = vmatpush1.bf16.xpose.msra.mxu0 0
    %330 = vmatprep.subr.bf16.mxu0 0
    %331 = vmatpush1.bf16.xpose.msra.mxu0 0
    %332 = vmatprep.mubr.bf16.mxu0 0
    %333 = vmatmul.mubr.bf16.gmra.mrb[0].mxu0 %v295
    %v334 = vpop.f32.mrb[0].mxu0
    %v335 = vadd.f32 0.0, %v334
    %v336 = vpop.f32.mrb[0].mxu0
    %v337 = vpop.f32.mrb[0].mxu0
    %v338 = vpop.f32.mrb[0].mxu0
    %339 = vdwg.mxu0
    %340 = vst.msk [vmem:[#allocation2 + $0x8] sm:$0xff] %vm288, %v335
    %341 = vrot.lane.b32.xlu0 %v236, 96
    %v342 = vpop.permute.xlu0 %341
    %343 = vrot.lane.b32.xlu0 %v236, 32
    %v344 = vpop.permute.xlu0 %343
    %v346 = vsel %vm241, %v342, 0
    %v349 = vsel %vm241, %v344, 0
    %351 = vmatprep.subr.bf16.mxu0 0
    %352 = vmatpush1.bf16.xpose.msra.mxu0 %v349
    %353 = vmatprep.subr.bf16.mxu0 0
    %354 = vmatpush1.bf16.xpose.msra.mxu0 0
    %355 = vmatprep.subr.bf16.mxu0 0
    %356 = vmatpush1.bf16.xpose.msra.mxu0 0
    %357 = vmatprep.subr.bf16.mxu0 0
    %358 = vmatpush1.bf16.xpose.msra.mxu0 0
    %359 = vmatprep.subr.bf16.mxu0 0
    %360 = vmatpush1.bf16.xpose.msra.mxu0 0
    %361 = vmatprep.subr.bf16.mxu0 0
    %362 = vmatpush1.bf16.xpose.msra.mxu0 0
    %363 = vmatprep.subr.bf16.mxu0 0
    %364 = vmatpush1.bf16.xpose.msra.mxu0 0
    %365 = vmatprep.subr.bf16.mxu0 0
    %366 = vmatpush1.bf16.xpose.msra.mxu0 0
    %367 = vmatprep.subr.bf16.mxu0 0
    %368 = vmatpush1.bf16.xpose.msra.mxu0 0
    %369 = vmatprep.subr.bf16.mxu0 0
    %370 = vmatpush1.bf16.xpose.msra.mxu0 0
    %371 = vmatprep.subr.bf16.mxu0 0
    %372 = vmatpush1.bf16.xpose.msra.mxu0 0
    %373 = vmatprep.subr.bf16.mxu0 0
    %374 = vmatpush1.bf16.xpose.msra.mxu0 0
    %375 = vmatprep.subr.bf16.mxu0 0
    %376 = vmatpush1.bf16.xpose.msra.mxu0 0
    %377 = vmatprep.subr.bf16.mxu0 0
    %378 = vmatpush1.bf16.xpose.msra.mxu0 0
    %379 = vmatprep.subr.bf16.mxu0 0
    %380 = vmatpush1.bf16.xpose.msra.mxu0 0
    %381 = vmatprep.subr.bf16.mxu0 0
    %382 = vmatpush1.bf16.xpose.msra.mxu0 0
    %383 = vmatprep.mubr.bf16.mxu0 0
    %384 = vmatmul.mubr.bf16.gmra.mrb[0].mxu0 %v346
    %v385 = vpop.f32.mrb[0].mxu0
    %v386 = vadd.f32 0.0, %v385
    %v387 = vpop.f32.mrb[0].mxu0
    %v388 = vpop.f32.mrb[0].mxu0
    %v389 = vpop.f32.mrb[0].mxu0
    %390 = vdwg.mxu0
    %391 = vst.msk [vmem:[#allocation2 + $0x10] sm:$0xff] %vm288, %v386
    %392 = vrot.lane.b32.xlu0 %v236, 80
    %v393 = vpop.permute.xlu0 %392
    %394 = vrot.lane.b32.xlu0 %v236, 16
    %v395 = vpop.permute.xlu0 %394
    %v397 = vsel %vm241, %v393, 0
    %v400 = vsel %vm241, %v395, 0
    %402 = vmatprep.subr.bf16.mxu0 0
    %403 = vmatpush1.bf16.xpose.msra.mxu0 %v400
    %404 = vmatprep.subr.bf16.mxu0 0
    %405 = vmatpush1.bf16.xpose.msra.mxu0 0
    %406 = vmatprep.subr.bf16.mxu0 0
    %407 = vmatpush1.bf16.xpose.msra.mxu0 0
    %408 = vmatprep.subr.bf16.mxu0 0
    %409 = vmatpush1.bf16.xpose.msra.mxu0 0
    %410 = vmatprep.subr.bf16.mxu0 0
    %411 = vmatpush1.bf16.xpose.msra.mxu0 0
    %412 = vmatprep.subr.bf16.mxu0 0
    %413 = vmatpush1.bf16.xpose.msra.mxu0 0
    %414 = vmatprep.subr.bf16.mxu0 0
    %415 = vmatpush1.bf16.xpose.msra.mxu0 0
    %416 = vmatprep.subr.bf16.mxu0 0
    %417 = vmatpush1.bf16.xpose.msra.mxu0 0
    %418 = vmatprep.subr.bf16.mxu0 0
    %419 = vmatpush1.bf16.xpose.msra.mxu0 0
    %420 = vmatprep.subr.bf16.mxu0 0
    %421 = vmatpush1.bf16.xpose.msra.mxu0 0
    %422 = vmatprep.subr.bf16.mxu0 0
    %423 = vmatpush1.bf16.xpose.msra.mxu0 0
    %424 = vmatprep.subr.bf16.mxu0 0
    %425 = vmatpush1.bf16.xpose.msra.mxu0 0
    %426 = vmatprep.subr.bf16.mxu0 0
    %427 = vmatpush1.bf16.xpose.msra.mxu0 0
    %428 = vmatprep.subr.bf16.mxu0 0
    %429 = vmatpush1.bf16.xpose.msra.mxu0 0
    %430 = vmatprep.subr.bf16.mxu0 0
    %431 = vmatpush1.bf16.xpose.msra.mxu0 0
    %432 = vmatprep.subr.bf16.mxu0 0
    %433 = vmatpush1.bf16.xpose.msra.mxu0 0
    %434 = vmatprep.mubr.bf16.mxu0 0
    %435 = vmatmul.mubr.bf16.gmra.mrb[0].mxu0 %v397
    %v436 = vpop.f32.mrb[0].mxu0
    %v437 = vadd.f32 0.0, %v436
    %v438 = vpop.f32.mrb[0].mxu0
    %v439 = vpop.f32.mrb[0].mxu0
    %v440 = vpop.f32.mrb[0].mxu0
    %441 = vdwg.mxu0
    %442 = vst.msk [vmem:[#allocation2 + $0x18] sm:$0xff] %vm288, %v437
    %v443 = vrot.slane %v236, 4
    %444 = vrot.lane.b32.xlu0 %v443, 64
    %v445 = vpop.permute.xlu0 %444
    %v447 = vsel %vm241, %v443, 0
    %v450 = vsel %vm241, %v445, 0
    %452 = vmatprep.subr.bf16.mxu0 0
    %453 = vmatpush1.bf16.xpose.msra.mxu0 %v450
    %454 = vmatprep.subr.bf16.mxu0 0
    %455 = vmatpush1.bf16.xpose.msra.mxu0 0
    %456 = vmatprep.subr.bf16.mxu0 0
    %457 = vmatpush1.bf16.xpose.msra.mxu0 0
    %458 = vmatprep.subr.bf16.mxu0 0
    %459 = vmatpush1.bf16.xpose.msra.mxu0 0
    %460 = vmatprep.subr.bf16.mxu0 0
    %461 = vmatpush1.bf16.xpose.msra.mxu0 0
    %462 = vmatprep.subr.bf16.mxu0 0
    %463 = vmatpush1.bf16.xpose.msra.mxu0 0
    %464 = vmatprep.subr.bf16.mxu0 0
    %465 = vmatpush1.bf16.xpose.msra.mxu0 0
    %466 = vmatprep.subr.bf16.mxu0 0
    %467 = vmatpush1.bf16.xpose.msra.mxu0 0
    %468 = vmatprep.subr.bf16.mxu0 0
    %469 = vmatpush1.bf16.xpose.msra.mxu0 0
    %470 = vmatprep.subr.bf16.mxu0 0
    %471 = vmatpush1.bf16.xpose.msra.mxu0 0
    %472 = vmatprep.subr.bf16.mxu0 0
    %473 = vmatpush1.bf16.xpose.msra.mxu0 0
    %474 = vmatprep.subr.bf16.mxu0 0
    %475 = vmatpush1.bf16.xpose.msra.mxu0 0
    %476 = vmatprep.subr.bf16.mxu0 0
    %477 = vmatpush1.bf16.xpose.msra.mxu0 0
    %478 = vmatprep.subr.bf16.mxu0 0
    %479 = vmatpush1.bf16.xpose.msra.mxu0 0
    %480 = vmatprep.subr.bf16.mxu0 0
    %481 = vmatpush1.bf16.xpose.msra.mxu0 0
    %482 = vmatprep.subr.bf16.mxu0 0
    %483 = vmatpush1.bf16.xpose.msra.mxu0 0
    %484 = vmatprep.mubr.bf16.mxu0 0
    %485 = vmatmul.mubr.bf16.gmra.mrb[0].mxu0 %v447
    %v486 = vpop.f32.mrb[0].mxu0
    %v487 = vadd.f32 0.0, %v486
    %v488 = vpop.f32.mrb[0].mxu0
    %v489 = vpop.f32.mrb[0].mxu0
    %v490 = vpop.f32.mrb[0].mxu0
    %491 = vdwg.mxu0
    %492 = vst.msk [vmem:[#allocation2 + $0x20] sm:$0xff] %vm288, %v487
    %493 = vrot.lane.b32.xlu0 %v443, 112
    %v494 = vpop.permute.xlu0 %493
    %495 = vrot.lane.b32.xlu0 %v443, 48
    %v496 = vpop.permute.xlu0 %495
    %v498 = vsel %vm241, %v494, 0
    %v501 = vsel %vm241, %v496, 0
    %503 = vmatprep.subr.bf16.mxu0 0
    %504 = vmatpush1.bf16.xpose.msra.mxu0 %v501
    %505 = vmatprep.subr.bf16.mxu0 0
    %506 = vmatpush1.bf16.xpose.msra.mxu0 0
    %507 = vmatprep.subr.bf16.mxu0 0
    %508 = vmatpush1.bf16.xpose.msra.mxu0 0
    %509 = vmatprep.subr.bf16.mxu0 0
    %510 = vmatpush1.bf16.xpose.msra.mxu0 0
    %511 = vmatprep.subr.bf16.mxu0 0
    %512 = vmatpush1.bf16.xpose.msra.mxu0 0
    %513 = vmatprep.subr.bf16.mxu0 0
    %514 = vmatpush1.bf16.xpose.msra.mxu0 0
    %515 = vmatprep.subr.bf16.mxu0 0
    %516 = vmatpush1.bf16.xpose.msra.mxu0 0
    %517 = vmatprep.subr.bf16.mxu0 0
    %518 = vmatpush1.bf16.xpose.msra.mxu0 0
    %519 = vmatprep.subr.bf16.mxu0 0
    %520 = vmatpush1.bf16.xpose.msra.mxu0 0
    %521 = vmatprep.subr.bf16.mxu0 0
    %522 = vmatpush1.bf16.xpose.msra.mxu0 0
    %523 = vmatprep.subr.bf16.mxu0 0
    %524 = vmatpush1.bf16.xpose.msra.mxu0 0
    %525 = vmatprep.subr.bf16.mxu0 0
    %526 = vmatpush1.bf16.xpose.msra.mxu0 0
    %527 = vmatprep.subr.bf16.mxu0 0
    %528 = vmatpush1.bf16.xpose.msra.mxu0 0
    %529 = vmatprep.subr.bf16.mxu0 0
    %530 = vmatpush1.bf16.xpose.msra.mxu0 0
    %531 = vmatprep.subr.bf16.mxu0 0
    %532 = vmatpush1.bf16.xpose.msra.mxu0 0
    %533 = vmatprep.subr.bf16.mxu0 0
    %534 = vmatpush1.bf16.xpose.msra.mxu0 0
    %535 = vmatprep.mubr.bf16.mxu0 0
    %536 = vmatmul.mubr.bf16.gmra.mrb[0].mxu0 %v498
    %v537 = vpop.f32.mrb[0].mxu0
    %v538 = vadd.f32 0.0, %v537
    %v539 = vpop.f32.mrb[0].mxu0
    %v540 = vpop.f32.mrb[0].mxu0
    %v541 = vpop.f32.mrb[0].mxu0
    %542 = vdwg.mxu0
    %543 = vst.msk [vmem:[#allocation2 + $0x28] sm:$0xff] %vm288, %v538
    %544 = vrot.lane.b32.xlu0 %v443, 96
    %v545 = vpop.permute.xlu0 %544
    %546 = vrot.lane.b32.xlu0 %v443, 32
    %v547 = vpop.permute.xlu0 %546
    %v549 = vsel %vm241, %v545, 0
    %v552 = vsel %vm241, %v547, 0
    %554 = vmatprep.subr.bf16.mxu0 0
    %555 = vmatpush1.bf16.xpose.msra.mxu0 %v552
    %556 = vmatprep.subr.bf16.mxu0 0
    %557 = vmatpush1.bf16.xpose.msra.mxu0 0
    %558 = vmatprep.subr.bf16.mxu0 0
    %559 = vmatpush1.bf16.xpose.msra.mxu0 0
    %560 = vmatprep.subr.bf16.mxu0 0
    %561 = vmatpush1.bf16.xpose.msra.mxu0 0
    %562 = vmatprep.subr.bf16.mxu0 0
    %563 = vmatpush1.bf16.xpose.msra.mxu0 0
    %564 = vmatprep.subr.bf16.mxu0 0
    %565 = vmatpush1.bf16.xpose.msra.mxu0 0
    %566 = vmatprep.subr.bf16.mxu0 0
    %567 = vmatpush1.bf16.xpose.msra.mxu0 0
    %568 = vmatprep.subr.bf16.mxu0 0
    %569 = vmatpush1.bf16.xpose.msra.mxu0 0
    %570 = vmatprep.subr.bf16.mxu0 0
    %571 = vmatpush1.bf16.xpose.msra.mxu0 0
    %572 = vmatprep.subr.bf16.mxu0 0
    %573 = vmatpush1.bf16.xpose.msra.mxu0 0
    %574 = vmatprep.subr.bf16.mxu0 0
    %575 = vmatpush1.bf16.xpose.msra.mxu0 0
    %576 = vmatprep.subr.bf16.mxu0 0
    %577 = vmatpush1.bf16.xpose.msra.mxu0 0
    %578 = vmatprep.subr.bf16.mxu0 0
    %579 = vmatpush1.bf16.xpose.msra.mxu0 0
    %580 = vmatprep.subr.bf16.mxu0 0
    %581 = vmatpush1.bf16.xpose.msra.mxu0 0
    %582 = vmatprep.subr.bf16.mxu0 0
    %583 = vmatpush1.bf16.xpose.msra.mxu0 0
    %584 = vmatprep.subr.bf16.mxu0 0
    %585 = vmatpush1.bf16.xpose.msra.mxu0 0
    %586 = vmatprep.mubr.bf16.mxu0 0
    %587 = vmatmul.mubr.bf16.gmra.mrb[0].mxu0 %v549
    %v588 = vpop.f32.mrb[0].mxu0
    %v589 = vadd.f32 0.0, %v588
    %v590 = vpop.f32.mrb[0].mxu0
    %v591 = vpop.f32.mrb[0].mxu0
    %v592 = vpop.f32.mrb[0].mxu0
    %593 = vdwg.mxu0
    %594 = vst.msk [vmem:[#allocation2 + $0x30] sm:$0xff] %vm288, %v589
    %595 = vrot.lane.b32.xlu0 %v443, 80
    %v596 = vpop.permute.xlu0 %595
    %597 = vrot.lane.b32.xlu0 %v443, 16
    %v598 = vpop.permute.xlu0 %597
    %v600 = vsel %vm241, %v596, 0
    %v603 = vsel %vm241, %v598, 0
    %605 = vmatprep.subr.bf16.mxu0 0
    %606 = vmatpush1.bf16.xpose.msra.mxu0 %v603
    %607 = vmatprep.subr.bf16.mxu0 0
    %608 = vmatpush1.bf16.xpose.msra.mxu0 0
    %609 = vmatprep.subr.bf16.mxu0 0
    %610 = vmatpush1.bf16.xpose.msra.mxu0 0
    %611 = vmatprep.subr.bf16.mxu0 0
    %612 = vmatpush1.bf16.xpose.msra.mxu0 0
    %613 = vmatprep.subr.bf16.mxu0 0
    %614 = vmatpush1.bf16.xpose.msra.mxu0 0
    %615 = vmatprep.subr.bf16.mxu0 0
    %616 = vmatpush1.bf16.xpose.msra.mxu0 0
    %617 = vmatprep.subr.bf16.mxu0 0
    %618 = vmatpush1.bf16.xpose.msra.mxu0 0
    %619 = vmatprep.subr.bf16.mxu0 0
    %620 = vmatpush1.bf16.xpose.msra.mxu0 0
    %621 = vmatprep.subr.bf16.mxu0 0
    %622 = vmatpush1.bf16.xpose.msra.mxu0 0
    %623 = vmatprep.subr.bf16.mxu0 0
    %624 = vmatpush1.bf16.xpose.msra.mxu0 0
    %625 = vmatprep.subr.bf16.mxu0 0
    %626 = vmatpush1.bf16.xpose.msra.mxu0 0
    %627 = vmatprep.subr.bf16.mxu0 0
    %628 = vmatpush1.bf16.xpose.msra.mxu0 0
    %629 = vmatprep.subr.bf16.mxu0 0
    %630 = vmatpush1.bf16.xpose.msra.mxu0 0
    %631 = vmatprep.subr.bf16.mxu0 0
    %632 = vmatpush1.bf16.xpose.msra.mxu0 0
    %633 = vmatprep.subr.bf16.mxu0 0
    %634 = vmatpush1.bf16.xpose.msra.mxu0 0
    %635 = vmatprep.subr.bf16.mxu0 0
    %636 = vmatpush1.bf16.xpose.msra.mxu0 0
    %637 = vmatprep.mubr.bf16.mxu0 0
    %638 = vmatmul.mubr.bf16.gmra.mrb[0].mxu0 %v600
    %v639 = vpop.f32.mrb[0].mxu0
    %v640 = vadd.f32 0.0, %v639
    %v641 = vpop.f32.mrb[0].mxu0
    %v642 = vpop.f32.mrb[0].mxu0
    %v643 = vpop.f32.mrb[0].mxu0
    %644 = vdwg.mxu0
    %645 = vst.msk [vmem:[#allocation2 + $0x38] sm:$0xff] %vm288, %v640
    %v646 = vld [vmem:[#allocation2] sm:$0xff]
    %v647 = vld [vmem:[#allocation2 + $0x8] sm:$0xff]
    %v648 = vld [vmem:[#allocation2 + $0x10] sm:$0xff]
    %v649 = vld [vmem:[#allocation2 + $0x18] sm:$0xff]
    %v650 = vld [vmem:[#allocation2 + $0x20] sm:$0xff]
    %v651 = vld [vmem:[#allocation2 + $0x28] sm:$0xff]
    %v652 = vld [vmem:[#allocation2 + $0x30] sm:$0xff]
    %v653 = vld [vmem:[#allocation2 + $0x38] sm:$0xff]
    %v654 = vmul.f32 %v646, 0.25
    %v655 = vmul.f32 %v647, 0.25
    %v656 = vmul.f32 %v648, 0.25
    %v657 = vmul.f32 %v649, 0.25
    %v658 = vmul.f32 %v650, 0.25
    %v659 = vmul.f32 %v651, 0.25
    %v660 = vmul.f32 %v652, 0.25
    %v661 = vmul.f32 %v653, 0.25
    %v662 = vadd.f32 %v654, %v121
    %v663 = vadd.f32 %v655, %v122
    %v664 = vadd.f32 %v656, %v123
    %v665 = vadd.f32 %v657, %v124
    %v666 = vadd.f32 %v658, %v125
    %v667 = vadd.f32 %v659, %v126
    %v668 = vadd.f32 %v660, %v127
    %v669 = vadd.f32 %v661, %v128
    %v670 = vsel %vm288, %v662, -inf
    %671 = vmax.xlane.f32.xlu0 %v670
    %v672 = vpop.xlane.xlu0 %671
    %v673 = vsel %vm288, %v663, -inf
    %674 = vmax.xlane.f32.xlu0 %v673
    %v675 = vpop.xlane.xlu0 %674
    %v676 = vsel %vm288, %v664, -inf
    %677 = vmax.xlane.f32.xlu0 %v676
    %v678 = vpop.xlane.xlu0 %677
    %v679 = vsel %vm288, %v665, -inf
    %680 = vmax.xlane.f32.xlu0 %v679
    %v681 = vpop.xlane.xlu0 %680
    %v682 = vsel %vm288, %v666, -inf
    %683 = vmax.xlane.f32.xlu0 %v682
    %v684 = vpop.xlane.xlu0 %683
    %v685 = vsel %vm288, %v667, -inf
    %686 = vmax.xlane.f32.xlu0 %v685
    %v687 = vpop.xlane.xlu0 %686
    %v688 = vsel %vm288, %v668, -inf
    %689 = vmax.xlane.f32.xlu0 %v688
    %v690 = vpop.xlane.xlu0 %689
    %v691 = vsel %vm288, %v669, -inf
    %692 = vmax.xlane.f32.xlu0 %v691
    %v693 = vpop.xlane.xlu0 %692
    %v694 = vsub.f32 %v662, %v672
    %v695 = vsub.f32 %v663, %v675
    %v696 = vsub.f32 %v664, %v678
    %v697 = vsub.f32 %v665, %v681
    %v698 = vsub.f32 %v666, %v684
    %v699 = vsub.f32 %v667, %v687
    %v700 = vsub.f32 %v668, %v690
    %v701 = vsub.f32 %v669, %v693
    %v702 = vmul.f32 %v694, 1.442695
    %v703 = vpow.pop %v702
    %v704 = vmul.f32 %v695, 1.442695
    %v705 = vpow.pop %v704
    %v706 = vmul.f32 %v696, 1.442695
    %v707 = vpow.pop %v706
    %v708 = vmul.f32 %v697, 1.442695
    %v709 = vpow.pop %v708
    %v710 = vmul.f32 %v698, 1.442695
    %v711 = vpow.pop %v710
    %v712 = vmul.f32 %v699, 1.442695
    %v713 = vpow.pop %v712
    %v714 = vmul.f32 %v700, 1.442695
    %v715 = vpow.pop %v714
    %v716 = vmul.f32 %v701, 1.442695
    %v717 = vpow.pop %v716
    %v718 = vsel %vm288, %v703, 0.0
    %719 = vadd.xlane.f32.xlu0 %v718
    %v720 = vpop.xlane.xlu0 %719
    %v721 = vsel %vm288, %v705, 0.0
    %722 = vadd.xlane.f32.xlu0 %v721
    %v723 = vpop.xlane.xlu0 %722
    %v724 = vsel %vm288, %v707, 0.0
    %725 = vadd.xlane.f32.xlu0 %v724
    %v726 = vpop.xlane.xlu0 %725
    %v727 = vsel %vm288, %v709, 0.0
    %728 = vadd.xlane.f32.xlu0 %v727
    %v729 = vpop.xlane.xlu0 %728
    %v730 = vsel %vm288, %v711, 0.0
    %731 = vadd.xlane.f32.xlu0 %v730
    %v732 = vpop.xlane.xlu0 %731
    %v733 = vsel %vm288, %v713, 0.0
    %734 = vadd.xlane.f32.xlu0 %v733
    %v735 = vpop.xlane.xlu0 %734
    %v736 = vsel %vm288, %v715, 0.0
    %737 = vadd.xlane.f32.xlu0 %v736
    %v738 = vpop.xlane.xlu0 %737
    %v739 = vsel %vm288, %v717, 0.0
    %740 = vadd.xlane.f32.xlu0 %v739
    %v741 = vpop.xlane.xlu0 %740
    %v742 = vrcp.pop %v720
    %v743 = vrcp.pop %v723
    %v744 = vrcp.pop %v726
    %v745 = vrcp.pop %v729
    %v746 = vrcp.pop %v732
    %v747 = vrcp.pop %v735
    %v748 = vrcp.pop %v738
    %v749 = vrcp.pop %v741
    %v750 = vmul.f32 %v703, %v742
    %v751 = vmul.f32 %v705, %v743
    %v752 = vmul.f32 %v707, %v744
    %v753 = vmul.f32 %v709, %v745
    %v754 = vmul.f32 %v711, %v746
    %v755 = vmul.f32 %v713, %v747
    %v756 = vmul.f32 %v715, %v748
    %v757 = vmul.f32 %v717, %v749
    %v758 = vpack.c.bf16 %v751, %v750
    %v759 = vpack.c.bf16 %v753, %v752
    %v760 = vpack.c.bf16 %v755, %v754
    %v761 = vpack.c.bf16 %v757, %v756
    %v763 = vsel %vm288, %v758, 0
    %vm765 = vcmask 1043456
    %v767 = vsel %vm765, %v237, 0
    %769 = vmatprep.subr.bf16.mxu0 0
    %770 = vmatpush1.bf16.msra.mxu0 %v767
    %771 = vmatprep.subr.bf16.mxu0 0
    %772 = vmatpush1.bf16.msra.mxu0 0
    %773 = vmatprep.subr.bf16.mxu0 0
    %774 = vmatpush1.bf16.msra.mxu0 0
    %775 = vmatprep.subr.bf16.mxu0 0
    %776 = vmatpush1.bf16.msra.mxu0 0
    %777 = vmatprep.subr.bf16.mxu0 0
    %778 = vmatpush1.bf16.msra.mxu0 0
    %779 = vmatprep.subr.bf16.mxu0 0
    %780 = vmatpush1.bf16.msra.mxu0 0
    %781 = vmatprep.subr.bf16.mxu0 0
    %782 = vmatpush1.bf16.msra.mxu0 0
    %783 = vmatprep.subr.bf16.mxu0 0
    %784 = vmatpush1.bf16.msra.mxu0 0
    %785 = vmatprep.subr.bf16.mxu0 0
    %786 = vmatpush1.bf16.msra.mxu0 0
    %787 = vmatprep.subr.bf16.mxu0 0
    %788 = vmatpush1.bf16.msra.mxu0 0
    %789 = vmatprep.subr.bf16.mxu0 0
    %790 = vmatpush1.bf16.msra.mxu0 0
    %791 = vmatprep.subr.bf16.mxu0 0
    %792 = vmatpush1.bf16.msra.mxu0 0
    %793 = vmatprep.subr.bf16.mxu0 0
    %794 = vmatpush1.bf16.msra.mxu0 0
    %795 = vmatprep.subr.bf16.mxu0 0
    %796 = vmatpush1.bf16.msra.mxu0 0
    %797 = vmatprep.subr.bf16.mxu0 0
    %798 = vmatpush1.bf16.msra.mxu0 0
    %799 = vmatprep.subr.bf16.mxu0 0
    %800 = vmatpush1.bf16.msra.mxu0 0
    %801 = vmatprep.mubr.bf16.mxu0 0
    %802 = vmatmul.mubr.bf16.gmra.mrb[0].mxu0 %v763
    %v803 = vpop.f32.mrb[0].mxu0
    %v804 = vadd.f32 0.0, %v803
    %v805 = vpop.f32.mrb[0].mxu0
    %v806 = vpop.f32.mrb[0].mxu0
    %v807 = vpop.f32.mrb[0].mxu0
    %808 = vdwg.mxu0
    %809 = vst.msk [vmem:[#allocation3] sm:$0xff] %vm241, %v804
    %v811 = vrot.slane %v758, 4
    %813 = vrot.lane.b32.xlu0 %v237, 112
    %v814 = vpop.permute.xlu0 %813
    %v816 = vsel %vm288, %v811, 0
    %v819 = vsel %vm765, %v814, 0
    %821 = vmatprep.subr.bf16.mxu0 0
    %822 = vmatpush1.bf16.msra.mxu0 %v819
    %823 = vmatprep.subr.bf16.mxu0 0
    %824 = vmatpush1.bf16.msra.mxu0 0
    %825 = vmatprep.subr.bf16.mxu0 0
    %826 = vmatpush1.bf16.msra.mxu0 0
    %827 = vmatprep.subr.bf16.mxu0 0
    %828 = vmatpush1.bf16.msra.mxu0 0
    %829 = vmatprep.subr.bf16.mxu0 0
    %830 = vmatpush1.bf16.msra.mxu0 0
    %831 = vmatprep.subr.bf16.mxu0 0
    %832 = vmatpush1.bf16.msra.mxu0 0
    %833 = vmatprep.subr.bf16.mxu0 0
    %834 = vmatpush1.bf16.msra.mxu0 0
    %835 = vmatprep.subr.bf16.mxu0 0
    %836 = vmatpush1.bf16.msra.mxu0 0
    %837 = vmatprep.subr.bf16.mxu0 0
    %838 = vmatpush1.bf16.msra.mxu0 0
    %839 = vmatprep.subr.bf16.mxu0 0
    %840 = vmatpush1.bf16.msra.mxu0 0
    %841 = vmatprep.subr.bf16.mxu0 0
    %842 = vmatpush1.bf16.msra.mxu0 0
    %843 = vmatprep.subr.bf16.mxu0 0
    %844 = vmatpush1.bf16.msra.mxu0 0
    %845 = vmatprep.subr.bf16.mxu0 0
    %846 = vmatpush1.bf16.msra.mxu0 0
    %847 = vmatprep.subr.bf16.mxu0 0
    %848 = vmatpush1.bf16.msra.mxu0 0
    %849 = vmatprep.subr.bf16.mxu0 0
    %850 = vmatpush1.bf16.msra.mxu0 0
    %851 = vmatprep.subr.bf16.mxu0 0
    %852 = vmatpush1.bf16.msra.mxu0 0
    %853 = vmatprep.mubr.bf16.mxu0 0
    %854 = vmatmul.mubr.bf16.gmra.mrb[0].mxu0 %v816
    %v855 = vpop.f32.mrb[0].mxu0
    %v856 = vadd.f32 0.0, %v855
    %v857 = vpop.f32.mrb[0].mxu0
    %v858 = vpop.f32.mrb[0].mxu0
    %v859 = vpop.f32.mrb[0].mxu0
    %860 = vdwg.mxu0
    %862 = vrot.lane.b32.xlu0 %v856, 16
    %v863 = vpop.permute.xlu0 %862
    %vm865 = vcmask 261248
    %866 = vst.msk [vmem:[#allocation3] sm:$0xff] %vm865, %v863
    %867 = vrot.lane.b32.xlu0 %v237, 96
    %v868 = vpop.permute.xlu0 %867
    %v870 = vsel %vm288, %v759, 0
    %v873 = vsel %vm765, %v868, 0
    %875 = vmatprep.subr.bf16.mxu0 0
    %876 = vmatpush1.bf16.msra.mxu0 %v873
    %877 = vmatprep.subr.bf16.mxu0 0
    %878 = vmatpush1.bf16.msra.mxu0 0
    %879 = vmatprep.subr.bf16.mxu0 0
    %880 = vmatpush1.bf16.msra.mxu0 0
    %881 = vmatprep.subr.bf16.mxu0 0
    %882 = vmatpush1.bf16.msra.mxu0 0
    %883 = vmatprep.subr.bf16.mxu0 0
    %884 = vmatpush1.bf16.msra.mxu0 0
    %885 = vmatprep.subr.bf16.mxu0 0
    %886 = vmatpush1.bf16.msra.mxu0 0
    %887 = vmatprep.subr.bf16.mxu0 0
    %888 = vmatpush1.bf16.msra.mxu0 0
    %889 = vmatprep.subr.bf16.mxu0 0
    %890 = vmatpush1.bf16.msra.mxu0 0
    %891 = vmatprep.subr.bf16.mxu0 0
    %892 = vmatpush1.bf16.msra.mxu0 0
    %893 = vmatprep.subr.bf16.mxu0 0
    %894 = vmatpush1.bf16.msra.mxu0 0
    %895 = vmatprep.subr.bf16.mxu0 0
    %896 = vmatpush1.bf16.msra.mxu0 0
    %897 = vmatprep.subr.bf16.mxu0 0
    %898 = vmatpush1.bf16.msra.mxu0 0
    %899 = vmatprep.subr.bf16.mxu0 0
    %900 = vmatpush1.bf16.msra.mxu0 0
    %901 = vmatprep.subr.bf16.mxu0 0
    %902 = vmatpush1.bf16.msra.mxu0 0
    %903 = vmatprep.subr.bf16.mxu0 0
    %904 = vmatpush1.bf16.msra.mxu0 0
    %905 = vmatprep.subr.bf16.mxu0 0
    %906 = vmatpush1.bf16.msra.mxu0 0
    %907 = vmatprep.mubr.bf16.mxu0 0
    %908 = vmatmul.mubr.bf16.gmra.mrb[0].mxu0 %v870
    %v909 = vpop.f32.mrb[0].mxu0
    %v910 = vadd.f32 0.0, %v909
    %v911 = vpop.f32.mrb[0].mxu0
    %v912 = vpop.f32.mrb[0].mxu0
    %v913 = vpop.f32.mrb[0].mxu0
    %914 = vdwg.mxu0
    %916 = vrot.lane.b32.xlu0 %v910, 32
    %v917 = vpop.permute.xlu0 %916
    %vm919 = vcmask 392448
    %920 = vst.msk [vmem:[#allocation3] sm:$0xff] %vm919, %v917
    %v922 = vrot.slane %v759, 4
    %923 = vrot.lane.b32.xlu0 %v237, 80
    %v924 = vpop.permute.xlu0 %923
    %v926 = vsel %vm288, %v922, 0
    %v929 = vsel %vm765, %v924, 0
    %931 = vmatprep.subr.bf16.mxu0 0
    %932 = vmatpush1.bf16.msra.mxu0 %v929
    %933 = vmatprep.subr.bf16.mxu0 0
    %934 = vmatpush1.bf16.msra.mxu0 0
    %935 = vmatprep.subr.bf16.mxu0 0
    %936 = vmatpush1.bf16.msra.mxu0 0
    %937 = vmatprep.subr.bf16.mxu0 0
    %938 = vmatpush1.bf16.msra.mxu0 0
    %939 = vmatprep.subr.bf16.mxu0 0
    %940 = vmatpush1.bf16.msra.mxu0 0
    %941 = vmatprep.subr.bf16.mxu0 0
    %942 = vmatpush1.bf16.msra.mxu0 0
    %943 = vmatprep.subr.bf16.mxu0 0
    %944 = vmatpush1.bf16.msra.mxu0 0
    %945 = vmatprep.subr.bf16.mxu0 0
    %946 = vmatpush1.bf16.msra.mxu0 0
    %947 = vmatprep.subr.bf16.mxu0 0
    %948 = vmatpush1.bf16.msra.mxu0 0
    %949 = vmatprep.subr.bf16.mxu0 0
    %950 = vmatpush1.bf16.msra.mxu0 0
    %951 = vmatprep.subr.bf16.mxu0 0
    %952 = vmatpush1.bf16.msra.mxu0 0
    %953 = vmatprep.subr.bf16.mxu0 0
    %954 = vmatpush1.bf16.msra.mxu0 0
    %955 = vmatprep.subr.bf16.mxu0 0
    %956 = vmatpush1.bf16.msra.mxu0 0
    %957 = vmatprep.subr.bf16.mxu0 0
    %958 = vmatpush1.bf16.msra.mxu0 0
    %959 = vmatprep.subr.bf16.mxu0 0
    %960 = vmatpush1.bf16.msra.mxu0 0
    %961 = vmatprep.subr.bf16.mxu0 0
    %962 = vmatpush1.bf16.msra.mxu0 0
    %963 = vmatprep.mubr.bf16.mxu0 0
    %964 = vmatmul.mubr.bf16.gmra.mrb[0].mxu0 %v926
    %v965 = vpop.f32.mrb[0].mxu0
    %v966 = vadd.f32 0.0, %v965
    %v967 = vpop.f32.mrb[0].mxu0
    %v968 = vpop.f32.mrb[0].mxu0
    %v969 = vpop.f32.mrb[0].mxu0
    %970 = vdwg.mxu0
    %972 = vrot.lane.b32.xlu0 %v966, 48
    %v973 = vpop.permute.xlu0 %972
    %vm975 = vcmask 523648
    %976 = vst.msk [vmem:[#allocation3] sm:$0xff] %vm975, %v973
    %v977 = vrot.slane %v237, 4
    %v979 = vsel %vm288, %v760, 0
    %v982 = vsel %vm765, %v977, 0
    %984 = vmatprep.subr.bf16.mxu0 0
    %985 = vmatpush1.bf16.msra.mxu0 %v982
    %986 = vmatprep.subr.bf16.mxu0 0
    %987 = vmatpush1.bf16.msra.mxu0 0
    %988 = vmatprep.subr.bf16.mxu0 0
    %989 = vmatpush1.bf16.msra.mxu0 0
    %990 = vmatprep.subr.bf16.mxu0 0
    %991 = vmatpush1.bf16.msra.mxu0 0
    %992 = vmatprep.subr.bf16.mxu0 0
    %993 = vmatpush1.bf16.msra.mxu0 0
    %994 = vmatprep.subr.bf16.mxu0 0
    %995 = vmatpush1.bf16.msra.mxu0 0
    %996 = vmatprep.subr.bf16.mxu0 0
    %997 = vmatpush1.bf16.msra.mxu0 0
    %998 = vmatprep.subr.bf16.mxu0 0
    %999 = vmatpush1.bf16.msra.mxu0 0
    %1000 = vmatprep.subr.bf16.mxu0 0
    %1001 = vmatpush1.bf16.msra.mxu0 0
    %1002 = vmatprep.subr.bf16.mxu0 0
    %1003 = vmatpush1.bf16.msra.mxu0 0
    %1004 = vmatprep.subr.bf16.mxu0 0
    %1005 = vmatpush1.bf16.msra.mxu0 0
    %1006 = vmatprep.subr.bf16.mxu0 0
    %1007 = vmatpush1.bf16.msra.mxu0 0
    %1008 = vmatprep.subr.bf16.mxu0 0
    %1009 = vmatpush1.bf16.msra.mxu0 0
    %1010 = vmatprep.subr.bf16.mxu0 0
    %1011 = vmatpush1.bf16.msra.mxu0 0
    %1012 = vmatprep.subr.bf16.mxu0 0
    %1013 = vmatpush1.bf16.msra.mxu0 0
    %1014 = vmatprep.subr.bf16.mxu0 0
    %1015 = vmatpush1.bf16.msra.mxu0 0
    %1016 = vmatprep.mubr.bf16.mxu0 0
    %1017 = vmatmul.mubr.bf16.gmra.mrb[0].mxu0 %v979
    %v1018 = vpop.f32.mrb[0].mxu0
    %v1019 = vadd.f32 0.0, %v1018
    %v1020 = vpop.f32.mrb[0].mxu0
    %v1021 = vpop.f32.mrb[0].mxu0
    %v1022 = vpop.f32.mrb[0].mxu0
    %1023 = vdwg.mxu0
    %1024 = vst.msk [vmem:[#allocation3 + $0x8] sm:$0xff] %vm241, %v1019
    %v1026 = vrot.slane %v760, 4
    %1027 = vrot.lane.b32.xlu0 %v977, 112
    %v1028 = vpop.permute.xlu0 %1027
    %v1030 = vsel %vm288, %v1026, 0
    %v1033 = vsel %vm765, %v1028, 0
    %1035 = vmatprep.subr.bf16.mxu0 0
    %1036 = vmatpush1.bf16.msra.mxu0 %v1033
    %1037 = vmatprep.subr.bf16.mxu0 0
    %1038 = vmatpush1.bf16.msra.mxu0 0
    %1039 = vmatprep.subr.bf16.mxu0 0
    %1040 = vmatpush1.bf16.msra.mxu0 0
    %1041 = vmatprep.subr.bf16.mxu0 0
    %1042 = vmatpush1.bf16.msra.mxu0 0
    %1043 = vmatprep.subr.bf16.mxu0 0
    %1044 = vmatpush1.bf16.msra.mxu0 0
    %1045 = vmatprep.subr.bf16.mxu0 0
    %1046 = vmatpush1.bf16.msra.mxu0 0
    %1047 = vmatprep.subr.bf16.mxu0 0
    %1048 = vmatpush1.bf16.msra.mxu0 0
    %1049 = vmatprep.subr.bf16.mxu0 0
    %1050 = vmatpush1.bf16.msra.mxu0 0
    %1051 = vmatprep.subr.bf16.mxu0 0
    %1052 = vmatpush1.bf16.msra.mxu0 0
    %1053 = vmatprep.subr.bf16.mxu0 0
    %1054 = vmatpush1.bf16.msra.mxu0 0
    %1055 = vmatprep.subr.bf16.mxu0 0
    %1056 = vmatpush1.bf16.msra.mxu0 0
    %1057 = vmatprep.subr.bf16.mxu0 0
    %1058 = vmatpush1.bf16.msra.mxu0 0
    %1059 = vmatprep.subr.bf16.mxu0 0
    %1060 = vmatpush1.bf16.msra.mxu0 0
    %1061 = vmatprep.subr.bf16.mxu0 0
    %1062 = vmatpush1.bf16.msra.mxu0 0
    %1063 = vmatprep.subr.bf16.mxu0 0
    %1064 = vmatpush1.bf16.msra.mxu0 0
    %1065 = vmatprep.subr.bf16.mxu0 0
    %1066 = vmatpush1.bf16.msra.mxu0 0
    %1067 = vmatprep.mubr.bf16.mxu0 0
    %1068 = vmatmul.mubr.bf16.gmra.mrb[0].mxu0 %v1030
    %v1069 = vpop.f32.mrb[0].mxu0
    %v1070 = vadd.f32 0.0, %v1069
    %v1071 = vpop.f32.mrb[0].mxu0
    %v1072 = vpop.f32.mrb[0].mxu0
    %v1073 = vpop.f32.mrb[0].mxu0
    %1074 = vdwg.mxu0
    %1076 = vrot.lane.b32.xlu0 %v1070, 16
    %v1077 = vpop.permute.xlu0 %1076
    %1079 = vst.msk [vmem:[#allocation3 + $0x8] sm:$0xff] %vm865, %v1077
    %1080 = vrot.lane.b32.xlu0 %v977, 96
    %v1081 = vpop.permute.xlu0 %1080
    %v1083 = vsel %vm288, %v761, 0
    %v1086 = vsel %vm765, %v1081, 0
    %1088 = vmatprep.subr.bf16.mxu0 0
    %1089 = vmatpush1.bf16.msra.mxu0 %v1086
    %1090 = vmatprep.subr.bf16.mxu0 0
    %1091 = vmatpush1.bf16.msra.mxu0 0
    %1092 = vmatprep.subr.bf16.mxu0 0
    %1093 = vmatpush1.bf16.msra.mxu0 0
    %1094 = vmatprep.subr.bf16.mxu0 0
    %1095 = vmatpush1.bf16.msra.mxu0 0
    %1096 = vmatprep.subr.bf16.mxu0 0
    %1097 = vmatpush1.bf16.msra.mxu0 0
    %1098 = vmatprep.subr.bf16.mxu0 0
    %1099 = vmatpush1.bf16.msra.mxu0 0
    %1100 = vmatprep.subr.bf16.mxu0 0
    %1101 = vmatpush1.bf16.msra.mxu0 0
    %1102 = vmatprep.subr.bf16.mxu0 0
    %1103 = vmatpush1.bf16.msra.mxu0 0
    %1104 = vmatprep.subr.bf16.mxu0 0
    %1105 = vmatpush1.bf16.msra.mxu0 0
    %1106 = vmatprep.subr.bf16.mxu0 0
    %1107 = vmatpush1.bf16.msra.mxu0 0
    %1108 = vmatprep.subr.bf16.mxu0 0
    %1109 = vmatpush1.bf16.msra.mxu0 0
    %1110 = vmatprep.subr.bf16.mxu0 0
    %1111 = vmatpush1.bf16.msra.mxu0 0
    %1112 = vmatprep.subr.bf16.mxu0 0
    %1113 = vmatpush1.bf16.msra.mxu0 0
    %1114 = vmatprep.subr.bf16.mxu0 0
    %1115 = vmatpush1.bf16.msra.mxu0 0
    %1116 = vmatprep.subr.bf16.mxu0 0
    %1117 = vmatpush1.bf16.msra.mxu0 0
    %1118 = vmatprep.subr.bf16.mxu0 0
    %1119 = vmatpush1.bf16.msra.mxu0 0
    %1120 = vmatprep.mubr.bf16.mxu0 0
    %1121 = vmatmul.mubr.bf16.gmra.mrb[0].mxu0 %v1083
    %v1122 = vpop.f32.mrb[0].mxu0
    %v1123 = vadd.f32 0.0, %v1122
    %v1124 = vpop.f32.mrb[0].mxu0
    %v1125 = vpop.f32.mrb[0].mxu0
    %v1126 = vpop.f32.mrb[0].mxu0
    %1127 = vdwg.mxu0
    %1129 = vrot.lane.b32.xlu0 %v1123, 32
    %v1130 = vpop.permute.xlu0 %1129
    %1132 = vst.msk [vmem:[#allocation3 + $0x8] sm:$0xff] %vm919, %v1130
    %v1134 = vrot.slane %v761, 4
    %1135 = vrot.lane.b32.xlu0 %v977, 80
    %v1136 = vpop.permute.xlu0 %1135
    %v1138 = vsel %vm288, %v1134, 0
    %v1141 = vsel %vm765, %v1136, 0
    %1143 = vmatprep.subr.bf16.mxu0 0
    %1144 = vmatpush1.bf16.msra.mxu0 %v1141
    %1145 = vmatprep.subr.bf16.mxu0 0
    %1146 = vmatpush1.bf16.msra.mxu0 0
    %1147 = vmatprep.subr.bf16.mxu0 0
    %1148 = vmatpush1.bf16.msra.mxu0 0
    %1149 = vmatprep.subr.bf16.mxu0 0
    %1150 = vmatpush1.bf16.msra.mxu0 0
    %1151 = vmatprep.subr.bf16.mxu0 0
    %1152 = vmatpush1.bf16.msra.mxu0 0
    %1153 = vmatprep.subr.bf16.mxu0 0
    %1154 = vmatpush1.bf16.msra.mxu0 0
    %1155 = vmatprep.subr.bf16.mxu0 0
    %1156 = vmatpush1.bf16.msra.mxu0 0
    %1157 = vmatprep.subr.bf16.mxu0 0
    %1158 = vmatpush1.bf16.msra.mxu0 0
    %1159 = vmatprep.subr.bf16.mxu0 0
    %1160 = vmatpush1.bf16.msra.mxu0 0
    %1161 = vmatprep.subr.bf16.mxu0 0
    %1162 = vmatpush1.bf16.msra.mxu0 0
    %1163 = vmatprep.subr.bf16.mxu0 0
    %1164 = vmatpush1.bf16.msra.mxu0 0
    %1165 = vmatprep.subr.bf16.mxu0 0
    %1166 = vmatpush1.bf16.msra.mxu0 0
    %1167 = vmatprep.subr.bf16.mxu0 0
    %1168 = vmatpush1.bf16.msra.mxu0 0
    %1169 = vmatprep.subr.bf16.mxu0 0
    %1170 = vmatpush1.bf16.msra.mxu0 0
    %1171 = vmatprep.subr.bf16.mxu0 0
    %1172 = vmatpush1.bf16.msra.mxu0 0
    %1173 = vmatprep.subr.bf16.mxu0 0
    %1174 = vmatpush1.bf16.msra.mxu0 0
    %1175 = vmatprep.mubr.bf16.mxu0 0
    %1176 = vmatmul.mubr.bf16.gmra.mrb[0].mxu0 %v1138
    %v1177 = vpop.f32.mrb[0].mxu0
    %v1178 = vadd.f32 0.0, %v1177
    %v1179 = vpop.f32.mrb[0].mxu0
    %v1180 = vpop.f32.mrb[0].mxu0
    %v1181 = vpop.f32.mrb[0].mxu0
    %1182 = vdwg.mxu0
    %1184 = vrot.lane.b32.xlu0 %v1178, 48
    %v1185 = vpop.permute.xlu0 %1184
    %1187 = vst.msk [vmem:[#allocation3 + $0x8] sm:$0xff] %vm975, %v1185
    %v1188 = vld [vmem:[#allocation3] sm:$0xff]
    %v1189 = vld [vmem:[#allocation3 + $0x8] sm:$0xff]
    %v1190 = vpack.c.bf16 %v1189, %v1188
    %v1191 = vld [vmem:[%s7] sm:$0xf]
    %v1192 = vld [vmem:[%s7 + $0x4] sm:$0xf]
    %v1193 = vld [vmem:[%s7 + $0x8] sm:$0xf]
    %v1194 = vld [vmem:[%s7 + $0xc] sm:$0xf]
    %v1195 = vld [vmem:[%s7 + $0x10] sm:$0xf]
    %v1196 = vld [vmem:[%s7 + $0x14] sm:$0xf]
    %v1197 = vld [vmem:[%s7 + $0x18] sm:$0xf]
    %v1198 = vld [vmem:[%s7 + $0x1c] sm:$0xf]
    %v1199 = vld [vmem:[%s8] sm:$0x1]
    %v1201 = vlaneseq
    %v1202 = vshrl.u32 %v1201, 7
    %v1203 = vsub.s32 0, %v1202
    %v1204 = vrot.slane %v1199, %v1203
    %v1214 = vunpack.c.l.b16 %v1191
    %v1215 = vunpack.c.l.b16 %v1192
    %v1216 = vunpack.c.l.b16 %v1193
    %v1217 = vunpack.c.l.b16 %v1194
    %v1218 = vunpack.c.l.b16 %v1195
    %v1219 = vunpack.c.l.b16 %v1196
    %v1220 = vunpack.c.l.b16 %v1197
    %v1221 = vunpack.c.l.b16 %v1198
    %v1222 = vpack.c.b16 %v1215, %v1214
    %v1223 = vpack.c.b16 %v1217, %v1216
    %v1224 = vpack.c.b16 %v1219, %v1218
    %v1225 = vpack.c.b16 %v1221, %v1220
    %v1231 = vsel %vm77, %v1190, 0
    %1233 = vmatprep.subr.bf16.mxu0 0
    %1234 = vmatpush1.bf16.msra.mxu0 %v1222
    %1235 = vmatprep.subr.bf16.mxu0 0
    %1236 = vmatpush1.bf16.msra.mxu0 %v1223
    %1237 = vmatprep.subr.bf16.mxu0 0
    %1238 = vmatpush1.bf16.msra.mxu0 %v1224
    %1239 = vmatprep.subr.bf16.mxu0 0
    %1240 = vmatpush1.bf16.msra.mxu0 %v1225
    %1241 = vmatprep.subr.bf16.mxu0 0
    %1242 = vmatpush1.bf16.msra.mxu0 0
    %1243 = vmatprep.subr.bf16.mxu0 0
    %1244 = vmatpush1.bf16.msra.mxu0 0
    %1245 = vmatprep.subr.bf16.mxu0 0
    %1246 = vmatpush1.bf16.msra.mxu0 0
    %1247 = vmatprep.subr.bf16.mxu0 0
    %1248 = vmatpush1.bf16.msra.mxu0 0
    %1249 = vmatprep.subr.bf16.mxu0 0
    %1250 = vmatpush1.bf16.msra.mxu0 0
    %1251 = vmatprep.subr.bf16.mxu0 0
    %1252 = vmatpush1.bf16.msra.mxu0 0
    %1253 = vmatprep.subr.bf16.mxu0 0
    %1254 = vmatpush1.bf16.msra.mxu0 0
    %1255 = vmatprep.subr.bf16.mxu0 0
    %1256 = vmatpush1.bf16.msra.mxu0 0
    %1257 = vmatprep.subr.bf16.mxu0 0
    %1258 = vmatpush1.bf16.msra.mxu0 0
    %1259 = vmatprep.subr.bf16.mxu0 0
    %1260 = vmatpush1.bf16.msra.mxu0 0
    %1261 = vmatprep.subr.bf16.mxu0 0
    %1262 = vmatpush1.bf16.msra.mxu0 0
    %1263 = vmatprep.subr.bf16.mxu0 0
    %1264 = vmatpush1.bf16.msra.mxu0 0
    %1265 = vmatprep.mubr.bf16.mxu0 0
    %1266 = vmatmul.mubr.bf16.gmra.mrb[0].mxu0 %v1231
    %v1267 = vpop.f32.mrb[0].mxu0
    %v1268 = vadd.f32 %v1204, %v1267
    %v1269 = vpop.f32.mrb[0].mxu0
    %v1270 = vpop.f32.mrb[0].mxu0
    %v1271 = vadd.f32 %v1204, %v1270
    %v1272 = vpop.f32.mrb[0].mxu0
    %1273 = vdwg.mxu0
    %v1274 = vadd.f32 %v119, %v1268
    %v1275 = vadd.f32 %v120, %v1271
    %v1276 = vld [vmem:[%s9] sm:$0x1]
    %v1277 = vld [vmem:[%s10] sm:$0x1]
    %v1278 = vsel %vm77, %v1274, 0.0
    %1279 = vadd.xlane.f32.xlu0 %v1278
    %v1280 = vpop.xlane.xlu0 %1279
    %v1281 = vsel %vm77, %v1275, 0.0
    %1282 = vadd.xlane.f32.xlu0 %v1281
    %v1283 = vpop.xlane.xlu0 %1282
    %v1284 = vmul.f32 %v1280, %v84
    %v1285 = vmul.f32 %v1283, %v84
    %v1286 = vsub.f32 %v1274, %v1284
    %v1287 = vsub.f32 %v1275, %v1285
    %v1288 = vmul.f32 %v1286, %v1286
    %v1289 = vmul.f32 %v1287, %v1287
    %v1290 = vsel %vm77, %v1288, 0.0
    %1291 = vadd.xlane.f32.xlu0 %v1290
    %v1292 = vpop.xlane.xlu0 %1291
    %v1293 = vsel %vm77, %v1289, 0.0
    %1294 = vadd.xlane.f32.xlu0 %v1293
    %v1295 = vpop.xlane.xlu0 %1294
    %v1296 = vmul.f32 %v1292, %v84
    %v1297 = vmul.f32 %v1295, %v84
    %v1298 = vadd.f32 %v1296, 1e-05
    %v1299 = vadd.f32 %v1297, 1e-05
    %v1300 = vrsqrt.pop %v1298
    %v1301 = vrsqrt.pop %v1299
    %v1302 = vmul.f32 %v1286, %v1300
    %v1303 = vmul.f32 %v1287, %v1301
    %v1305 = vlaneseq
    %v1306 = vshrl.u32 %v1305, 7
    %v1307 = vsub.s32 0, %v1306
    %v1308 = vrot.slane %v1276, %v1307
    %v1310 = vmul.f32 %v1302, %v1308
    %v1311 = vmul.f32 %v1303, %v1308
    %v1313 = vlaneseq
    %v1314 = vshrl.u32 %v1313, 7
    %v1315 = vsub.s32 0, %v1314
    %v1316 = vrot.slane %v1277, %v1315
    %v1318 = vadd.f32 %v1310, %v1316
    %v1319 = vadd.f32 %v1311, %v1316
    %v1320 = vpack.c.bf16 %v1319, %v1318
    %v1321 = vld [vmem:[%s11] sm:$0xf]
    %v1322 = vld [vmem:[%s11 + $0x4] sm:$0xf]
    %v1323 = vld [vmem:[%s11 + $0x8] sm:$0xf]
    %v1324 = vld [vmem:[%s11 + $0xc] sm:$0xf]
    %v1325 = vld [vmem:[%s11 + $0x10] sm:$0xf]
    %v1326 = vld [vmem:[%s11 + $0x14] sm:$0xf]
    %v1327 = vld [vmem:[%s11 + $0x18] sm:$0xf]
    %v1328 = vld [vmem:[%s11 + $0x1c] sm:$0xf]
    %v1329 = vld [vmem:[%s12] sm:$0x1]
    %v1331 = vlaneseq
    %v1332 = vshrl.u32 %v1331, 7
    %v1333 = vsub.s32 0, %v1332
    %v1334 = vrot.slane %v1329, %v1333
    %v1344 = vunpack.c.l.b16 %v1321
    %v1345 = vunpack.c.l.b16 %v1322
    %v1346 = vunpack.c.l.b16 %v1323
    %v1347 = vunpack.c.l.b16 %v1324
    %v1348 = vunpack.c.l.b16 %v1325
    %v1349 = vunpack.c.l.b16 %v1326
    %v1350 = vunpack.c.l.b16 %v1327
    %v1351 = vunpack.c.l.b16 %v1328
    %v1352 = vpack.c.b16 %v1345, %v1344
    %v1353 = vpack.c.b16 %v1347, %v1346
    %v1354 = vpack.c.b16 %v1349, %v1348
    %v1355 = vpack.c.b16 %v1351, %v1350
    %v1361 = vsel %vm77, %v1320, 0
    %1363 = vmatprep.subr.bf16.mxu0 0
    %1364 = vmatpush1.bf16.msra.mxu0 %v1352
    %1365 = vmatprep.subr.bf16.mxu0 0
    %1366 = vmatpush1.bf16.msra.mxu0 %v1353
    %1367 = vmatprep.subr.bf16.mxu0 0
    %1368 = vmatpush1.bf16.msra.mxu0 %v1354
    %1369 = vmatprep.subr.bf16.mxu0 0
    %1370 = vmatpush1.bf16.msra.mxu0 %v1355
    %1371 = vmatprep.subr.bf16.mxu0 0
    %1372 = vmatpush1.bf16.msra.mxu0 0
    %1373 = vmatprep.subr.bf16.mxu0 0
    %1374 = vmatpush1.bf16.msra.mxu0 0
    %1375 = vmatprep.subr.bf16.mxu0 0
    %1376 = vmatpush1.bf16.msra.mxu0 0
    %1377 = vmatprep.subr.bf16.mxu0 0
    %1378 = vmatpush1.bf16.msra.mxu0 0
    %1379 = vmatprep.subr.bf16.mxu0 0
    %1380 = vmatpush1.bf16.msra.mxu0 0
    %1381 = vmatprep.subr.bf16.mxu0 0
    %1382 = vmatpush1.bf16.msra.mxu0 0
    %1383 = vmatprep.subr.bf16.mxu0 0
    %1384 = vmatpush1.bf16.msra.mxu0 0
    %1385 = vmatprep.subr.bf16.mxu0 0
    %1386 = vmatpush1.bf16.msra.mxu0 0
    %1387 = vmatprep.subr.bf16.mxu0 0
    %1388 = vmatpush1.bf16.msra.mxu0 0
    %1389 = vmatprep.subr.bf16.mxu0 0
    %1390 = vmatpush1.bf16.msra.mxu0 0
    %1391 = vmatprep.subr.bf16.mxu0 0
    %1392 = vmatpush1.bf16.msra.mxu0 0
    %1393 = vmatprep.subr.bf16.mxu0 0
    %1394 = vmatpush1.bf16.msra.mxu0 0
    %1395 = vmatprep.mubr.bf16.mxu0 0
    %1396 = vmatmul.mubr.bf16.gmra.mrb[0].mxu0 %v1361
    %v1397 = vpop.f32.mrb[0].mxu0
    %v1398 = vadd.f32 %v1334, %v1397
    %v1399 = vpop.f32.mrb[0].mxu0
    %v1400 = vpop.f32.mrb[0].mxu0
    %v1401 = vadd.f32 %v1334, %v1400
    %v1402 = vpop.f32.mrb[0].mxu0
    %1403 = vdwg.mxu0
    %v1404 = vmul.f32 %v1398, %v1398
    %v1405 = vmul.f32 %v1401, %v1401
    %v1406 = vmul.f32 %v1398, %v1404
    %v1407 = vmul.f32 %v1401, %v1405
    %v1408 = vmul.f32 %v1406, 0.044715
    %v1409 = vmul.f32 %v1407, 0.044715
    %v1410 = vadd.f32 %v1398, %v1408
    %v1411 = vadd.f32 %v1401, %v1409
    %v1412 = vmul.f32 %v1410, 0.7978846
    %v1413 = vmul.f32 %v1411, 0.7978846
    %v1414 = vtanh.pop %v1412
    %v1415 = vtanh.pop %v1413
    %v1416 = vadd.f32 %v1414, 1.0
    %v1417 = vadd.f32 %v1415, 1.0
    %v1418 = vmul.f32 %v1416, 0.5
    %v1419 = vmul.f32 %v1417, 0.5
    %v1420 = vmul.f32 %v1398, %v1418
    %v1421 = vmul.f32 %v1401, %v1419
    %v1422 = vpack.c.bf16 %v1421, %v1420
    %v1423 = vld [vmem:[%s13] sm:$0xf]
    %v1424 = vld [vmem:[%s13 + $0x4] sm:$0xf]
    %v1425 = vld [vmem:[%s13 + $0x8] sm:$0xf]
    %v1426 = vld [vmem:[%s13 + $0xc] sm:$0xf]
    %v1427 = vld [vmem:[%s13 + $0x10] sm:$0xf]
    %v1428 = vld [vmem:[%s13 + $0x14] sm:$0xf]
    %v1429 = vld [vmem:[%s13 + $0x18] sm:$0xf]
    %v1430 = vld [vmem:[%s13 + $0x1c] sm:$0xf]
    %v1431 = vld [vmem:[%s13 + $0x20] sm:$0xf]
    %v1432 = vld [vmem:[%s13 + $0x24] sm:$0xf]
    %v1433 = vld [vmem:[%s13 + $0x28] sm:$0xf]
    %v1434 = vld [vmem:[%s13 + $0x2c] sm:$0xf]
    %v1435 = vld [vmem:[%s13 + $0x30] sm:$0xf]
    %v1436 = vld [vmem:[%s13 + $0x34] sm:$0xf]
    %v1437 = vld [vmem:[%s13 + $0x38] sm:$0xf]
    %v1438 = vld [vmem:[%s13 + $0x3c] sm:$0xf]
    %v1439 = vld [vmem:[%s14] sm:$0x1]
    %v1441 = vlaneseq
    %v1442 = vshrl.u32 %v1441, 7
    %v1443 = vsub.s32 0, %v1442
    %v1444 = vrot.slane %v1439, %v1443
    %v1462 = vunpack.c.l.b16 %v1423
    %v1463 = vunpack.c.l.b16 %v1424
    %v1464 = vunpack.c.l.b16 %v1425
    %v1465 = vunpack.c.l.b16 %v1426
    %v1466 = vunpack.c.l.b16 %v1427
    %v1467 = vunpack.c.l.b16 %v1428
    %v1468 = vunpack.c.l.b16 %v1429
    %v1469 = vunpack.c.l.b16 %v1430
    %v1470 = vunpack.c.l.b16 %v1431
    %v1471 = vunpack.c.l.b16 %v1432
    %v1472 = vunpack.c.l.b16 %v1433
    %v1473 = vunpack.c.l.b16 %v1434
    %v1474 = vunpack.c.l.b16 %v1435
    %v1475 = vunpack.c.l.b16 %v1436
    %v1476 = vunpack.c.l.b16 %v1437
    %v1477 = vunpack.c.l.b16 %v1438
    %v1478 = vpack.c.b16 %v1463, %v1462
    %v1479 = vpack.c.b16 %v1465, %v1464
    %v1480 = vpack.c.b16 %v1467, %v1466
    %v1481 = vpack.c.b16 %v1469, %v1468
    %v1482 = vpack.c.b16 %v1471, %v1470
    %v1483 = vpack.c.b16 %v1473, %v1472
    %v1484 = vpack.c.b16 %v1475, %v1474
    %v1485 = vpack.c.b16 %v1477, %v1476
    %1494 = vmatprep.subr.bf16.mxu0 0
    %1495 = vmatpush1.bf16.msra.mxu0 %v1478
    %1496 = vmatprep.subr.bf16.mxu0 0
    %1497 = vmatpush1.bf16.msra.mxu0 %v1479
    %1498 = vmatprep.subr.bf16.mxu0 0
    %1499 = vmatpush1.bf16.msra.mxu0 %v1480
    %1500 = vmatprep.subr.bf16.mxu0 0
    %1501 = vmatpush1.bf16.msra.mxu0 %v1481
    %1502 = vmatprep.subr.bf16.mxu0 0
    %1503 = vmatpush1.bf16.msra.mxu0 %v1482
    %1504 = vmatprep.subr.bf16.mxu0 0
    %1505 = vmatpush1.bf16.msra.mxu0 %v1483
    %1506 = vmatprep.subr.bf16.mxu0 0
    %1507 = vmatpush1.bf16.msra.mxu0 %v1484
    %1508 = vmatprep.subr.bf16.mxu0 0
    %1509 = vmatpush1.bf16.msra.mxu0 %v1485
    %1510 = vmatprep.subr.bf16.mxu0 0
    %1511 = vmatpush1.bf16.msra.mxu0 0
    %1512 = vmatprep.subr.bf16.mxu0 0
    %1513 = vmatpush1.bf16.msra.mxu0 0
    %1514 = vmatprep.subr.bf16.mxu0 0
    %1515 = vmatpush1.bf16.msra.mxu0 0
    %1516 = vmatprep.subr.bf16.mxu0 0
    %1517 = vmatpush1.bf16.msra.mxu0 0
    %1518 = vmatprep.subr.bf16.mxu0 0
    %1519 = vmatpush1.bf16.msra.mxu0 0
    %1520 = vmatprep.subr.bf16.mxu0 0
    %1521 = vmatpush1.bf16.msra.mxu0 0
    %1522 = vmatprep.subr.bf16.mxu0 0
    %1523 = vmatpush1.bf16.msra.mxu0 0
    %1524 = vmatprep.subr.bf16.mxu0 0
    %1525 = vmatpush1.bf16.msra.mxu0 0
    %1526 = vmatprep.mubr.bf16.mxu0 0
    %1527 = vmatmul.mubr.bf16.gmra.mrb[0].mxu0 %v1422
    %v1528 = vpop.f32.mrb[0].mxu0
    %v1529 = vadd.f32 %v1444, %v1528
    %v1530 = vpop.f32.mrb[0].mxu0
    %v1531 = vpop.f32.mrb[0].mxu0
    %v1532 = vadd.f32 %v1444, %v1531
    %v1533 = vpop.f32.mrb[0].mxu0
    %1534 = vdwg.mxu0
    %v1535 = vadd.f32 %v1318, %v1529
    %v1536 = vadd.f32 %v1319, %v1532
    %v1537 = vld [vmem:[%s15] sm:$0x1]
    %v1538 = vld [vmem:[%s16] sm:$0x1]
    %v1539 = vsel %vm77, %v1535, 0.0
    %1540 = vadd.xlane.f32.xlu0 %v1539
    %v1541 = vpop.xlane.xlu0 %1540
    %v1542 = vsel %vm77, %v1536, 0.0
    %1543 = vadd.xlane.f32.xlu0 %v1542
    %v1544 = vpop.xlane.xlu0 %1543
    %v1545 = vmul.f32 %v1541, %v84
    %v1546 = vmul.f32 %v1544, %v84
    %v1547 = vsub.f32 %v1535, %v1545
    %v1548 = vsub.f32 %v1536, %v1546
    %v1549 = vmul.f32 %v1547, %v1547
    %v1550 = vmul.f32 %v1548, %v1548
    %v1551 = vsel %vm77, %v1549, 0.0
    %1552 = vadd.xlane.f32.xlu0 %v1551
    %v1553 = vpop.xlane.xlu0 %1552
    %v1554 = vsel %vm77, %v1550, 0.0
    %1555 = vadd.xlane.f32.xlu0 %v1554
    %v1556 = vpop.xlane.xlu0 %1555
    %v1557 = vmul.f32 %v1553, %v84
    %v1558 = vmul.f32 %v1556, %v84
    %v1559 = vadd.f32 %v1557, 1e-05
    %v1560 = vadd.f32 %v1558, 1e-05
    %v1561 = vrsqrt.pop %v1559
    %v1562 = vrsqrt.pop %v1560
    %v1563 = vmul.f32 %v1547, %v1561
    %v1564 = vmul.f32 %v1548, %v1562
    %v1566 = vlaneseq
    %v1567 = vshrl.u32 %v1566, 7
    %v1568 = vsub.s32 0, %v1567
    %v1569 = vrot.slane %v1537, %v1568
    %v1571 = vmul.f32 %v1563, %v1569
    %v1572 = vmul.f32 %v1564, %v1569
    %v1574 = vlaneseq
    %v1575 = vshrl.u32 %v1574, 7
    %v1576 = vsub.s32 0, %v1575
    %v1577 = vrot.slane %v1538, %v1576
    %v1579 = vadd.f32 %v1571, %v1577
    %v1580 = vadd.f32 %v1572, %v1577
    %v1581 = vpack.c.bf16 %v1580, %v1579
    %s1582 = scalar_lea.vmem %s5, 64
    %v1583 = vld [vmem:[%s1582] sm:$0xff]
    %v1584 = vld [vmem:[%s1582 + $0x8] sm:$0xff]
    %v1585 = vld [vmem:[%s1582 + $0x10] sm:$0xff]
    %v1586 = vld [vmem:[%s1582 + $0x18] sm:$0xff]
    %v1587 = vld [vmem:[%s1582 + $0x20] sm:$0xff]
    %v1588 = vld [vmem:[%s1582 + $0x28] sm:$0xff]
    %v1589 = vld [vmem:[%s1582 + $0x30] sm:$0xff]
    %v1590 = vld [vmem:[%s1582 + $0x38] sm:$0xff]
    %s1591 = scalar_lea.vmem %s6, 2
    %v1592 = vld [vmem:[%s1591] sm:$0x3]
    %v1594 = vlaneseq
    %v1595 = vshrl.u32 %v1594, 7
    %v1596 = vsub.s32 0, %v1595
    %v1597 = vrot.slane %v1592, %v1596
    %v1598 = vlaneseq
    %v1599 = vshrl.u32 %v1598, 7
    %v1600 = vsub.s32 1, %v1599
    %v1601 = vrot.slane %v1592, %v1600
    %v1612 = vunpack.c.l.b16 %v1583
    %v1613 = vunpack.c.h.b16 %v1583
    %v1614 = vunpack.c.l.b16 %v1584
    %v1615 = vunpack.c.h.b16 %v1584
    %v1616 = vunpack.c.l.b16 %v1585
    %v1617 = vunpack.c.h.b16 %v1585
    %v1618 = vunpack.c.l.b16 %v1586
    %v1619 = vunpack.c.h.b16 %v1586
    %v1620 = vunpack.c.l.b16 %v1587
    %v1621 = vunpack.c.h.b16 %v1587
    %v1622 = vunpack.c.l.b16 %v1588
    %v1623 = vunpack.c.h.b16 %v1588
    %v1624 = vunpack.c.l.b16 %v1589
    %v1625 = vunpack.c.h.b16 %v1589
    %v1626 = vunpack.c.l.b16 %v1590
    %v1627 = vunpack.c.h.b16 %v1590
    %v1628 = vpack.c.b16 %v1614, %v1612
    %v1629 = vpack.c.b16 %v1615, %v1613
    %v1630 = vpack.c.b16 %v1618, %v1616
    %v1631 = vpack.c.b16 %v1619, %v1617
    %v1632 = vpack.c.b16 %v1622, %v1620
    %v1633 = vpack.c.b16 %v1623, %v1621
    %v1634 = vpack.c.b16 %v1626, %v1624
    %v1635 = vpack.c.b16 %v1627, %v1625
    %v1645 = vsel %vm77, %v1581, 0
    %1647 = vmatprep.subr.bf16.mxu0 %v1629
    %1648 = vmatpush1.bf16.msra.mxu0 %v1628
    %1649 = vmatprep.subr.bf16.mxu0 %v1631
    %1650 = vmatpush1.bf16.msra.mxu0 %v1630
    %1651 = vmatprep.subr.bf16.mxu0 %v1633
    %1652 = vmatpush1.bf16.msra.mxu0 %v1632
    %1653 = vmatprep.subr.bf16.mxu0 %v1635
    %1654 = vmatpush1.bf16.msra.mxu0 %v1634
    %1655 = vmatprep.subr.bf16.mxu0 0
    %1656 = vmatpush1.bf16.msra.mxu0 0
    %1657 = vmatprep.subr.bf16.mxu0 0
    %1658 = vmatpush1.bf16.msra.mxu0 0
    %1659 = vmatprep.subr.bf16.mxu0 0
    %1660 = vmatpush1.bf16.msra.mxu0 0
    %1661 = vmatprep.subr.bf16.mxu0 0
    %1662 = vmatpush1.bf16.msra.mxu0 0
    %1663 = vmatprep.subr.bf16.mxu0 0
    %1664 = vmatpush1.bf16.msra.mxu0 0
    %1665 = vmatprep.subr.bf16.mxu0 0
    %1666 = vmatpush1.bf16.msra.mxu0 0
    %1667 = vmatprep.subr.bf16.mxu0 0
    %1668 = vmatpush1.bf16.msra.mxu0 0
    %1669 = vmatprep.subr.bf16.mxu0 0
    %1670 = vmatpush1.bf16.msra.mxu0 0
    %1671 = vmatprep.subr.bf16.mxu0 0
    %1672 = vmatpush1.bf16.msra.mxu0 0
    %1673 = vmatprep.subr.bf16.mxu0 0
    %1674 = vmatpush1.bf16.msra.mxu0 0
    %1675 = vmatprep.subr.bf16.mxu0 0
    %1676 = vmatpush1.bf16.msra.mxu0 0
    %1677 = vmatprep.subr.bf16.mxu0 0
    %1678 = vmatpush1.bf16.msra.mxu0 0
    %1679 = vmatprep.mubr.bf16.mxu0 0
    %1680 = vmatmul.mubr.bf16.gmra.mrb[0].mxu0 %v1645
    %v1681 = vpop.f32.mrb[0].mxu0
    %v1682 = vadd.f32 %v1597, %v1681
    %v1683 = vpop.f32.mrb[0].mxu0
    %v1684 = vadd.f32 %v1601, %v1683
    %v1685 = vpop.f32.mrb[0].mxu0
    %v1686 = vadd.f32 %v1597, %v1685
    %v1687 = vpop.f32.mrb[0].mxu0
    %v1688 = vadd.f32 %v1601, %v1687
    %1689 = vdwg.mxu0
    %v1690 = vpack.c.bf16 %v1686, %v1682
    %v1691 = vpack.c.bf16 %v1688, %v1684
    %1693 = vrot.lane.b32.xlu0 %v1690, 64
    %v1694 = vpop.permute.xlu0 %1693
    %v1696 = vsel %vm241, %v1690, 0
    %v1699 = vsel %vm241, %v1694, 0
    %1701 = vmatprep.subr.bf16.mxu0 0
    %1702 = vmatpush1.bf16.xpose.msra.mxu0 %v1699
    %1703 = vmatprep.subr.bf16.mxu0 0
    %1704 = vmatpush1.bf16.xpose.msra.mxu0 0
    %1705 = vmatprep.subr.bf16.mxu0 0
    %1706 = vmatpush1.bf16.xpose.msra.mxu0 0
    %1707 = vmatprep.subr.bf16.mxu0 0
    %1708 = vmatpush1.bf16.xpose.msra.mxu0 0
    %1709 = vmatprep.subr.bf16.mxu0 0
    %1710 = vmatpush1.bf16.xpose.msra.mxu0 0
    %1711 = vmatprep.subr.bf16.mxu0 0
    %1712 = vmatpush1.bf16.xpose.msra.mxu0 0
    %1713 = vmatprep.subr.bf16.mxu0 0
    %1714 = vmatpush1.bf16.xpose.msra.mxu0 0
    %1715 = vmatprep.subr.bf16.mxu0 0
    %1716 = vmatpush1.bf16.xpose.msra.mxu0 0
    %1717 = vmatprep.subr.bf16.mxu0 0
    %1718 = vmatpush1.bf16.xpose.msra.mxu0 0
    %1719 = vmatprep.subr.bf16.mxu0 0
    %1720 = vmatpush1.bf16.xpose.msra.mxu0 0
    %1721 = vmatprep.subr.bf16.mxu0 0
    %1722 = vmatpush1.bf16.xpose.msra.mxu0 0
    %1723 = vmatprep.subr.bf16.mxu0 0
    %1724 = vmatpush1.bf16.xpose.msra.mxu0 0
    %1725 = vmatprep.subr.bf16.mxu0 0
    %1726 = vmatpush1.bf16.xpose.msra.mxu0 0
    %1727 = vmatprep.subr.bf16.mxu0 0
    %1728 = vmatpush1.bf16.xpose.msra.mxu0 0
    %1729 = vmatprep.subr.bf16.mxu0 0
    %1730 = vmatpush1.bf16.xpose.msra.mxu0 0
    %1731 = vmatprep.subr.bf16.mxu0 0
    %1732 = vmatpush1.bf16.xpose.msra.mxu0 0
    %1733 = vmatprep.mubr.bf16.mxu0 0
    %1734 = vmatmul.mubr.bf16.gmra.mrb[0].mxu0 %v1696
    %v1735 = vpop.f32.mrb[0].mxu0
    %v1736 = vadd.f32 0.0, %v1735
    %v1737 = vpop.f32.mrb[0].mxu0
    %v1738 = vpop.f32.mrb[0].mxu0
    %v1739 = vpop.f32.mrb[0].mxu0
    %1740 = vdwg.mxu0
    %1741 = vst.msk [vmem:[#allocation2] sm:$0xff] %vm288, %v1736
    %1742 = vrot.lane.b32.xlu0 %v1690, 112
    %v1743 = vpop.permute.xlu0 %1742
    %1744 = vrot.lane.b32.xlu0 %v1690, 48
    %v1745 = vpop.permute.xlu0 %1744
    %v1747 = vsel %vm241, %v1743, 0
    %v1750 = vsel %vm241, %v1745, 0
    %1752 = vmatprep.subr.bf16.mxu0 0
    %1753 = vmatpush1.bf16.xpose.msra.mxu0 %v1750
    %1754 = vmatprep.subr.bf16.mxu0 0
    %1755 = vmatpush1.bf16.xpose.msra.mxu0 0
    %1756 = vmatprep.subr.bf16.mxu0 0
    %1757 = vmatpush1.bf16.xpose.msra.mxu0 0
    %1758 = vmatprep.subr.bf16.mxu0 0
    %1759 = vmatpush1.bf16.xpose.msra.mxu0 0
    %1760 = vmatprep.subr.bf16.mxu0 0
    %1761 = vmatpush1.bf16.xpose.msra.mxu0 0
    %1762 = vmatprep.subr.bf16.mxu0 0
    %1763 = vmatpush1.bf16.xpose.msra.mxu0 0
    %1764 = vmatprep.subr.bf16.mxu0 0
    %1765 = vmatpush1.bf16.xpose.msra.mxu0 0
    %1766 = vmatprep.subr.bf16.mxu0 0
    %1767 = vmatpush1.bf16.xpose.msra.mxu0 0
    %1768 = vmatprep.subr.bf16.mxu0 0
    %1769 = vmatpush1.bf16.xpose.msra.mxu0 0
    %1770 = vmatprep.subr.bf16.mxu0 0
    %1771 = vmatpush1.bf16.xpose.msra.mxu0 0
    %1772 = vmatprep.subr.bf16.mxu0 0
    %1773 = vmatpush1.bf16.xpose.msra.mxu0 0
    %1774 = vmatprep.subr.bf16.mxu0 0
    %1775 = vmatpush1.bf16.xpose.msra.mxu0 0
    %1776 = vmatprep.subr.bf16.mxu0 0
    %1777 = vmatpush1.bf16.xpose.msra.mxu0 0
    %1778 = vmatprep.subr.bf16.mxu0 0
    %1779 = vmatpush1.bf16.xpose.msra.mxu0 0
    %1780 = vmatprep.subr.bf16.mxu0 0
    %1781 = vmatpush1.bf16.xpose.msra.mxu0 0
    %1782 = vmatprep.subr.bf16.mxu0 0
    %1783 = vmatpush1.bf16.xpose.msra.mxu0 0
    %1784 = vmatprep.mubr.bf16.mxu0 0
    %1785 = vmatmul.mubr.bf16.gmra.mrb[0].mxu0 %v1747
    %v1786 = vpop.f32.mrb[0].mxu0
    %v1787 = vadd.f32 0.0, %v1786
    %v1788 = vpop.f32.mrb[0].mxu0
    %v1789 = vpop.f32.mrb[0].mxu0
    %v1790 = vpop.f32.mrb[0].mxu0
    %1791 = vdwg.mxu0
    %1792 = vst.msk [vmem:[#allocation2 + $0x8] sm:$0xff] %vm288, %v1787
    %1793 = vrot.lane.b32.xlu0 %v1690, 96
    %v1794 = vpop.permute.xlu0 %1793
    %1795 = vrot.lane.b32.xlu0 %v1690, 32
    %v1796 = vpop.permute.xlu0 %1795
    %v1798 = vsel %vm241, %v1794, 0
    %v1801 = vsel %vm241, %v1796, 0
    %1803 = vmatprep.subr.bf16.mxu0 0
    %1804 = vmatpush1.bf16.xpose.msra.mxu0 %v1801
    %1805 = vmatprep.subr.bf16.mxu0 0
    %1806 = vmatpush1.bf16.xpose.msra.mxu0 0
    %1807 = vmatprep.subr.bf16.mxu0 0
    %1808 = vmatpush1.bf16.xpose.msra.mxu0 0
    %1809 = vmatprep.subr.bf16.mxu0 0
    %1810 = vmatpush1.bf16.xpose.msra.mxu0 0
    %1811 = vmatprep.subr.bf16.mxu0 0
    %1812 = vmatpush1.bf16.xpose.msra.mxu0 0
    %1813 = vmatprep.subr.bf16.mxu0 0
    %1814 = vmatpush1.bf16.xpose.msra.mxu0 0
    %1815 = vmatprep.subr.bf16.mxu0 0
    %1816 = vmatpush1.bf16.xpose.msra.mxu0 0
    %1817 = vmatprep.subr.bf16.mxu0 0
    %1818 = vmatpush1.bf16.xpose.msra.mxu0 0
    %1819 = vmatprep.subr.bf16.mxu0 0
    %1820 = vmatpush1.bf16.xpose.msra.mxu0 0
    %1821 = vmatprep.subr.bf16.mxu0 0
    %1822 = vmatpush1.bf16.xpose.msra.mxu0 0
    %1823 = vmatprep.subr.bf16.mxu0 0
    %1824 = vmatpush1.bf16.xpose.msra.mxu0 0
    %1825 = vmatprep.subr.bf16.mxu0 0
    %1826 = vmatpush1.bf16.xpose.msra.mxu0 0
    %1827 = vmatprep.subr.bf16.mxu0 0
    %1828 = vmatpush1.bf16.xpose.msra.mxu0 0
    %1829 = vmatprep.subr.bf16.mxu0 0
    %1830 = vmatpush1.bf16.xpose.msra.mxu0 0
    %1831 = vmatprep.subr.bf16.mxu0 0
    %1832 = vmatpush1.bf16.xpose.msra.mxu0 0
    %1833 = vmatprep.subr.bf16.mxu0 0
    %1834 = vmatpush1.bf16.xpose.msra.mxu0 0
    %1835 = vmatprep.mubr.bf16.mxu0 0
    %1836 = vmatmul.mubr.bf16.gmra.mrb[0].mxu0 %v1798
    %v1837 = vpop.f32.mrb[0].mxu0
    %v1838 = vadd.f32 0.0, %v1837
    %v1839 = vpop.f32.mrb[0].mxu0
    %v1840 = vpop.f32.mrb[0].mxu0
    %v1841 = vpop.f32.mrb[0].mxu0
    %1842 = vdwg.mxu0
    %1843 = vst.msk [vmem:[#allocation2 + $0x10] sm:$0xff] %vm288, %v1838
    %1844 = vrot.lane.b32.xlu0 %v1690, 80
    %v1845 = vpop.permute.xlu0 %1844
    %1846 = vrot.lane.b32.xlu0 %v1690, 16
    %v1847 = vpop.permute.xlu0 %1846
    %v1849 = vsel %vm241, %v1845, 0
    %v1852 = vsel %vm241, %v1847, 0
    %1854 = vmatprep.subr.bf16.mxu0 0
    %1855 = vmatpush1.bf16.xpose.msra.mxu0 %v1852
    %1856 = vmatprep.subr.bf16.mxu0 0
    %1857 = vmatpush1.bf16.xpose.msra.mxu0 0
    %1858 = vmatprep.subr.bf16.mxu0 0
    %1859 = vmatpush1.bf16.xpose.msra.mxu0 0
    %1860 = vmatprep.subr.bf16.mxu0 0
    %1861 = vmatpush1.bf16.xpose.msra.mxu0 0
    %1862 = vmatprep.subr.bf16.mxu0 0
    %1863 = vmatpush1.bf16.xpose.msra.mxu0 0
    %1864 = vmatprep.subr.bf16.mxu0 0
    %1865 = vmatpush1.bf16.xpose.msra.mxu0 0
    %1866 = vmatprep.subr.bf16.mxu0 0
    %1867 = vmatpush1.bf16.xpose.msra.mxu0 0
    %1868 = vmatprep.subr.bf16.mxu0 0
    %1869 = vmatpush1.bf16.xpose.msra.mxu0 0
    %1870 = vmatprep.subr.bf16.mxu0 0
    %1871 = vmatpush1.bf16.xpose.msra.mxu0 0
    %1872 = vmatprep.subr.bf16.mxu0 0
    %1873 = vmatpush1.bf16.xpose.msra.mxu0 0
    %1874 = vmatprep.subr.bf16.mxu0 0
    %1875 = vmatpush1.bf16.xpose.msra.mxu0 0
    %1876 = vmatprep.subr.bf16.mxu0 0
    %1877 = vmatpush1.bf16.xpose.msra.mxu0 0
    %1878 = vmatprep.subr.bf16.mxu0 0
    %1879 = vmatpush1.bf16.xpose.msra.mxu0 0
    %1880 = vmatprep.subr.bf16.mxu0 0
    %1881 = vmatpush1.bf16.xpose.msra.mxu0 0
    %1882 = vmatprep.subr.bf16.mxu0 0
    %1883 = vmatpush1.bf16.xpose.msra.mxu0 0
    %1884 = vmatprep.subr.bf16.mxu0 0
    %1885 = vmatpush1.bf16.xpose.msra.mxu0 0
    %1886 = vmatprep.mubr.bf16.mxu0 0
    %1887 = vmatmul.mubr.bf16.gmra.mrb[0].mxu0 %v1849
    %v1888 = vpop.f32.mrb[0].mxu0
    %v1889 = vadd.f32 0.0, %v1888
    %v1890 = vpop.f32.mrb[0].mxu0
    %v1891 = vpop.f32.mrb[0].mxu0
    %v1892 = vpop.f32.mrb[0].mxu0
    %1893 = vdwg.mxu0
    %1894 = vst.msk [vmem:[#allocation2 + $0x18] sm:$0xff] %vm288, %v1889
    %v1895 = vrot.slane %v1690, 4
    %1896 = vrot.lane.b32.xlu0 %v1895, 64
    %v1897 = vpop.permute.xlu0 %1896
    %v1899 = vsel %vm241, %v1895, 0
    %v1902 = vsel %vm241, %v1897, 0
    %1904 = vmatprep.subr.bf16.mxu0 0
    %1905 = vmatpush1.bf16.xpose.msra.mxu0 %v1902
    %1906 = vmatprep.subr.bf16.mxu0 0
    %1907 = vmatpush1.bf16.xpose.msra.mxu0 0
    %1908 = vmatprep.subr.bf16.mxu0 0
    %1909 = vmatpush1.bf16.xpose.msra.mxu0 0
    %1910 = vmatprep.subr.bf16.mxu0 0
    %1911 = vmatpush1.bf16.xpose.msra.mxu0 0
    %1912 = vmatprep.subr.bf16.mxu0 0
    %1913 = vmatpush1.bf16.xpose.msra.mxu0 0
    %1914 = vmatprep.subr.bf16.mxu0 0
    %1915 = vmatpush1.bf16.xpose.msra.mxu0 0
    %1916 = vmatprep.subr.bf16.mxu0 0
    %1917 = vmatpush1.bf16.xpose.msra.mxu0 0
    %1918 = vmatprep.subr.bf16.mxu0 0
    %1919 = vmatpush1.bf16.xpose.msra.mxu0 0
    %1920 = vmatprep.subr.bf16.mxu0 0
    %1921 = vmatpush1.bf16.xpose.msra.mxu0 0
    %1922 = vmatprep.subr.bf16.mxu0 0
    %1923 = vmatpush1.bf16.xpose.msra.mxu0 0
    %1924 = vmatprep.subr.bf16.mxu0 0
    %1925 = vmatpush1.bf16.xpose.msra.mxu0 0
    %1926 = vmatprep.subr.bf16.mxu0 0
    %1927 = vmatpush1.bf16.xpose.msra.mxu0 0
    %1928 = vmatprep.subr.bf16.mxu0 0
    %1929 = vmatpush1.bf16.xpose.msra.mxu0 0
    %1930 = vmatprep.subr.bf16.mxu0 0
    %1931 = vmatpush1.bf16.xpose.msra.mxu0 0
    %1932 = vmatprep.subr.bf16.mxu0 0
    %1933 = vmatpush1.bf16.xpose.msra.mxu0 0
    %1934 = vmatprep.subr.bf16.mxu0 0
    %1935 = vmatpush1.bf16.xpose.msra.mxu0 0
    %1936 = vmatprep.mubr.bf16.mxu0 0
    %1937 = vmatmul.mubr.bf16.gmra.mrb[0].mxu0 %v1899
    %v1938 = vpop.f32.mrb[0].mxu0
    %v1939 = vadd.f32 0.0, %v1938
    %v1940 = vpop.f32.mrb[0].mxu0
    %v1941 = vpop.f32.mrb[0].mxu0
    %v1942 = vpop.f32.mrb[0].mxu0
    %1943 = vdwg.mxu0
    %1944 = vst.msk [vmem:[#allocation2 + $0x20] sm:$0xff] %vm288, %v1939
    %1945 = vrot.lane.b32.xlu0 %v1895, 112
    %v1946 = vpop.permute.xlu0 %1945
    %1947 = vrot.lane.b32.xlu0 %v1895, 48
    %v1948 = vpop.permute.xlu0 %1947
    %v1950 = vsel %vm241, %v1946, 0
    %v1953 = vsel %vm241, %v1948, 0
    %1955 = vmatprep.subr.bf16.mxu0 0
    %1956 = vmatpush1.bf16.xpose.msra.mxu0 %v1953
    %1957 = vmatprep.subr.bf16.mxu0 0
    %1958 = vmatpush1.bf16.xpose.msra.mxu0 0
    %1959 = vmatprep.subr.bf16.mxu0 0
    %1960 = vmatpush1.bf16.xpose.msra.mxu0 0
    %1961 = vmatprep.subr.bf16.mxu0 0
    %1962 = vmatpush1.bf16.xpose.msra.mxu0 0
    %1963 = vmatprep.subr.bf16.mxu0 0
    %1964 = vmatpush1.bf16.xpose.msra.mxu0 0
    %1965 = vmatprep.subr.bf16.mxu0 0
    %1966 = vmatpush1.bf16.xpose.msra.mxu0 0
    %1967 = vmatprep.subr.bf16.mxu0 0
    %1968 = vmatpush1.bf16.xpose.msra.mxu0 0
    %1969 = vmatprep.subr.bf16.mxu0 0
    %1970 = vmatpush1.bf16.xpose.msra.mxu0 0
    %1971 = vmatprep.subr.bf16.mxu0 0
    %1972 = vmatpush1.bf16.xpose.msra.mxu0 0
    %1973 = vmatprep.subr.bf16.mxu0 0
    %1974 = vmatpush1.bf16.xpose.msra.mxu0 0
    %1975 = vmatprep.subr.bf16.mxu0 0
    %1976 = vmatpush1.bf16.xpose.msra.mxu0 0
    %1977 = vmatprep.subr.bf16.mxu0 0
    %1978 = vmatpush1.bf16.xpose.msra.mxu0 0
    %1979 = vmatprep.subr.bf16.mxu0 0
    %1980 = vmatpush1.bf16.xpose.msra.mxu0 0
    %1981 = vmatprep.subr.bf16.mxu0 0
    %1982 = vmatpush1.bf16.xpose.msra.mxu0 0
    %1983 = vmatprep.subr.bf16.mxu0 0
    %1984 = vmatpush1.bf16.xpose.msra.mxu0 0
    %1985 = vmatprep.subr.bf16.mxu0 0
    %1986 = vmatpush1.bf16.xpose.msra.mxu0 0
    %1987 = vmatprep.mubr.bf16.mxu0 0
    %1988 = vmatmul.mubr.bf16.gmra.mrb[0].mxu0 %v1950
    %v1989 = vpop.f32.mrb[0].mxu0
    %v1990 = vadd.f32 0.0, %v1989
    %v1991 = vpop.f32.mrb[0].mxu0
    %v1992 = vpop.f32.mrb[0].mxu0
    %v1993 = vpop.f32.mrb[0].mxu0
    %1994 = vdwg.mxu0
    %1995 = vst.msk [vmem:[#allocation2 + $0x28] sm:$0xff] %vm288, %v1990
    %1996 = vrot.lane.b32.xlu0 %v1895, 96
    %v1997 = vpop.permute.xlu0 %1996
    %1998 = vrot.lane.b32.xlu0 %v1895, 32
    %v1999 = vpop.permute.xlu0 %1998
    %v2001 = vsel %vm241, %v1997, 0
    %v2004 = vsel %vm241, %v1999, 0
    %2006 = vmatprep.subr.bf16.mxu0 0
    %2007 = vmatpush1.bf16.xpose.msra.mxu0 %v2004
    %2008 = vmatprep.subr.bf16.mxu0 0
    %2009 = vmatpush1.bf16.xpose.msra.mxu0 0
    %2010 = vmatprep.subr.bf16.mxu0 0
    %2011 = vmatpush1.bf16.xpose.msra.mxu0 0
    %2012 = vmatprep.subr.bf16.mxu0 0
    %2013 = vmatpush1.bf16.xpose.msra.mxu0 0
    %2014 = vmatprep.subr.bf16.mxu0 0
    %2015 = vmatpush1.bf16.xpose.msra.mxu0 0
    %2016 = vmatprep.subr.bf16.mxu0 0
    %2017 = vmatpush1.bf16.xpose.msra.mxu0 0
    %2018 = vmatprep.subr.bf16.mxu0 0
    %2019 = vmatpush1.bf16.xpose.msra.mxu0 0
    %2020 = vmatprep.subr.bf16.mxu0 0
    %2021 = vmatpush1.bf16.xpose.msra.mxu0 0
    %2022 = vmatprep.subr.bf16.mxu0 0
    %2023 = vmatpush1.bf16.xpose.msra.mxu0 0
    %2024 = vmatprep.subr.bf16.mxu0 0
    %2025 = vmatpush1.bf16.xpose.msra.mxu0 0
    %2026 = vmatprep.subr.bf16.mxu0 0
    %2027 = vmatpush1.bf16.xpose.msra.mxu0 0
    %2028 = vmatprep.subr.bf16.mxu0 0
    %2029 = vmatpush1.bf16.xpose.msra.mxu0 0
    %2030 = vmatprep.subr.bf16.mxu0 0
    %2031 = vmatpush1.bf16.xpose.msra.mxu0 0
    %2032 = vmatprep.subr.bf16.mxu0 0
    %2033 = vmatpush1.bf16.xpose.msra.mxu0 0
    %2034 = vmatprep.subr.bf16.mxu0 0
    %2035 = vmatpush1.bf16.xpose.msra.mxu0 0
    %2036 = vmatprep.subr.bf16.mxu0 0
    %2037 = vmatpush1.bf16.xpose.msra.mxu0 0
    %2038 = vmatprep.mubr.bf16.mxu0 0
    %2039 = vmatmul.mubr.bf16.gmra.mrb[0].mxu0 %v2001
    %v2040 = vpop.f32.mrb[0].mxu0
    %v2041 = vadd.f32 0.0, %v2040
    %v2042 = vpop.f32.mrb[0].mxu0
    %v2043 = vpop.f32.mrb[0].mxu0
    %v2044 = vpop.f32.mrb[0].mxu0
    %2045 = vdwg.mxu0
    %2046 = vst.msk [vmem:[#allocation2 + $0x30] sm:$0xff] %vm288, %v2041
    %2047 = vrot.lane.b32.xlu0 %v1895, 80
    %v2048 = vpop.permute.xlu0 %2047
    %2049 = vrot.lane.b32.xlu0 %v1895, 16
    %v2050 = vpop.permute.xlu0 %2049
    %v2052 = vsel %vm241, %v2048, 0
    %v2055 = vsel %vm241, %v2050, 0
    %2057 = vmatprep.subr.bf16.mxu0 0
    %2058 = vmatpush1.bf16.xpose.msra.mxu0 %v2055
    %2059 = vmatprep.subr.bf16.mxu0 0
    %2060 = vmatpush1.bf16.xpose.msra.mxu0 0
    %2061 = vmatprep.subr.bf16.mxu0 0
    %2062 = vmatpush1.bf16.xpose.msra.mxu0 0
    %2063 = vmatprep.subr.bf16.mxu0 0
    %2064 = vmatpush1.bf16.xpose.msra.mxu0 0
    %2065 = vmatprep.subr.bf16.mxu0 0
    %2066 = vmatpush1.bf16.xpose.msra.mxu0 0
    %2067 = vmatprep.subr.bf16.mxu0 0
    %2068 = vmatpush1.bf16.xpose.msra.mxu0 0
    %2069 = vmatprep.subr.bf16.mxu0 0
    %2070 = vmatpush1.bf16.xpose.msra.mxu0 0
    %2071 = vmatprep.subr.bf16.mxu0 0
    %2072 = vmatpush1.bf16.xpose.msra.mxu0 0
    %2073 = vmatprep.subr.bf16.mxu0 0
    %2074 = vmatpush1.bf16.xpose.msra.mxu0 0
    %2075 = vmatprep.subr.bf16.mxu0 0
    %2076 = vmatpush1.bf16.xpose.msra.mxu0 0
    %2077 = vmatprep.subr.bf16.mxu0 0
    %2078 = vmatpush1.bf16.xpose.msra.mxu0 0
    %2079 = vmatprep.subr.bf16.mxu0 0
    %2080 = vmatpush1.bf16.xpose.msra.mxu0 0
    %2081 = vmatprep.subr.bf16.mxu0 0
    %2082 = vmatpush1.bf16.xpose.msra.mxu0 0
    %2083 = vmatprep.subr.bf16.mxu0 0
    %2084 = vmatpush1.bf16.xpose.msra.mxu0 0
    %2085 = vmatprep.subr.bf16.mxu0 0
    %2086 = vmatpush1.bf16.xpose.msra.mxu0 0
    %2087 = vmatprep.subr.bf16.mxu0 0
    %2088 = vmatpush1.bf16.xpose.msra.mxu0 0
    %2089 = vmatprep.mubr.bf16.mxu0 0
    %2090 = vmatmul.mubr.bf16.gmra.mrb[0].mxu0 %v2052
    %v2091 = vpop.f32.mrb[0].mxu0
    %v2092 = vadd.f32 0.0, %v2091
    %v2093 = vpop.f32.mrb[0].mxu0
    %v2094 = vpop.f32.mrb[0].mxu0
    %v2095 = vpop.f32.mrb[0].mxu0
    %2096 = vdwg.mxu0
    %2097 = vst.msk [vmem:[#allocation2 + $0x38] sm:$0xff] %vm288, %v2092
    %v2098 = vld [vmem:[#allocation2] sm:$0xff]
    %v2099 = vld [vmem:[#allocation2 + $0x8] sm:$0xff]
    %v2100 = vld [vmem:[#allocation2 + $0x10] sm:$0xff]
    %v2101 = vld [vmem:[#allocation2 + $0x18] sm:$0xff]
    %v2102 = vld [vmem:[#allocation2 + $0x20] sm:$0xff]
    %v2103 = vld [vmem:[#allocation2 + $0x28] sm:$0xff]
    %v2104 = vld [vmem:[#allocation2 + $0x30] sm:$0xff]
    %v2105 = vld [vmem:[#allocation2 + $0x38] sm:$0xff]
    %v2106 = vmul.f32 %v2098, 0.25
    %v2107 = vmul.f32 %v2099, 0.25
    %v2108 = vmul.f32 %v2100, 0.25
    %v2109 = vmul.f32 %v2101, 0.25
    %v2110 = vmul.f32 %v2102, 0.25
    %v2111 = vmul.f32 %v2103, 0.25
    %v2112 = vmul.f32 %v2104, 0.25
    %v2113 = vmul.f32 %v2105, 0.25
    %v2114 = vadd.f32 %v2106, %v121
    %v2115 = vadd.f32 %v2107, %v122
    %v2116 = vadd.f32 %v2108, %v123
    %v2117 = vadd.f32 %v2109, %v124
    %v2118 = vadd.f32 %v2110, %v125
    %v2119 = vadd.f32 %v2111, %v126
    %v2120 = vadd.f32 %v2112, %v127
    %v2121 = vadd.f32 %v2113, %v128
    %v2122 = vsel %vm288, %v2114, -inf
    %2123 = vmax.xlane.f32.xlu0 %v2122
    %v2124 = vpop.xlane.xlu0 %2123
    %v2125 = vsel %vm288, %v2115, -inf
    %2126 = vmax.xlane.f32.xlu0 %v2125
    %v2127 = vpop.xlane.xlu0 %2126
    %v2128 = vsel %vm288, %v2116, -inf
    %2129 = vmax.xlane.f32.xlu0 %v2128
    %v2130 = vpop.xlane.xlu0 %2129
    %v2131 = vsel %vm288, %v2117, -inf
    %2132 = vmax.xlane.f32.xlu0 %v2131
    %v2133 = vpop.xlane.xlu0 %2132
    %v2134 = vsel %vm288, %v2118, -inf
    %2135 = vmax.xlane.f32.xlu0 %v2134
    %v2136 = vpop.xlane.xlu0 %2135
    %v2137 = vsel %vm288, %v2119, -inf
    %2138 = vmax.xlane.f32.xlu0 %v2137
    %v2139 = vpop.xlane.xlu0 %2138
    %v2140 = vsel %vm288, %v2120, -inf
    %2141 = vmax.xlane.f32.xlu0 %v2140
    %v2142 = vpop.xlane.xlu0 %2141
    %v2143 = vsel %vm288, %v2121, -inf
    %2144 = vmax.xlane.f32.xlu0 %v2143
    %v2145 = vpop.xlane.xlu0 %2144
    %v2146 = vsub.f32 %v2114, %v2124
    %v2147 = vsub.f32 %v2115, %v2127
    %v2148 = vsub.f32 %v2116, %v2130
    %v2149 = vsub.f32 %v2117, %v2133
    %v2150 = vsub.f32 %v2118, %v2136
    %v2151 = vsub.f32 %v2119, %v2139
    %v2152 = vsub.f32 %v2120, %v2142
    %v2153 = vsub.f32 %v2121, %v2145
    %v2154 = vmul.f32 %v2146, 1.442695
    %v2155 = vpow.pop %v2154
    %v2156 = vmul.f32 %v2147, 1.442695
    %v2157 = vpow.pop %v2156
    %v2158 = vmul.f32 %v2148, 1.442695
    %v2159 = vpow.pop %v2158
    %v2160 = vmul.f32 %v2149, 1.442695
    %v2161 = vpow.pop %v2160
    %v2162 = vmul.f32 %v2150, 1.442695
    %v2163 = vpow.pop %v2162
    %v2164 = vmul.f32 %v2151, 1.442695
    %v2165 = vpow.pop %v2164
    %v2166 = vmul.f32 %v2152, 1.442695
    %v2167 = vpow.pop %v2166
    %v2168 = vmul.f32 %v2153, 1.442695
    %v2169 = vpow.pop %v2168
    %v2170 = vsel %vm288, %v2155, 0.0
    %2171 = vadd.xlane.f32.xlu0 %v2170
    %v2172 = vpop.xlane.xlu0 %2171
    %v2173 = vsel %vm288, %v2157, 0.0
    %2174 = vadd.xlane.f32.xlu0 %v2173
    %v2175 = vpop.xlane.xlu0 %2174
    %v2176 = vsel %vm288, %v2159, 0.0
    %2177 = vadd.xlane.f32.xlu0 %v2176
    %v2178 = vpop.xlane.xlu0 %2177
    %v2179 = vsel %vm288, %v2161, 0.0
    %2180 = vadd.xlane.f32.xlu0 %v2179
    %v2181 = vpop.xlane.xlu0 %2180
    %v2182 = vsel %vm288, %v2163, 0.0
    %2183 = vadd.xlane.f32.xlu0 %v2182
    %v2184 = vpop.xlane.xlu0 %2183
    %v2185 = vsel %vm288, %v2165, 0.0
    %2186 = vadd.xlane.f32.xlu0 %v2185
    %v2187 = vpop.xlane.xlu0 %2186
    %v2188 = vsel %vm288, %v2167, 0.0
    %2189 = vadd.xlane.f32.xlu0 %v2188
    %v2190 = vpop.xlane.xlu0 %2189
    %v2191 = vsel %vm288, %v2169, 0.0
    %2192 = vadd.xlane.f32.xlu0 %v2191
    %v2193 = vpop.xlane.xlu0 %2192
    %v2194 = vrcp.pop %v2172
    %v2195 = vrcp.pop %v2175
    %v2196 = vrcp.pop %v2178
    %v2197 = vrcp.pop %v2181
    %v2198 = vrcp.pop %v2184
    %v2199 = vrcp.pop %v2187
    %v2200 = vrcp.pop %v2190
    %v2201 = vrcp.pop %v2193
    %v2202 = vmul.f32 %v2155, %v2194
    %v2203 = vmul.f32 %v2157, %v2195
    %v2204 = vmul.f32 %v2159, %v2196
    %v2205 = vmul.f32 %v2161, %v2197
    %v2206 = vmul.f32 %v2163, %v2198
    %v2207 = vmul.f32 %v2165, %v2199
    %v2208 = vmul.f32 %v2167, %v2200
    %v2209 = vmul.f32 %v2169, %v2201
    %v2210 = vpack.c.bf16 %v2203, %v2202
    %v2211 = vpack.c.bf16 %v2205, %v2204
    %v2212 = vpack.c.bf16 %v2207, %v2206
    %v2213 = vpack.c.bf16 %v2209, %v2208
    %v2215 = vsel %vm288, %v2210, 0
    %v2218 = vsel %vm765, %v1691, 0
    %2220 = vmatprep.subr.bf16.mxu0 0
    %2221 = vmatpush1.bf16.msra.mxu0 %v2218
    %2222 = vmatprep.subr.bf16.mxu0 0
    %2223 = vmatpush1.bf16.msra.mxu0 0
    %2224 = vmatprep.subr.bf16.mxu0 0
    %2225 = vmatpush1.bf16.msra.mxu0 0
    %2226 = vmatprep.subr.bf16.mxu0 0
    %2227 = vmatpush1.bf16.msra.mxu0 0
    %2228 = vmatprep.subr.bf16.mxu0 0
    %2229 = vmatpush1.bf16.msra.mxu0 0
    %2230 = vmatprep.subr.bf16.mxu0 0
    %2231 = vmatpush1.bf16.msra.mxu0 0
    %2232 = vmatprep.subr.bf16.mxu0 0
    %2233 = vmatpush1.bf16.msra.mxu0 0
    %2234 = vmatprep.subr.bf16.mxu0 0
    %2235 = vmatpush1.bf16.msra.mxu0 0
    %2236 = vmatprep.subr.bf16.mxu0 0
    %2237 = vmatpush1.bf16.msra.mxu0 0
    %2238 = vmatprep.subr.bf16.mxu0 0
    %2239 = vmatpush1.bf16.msra.mxu0 0
    %2240 = vmatprep.subr.bf16.mxu0 0
    %2241 = vmatpush1.bf16.msra.mxu0 0
    %2242 = vmatprep.subr.bf16.mxu0 0
    %2243 = vmatpush1.bf16.msra.mxu0 0
    %2244 = vmatprep.subr.bf16.mxu0 0
    %2245 = vmatpush1.bf16.msra.mxu0 0
    %2246 = vmatprep.subr.bf16.mxu0 0
    %2247 = vmatpush1.bf16.msra.mxu0 0
    %2248 = vmatprep.subr.bf16.mxu0 0
    %2249 = vmatpush1.bf16.msra.mxu0 0
    %2250 = vmatprep.subr.bf16.mxu0 0
    %2251 = vmatpush1.bf16.msra.mxu0 0
    %2252 = vmatprep.mubr.bf16.mxu0 0
    %2253 = vmatmul.mubr.bf16.gmra.mrb[0].mxu0 %v2215
    %v2254 = vpop.f32.mrb[0].mxu0
    %v2255 = vadd.f32 0.0, %v2254
    %v2256 = vpop.f32.mrb[0].mxu0
    %v2257 = vpop.f32.mrb[0].mxu0
    %v2258 = vpop.f32.mrb[0].mxu0
    %2259 = vdwg.mxu0
    %2260 = vst.msk [vmem:[#allocation3] sm:$0xff] %vm241, %v2255
    %v2262 = vrot.slane %v2210, 4
    %2264 = vrot.lane.b32.xlu0 %v1691, 112
    %v2265 = vpop.permute.xlu0 %2264
    %v2267 = vsel %vm288, %v2262, 0
    %v2270 = vsel %vm765, %v2265, 0
    %2272 = vmatprep.subr.bf16.mxu0 0
    %2273 = vmatpush1.bf16.msra.mxu0 %v2270
    %2274 = vmatprep.subr.bf16.mxu0 0
    %2275 = vmatpush1.bf16.msra.mxu0 0
    %2276 = vmatprep.subr.bf16.mxu0 0
    %2277 = vmatpush1.bf16.msra.mxu0 0
    %2278 = vmatprep.subr.bf16.mxu0 0
    %2279 = vmatpush1.bf16.msra.mxu0 0
    %2280 = vmatprep.subr.bf16.mxu0 0
    %2281 = vmatpush1.bf16.msra.mxu0 0
    %2282 = vmatprep.subr.bf16.mxu0 0
    %2283 = vmatpush1.bf16.msra.mxu0 0
    %2284 = vmatprep.subr.bf16.mxu0 0
    %2285 = vmatpush1.bf16.msra.mxu0 0
    %2286 = vmatprep.subr.bf16.mxu0 0
    %2287 = vmatpush1.bf16.msra.mxu0 0
    %2288 = vmatprep.subr.bf16.mxu0 0
    %2289 = vmatpush1.bf16.msra.mxu0 0
    %2290 = vmatprep.subr.bf16.mxu0 0
    %2291 = vmatpush1.bf16.msra.mxu0 0
    %2292 = vmatprep.subr.bf16.mxu0 0
    %2293 = vmatpush1.bf16.msra.mxu0 0
    %2294 = vmatprep.subr.bf16.mxu0 0
    %2295 = vmatpush1.bf16.msra.mxu0 0
    %2296 = vmatprep.subr.bf16.mxu0 0
    %2297 = vmatpush1.bf16.msra.mxu0 0
    %2298 = vmatprep.subr.bf16.mxu0 0
    %2299 = vmatpush1.bf16.msra.mxu0 0
    %2300 = vmatprep.subr.bf16.mxu0 0
    %2301 = vmatpush1.bf16.msra.mxu0 0
    %2302 = vmatprep.subr.bf16.mxu0 0
    %2303 = vmatpush1.bf16.msra.mxu0 0
    %2304 = vmatprep.mubr.bf16.mxu0 0
    %2305 = vmatmul.mubr.bf16.gmra.mrb[0].mxu0 %v2267
    %v2306 = vpop.f32.mrb[0].mxu0
    %v2307 = vadd.f32 0.0, %v2306
    %v2308 = vpop.f32.mrb[0].mxu0
    %v2309 = vpop.f32.mrb[0].mxu0
    %v2310 = vpop.f32.mrb[0].mxu0
    %2311 = vdwg.mxu0
    %2313 = vrot.lane.b32.xlu0 %v2307, 16
    %v2314 = vpop.permute.xlu0 %2313
    %2316 = vst.msk [vmem:[#allocation3] sm:$0xff] %vm865, %v2314
    %2317 = vrot.lane.b32.xlu0 %v1691, 96
    %v2318 = vpop.permute.xlu0 %2317
    %v2320 = vsel %vm288, %v2211, 0
    %v2323 = vsel %vm765, %v2318, 0
    %2325 = vmatprep.subr.bf16.mxu0 0
    %2326 = vmatpush1.bf16.msra.mxu0 %v2323
    %2327 = vmatprep.subr.bf16.mxu0 0
    %2328 = vmatpush1.bf16.msra.mxu0 0
    %2329 = vmatprep.subr.bf16.mxu0 0
    %2330 = vmatpush1.bf16.msra.mxu0 0
    %2331 = vmatprep.subr.bf16.mxu0 0
    %2332 = vmatpush1.bf16.msra.mxu0 0
    %2333 = vmatprep.subr.bf16.mxu0 0
    %2334 = vmatpush1.bf16.msra.mxu0 0
    %2335 = vmatprep.subr.bf16.mxu0 0
    %2336 = vmatpush1.bf16.msra.mxu0 0
    %2337 = vmatprep.subr.bf16.mxu0 0
    %2338 = vmatpush1.bf16.msra.mxu0 0
    %2339 = vmatprep.subr.bf16.mxu0 0
    %2340 = vmatpush1.bf16.msra.mxu0 0
    %2341 = vmatprep.subr.bf16.mxu0 0
    %2342 = vmatpush1.bf16.msra.mxu0 0
    %2343 = vmatprep.subr.bf16.mxu0 0
    %2344 = vmatpush1.bf16.msra.mxu0 0
    %2345 = vmatprep.subr.bf16.mxu0 0
    %2346 = vmatpush1.bf16.msra.mxu0 0
    %2347 = vmatprep.subr.bf16.mxu0 0
    %2348 = vmatpush1.bf16.msra.mxu0 0
    %2349 = vmatprep.subr.bf16.mxu0 0
    %2350 = vmatpush1.bf16.msra.mxu0 0
    %2351 = vmatprep.subr.bf16.mxu0 0
    %2352 = vmatpush1.bf16.msra.mxu0 0
    %2353 = vmatprep.subr.bf16.mxu0 0
    %2354 = vmatpush1.bf16.msra.mxu0 0
    %2355 = vmatprep.subr.bf16.mxu0 0
    %2356 = vmatpush1.bf16.msra.mxu0 0
    %2357 = vmatprep.mubr.bf16.mxu0 0
    %2358 = vmatmul.mubr.bf16.gmra.mrb[0].mxu0 %v2320
    %v2359 = vpop.f32.mrb[0].mxu0
    %v2360 = vadd.f32 0.0, %v2359
    %v2361 = vpop.f32.mrb[0].mxu0
    %v2362 = vpop.f32.mrb[0].mxu0
    %v2363 = vpop.f32.mrb[0].mxu0
    %2364 = vdwg.mxu0
    %2366 = vrot.lane.b32.xlu0 %v2360, 32
    %v2367 = vpop.permute.xlu0 %2366
    %2369 = vst.msk [vmem:[#allocation3] sm:$0xff] %vm919, %v2367
    %v2371 = vrot.slane %v2211, 4
    %2372 = vrot.lane.b32.xlu0 %v1691, 80
    %v2373 = vpop.permute.xlu0 %2372
    %v2375 = vsel %vm288, %v2371, 0
    %v2378 = vsel %vm765, %v2373, 0
    %2380 = vmatprep.subr.bf16.mxu0 0
    %2381 = vmatpush1.bf16.msra.mxu0 %v2378
    %2382 = vmatprep.subr.bf16.mxu0 0
    %2383 = vmatpush1.bf16.msra.mxu0 0
    %2384 = vmatprep.subr.bf16.mxu0 0
    %2385 = vmatpush1.bf16.msra.mxu0 0
    %2386 = vmatprep.subr.bf16.mxu0 0
    %2387 = vmatpush1.bf16.msra.mxu0 0
    %2388 = vmatprep.subr.bf16.mxu0 0
    %2389 = vmatpush1.bf16.msra.mxu0 0
    %2390 = vmatprep.subr.bf16.mxu0 0
    %2391 = vmatpush1.bf16.msra.mxu0 0
    %2392 = vmatprep.subr.bf16.mxu0 0
    %2393 = vmatpush1.bf16.msra.mxu0 0
    %2394 = vmatprep.subr.bf16.mxu0 0
    %2395 = vmatpush1.bf16.msra.mxu0 0
    %2396 = vmatprep.subr.bf16.mxu0 0
    %2397 = vmatpush1.bf16.msra.mxu0 0
    %2398 = vmatprep.subr.bf16.mxu0 0
    %2399 = vmatpush1.bf16.msra.mxu0 0
    %2400 = vmatprep.subr.bf16.mxu0 0
    %2401 = vmatpush1.bf16.msra.mxu0 0
    %2402 = vmatprep.subr.bf16.mxu0 0
    %2403 = vmatpush1.bf16.msra.mxu0 0
    %2404 = vmatprep.subr.bf16.mxu0 0
    %2405 = vmatpush1.bf16.msra.mxu0 0
    %2406 = vmatprep.subr.bf16.mxu0 0
    %2407 = vmatpush1.bf16.msra.mxu0 0
    %2408 = vmatprep.subr.bf16.mxu0 0
    %2409 = vmatpush1.bf16.msra.mxu0 0
    %2410 = vmatprep.subr.bf16.mxu0 0
    %2411 = vmatpush1.bf16.msra.mxu0 0
    %2412 = vmatprep.mubr.bf16.mxu0 0
    %2413 = vmatmul.mubr.bf16.gmra.mrb[0].mxu0 %v2375
    %v2414 = vpop.f32.mrb[0].mxu0
    %v2415 = vadd.f32 0.0, %v2414
    %v2416 = vpop.f32.mrb[0].mxu0
    %v2417 = vpop.f32.mrb[0].mxu0
    %v2418 = vpop.f32.mrb[0].mxu0
    %2419 = vdwg.mxu0
    %2421 = vrot.lane.b32.xlu0 %v2415, 48
    %v2422 = vpop.permute.xlu0 %2421
    %2424 = vst.msk [vmem:[#allocation3] sm:$0xff] %vm975, %v2422
    %v2425 = vrot.slane %v1691, 4
    %v2427 = vsel %vm288, %v2212, 0
    %v2430 = vsel %vm765, %v2425, 0
    %2432 = vmatprep.subr.bf16.mxu0 0
    %2433 = vmatpush1.bf16.msra.mxu0 %v2430
    %2434 = vmatprep.subr.bf16.mxu0 0
    %2435 = vmatpush1.bf16.msra.mxu0 0
    %2436 = vmatprep.subr.bf16.mxu0 0
    %2437 = vmatpush1.bf16.msra.mxu0 0
    %2438 = vmatprep.subr.bf16.mxu0 0
    %2439 = vmatpush1.bf16.msra.mxu0 0
    %2440 = vmatprep.subr.bf16.mxu0 0
    %2441 = vmatpush1.bf16.msra.mxu0 0
    %2442 = vmatprep.subr.bf16.mxu0 0
    %2443 = vmatpush1.bf16.msra.mxu0 0
    %2444 = vmatprep.subr.bf16.mxu0 0
    %2445 = vmatpush1.bf16.msra.mxu0 0
    %2446 = vmatprep.subr.bf16.mxu0 0
    %2447 = vmatpush1.bf16.msra.mxu0 0
    %2448 = vmatprep.subr.bf16.mxu0 0
    %2449 = vmatpush1.bf16.msra.mxu0 0
    %2450 = vmatprep.subr.bf16.mxu0 0
    %2451 = vmatpush1.bf16.msra.mxu0 0
    %2452 = vmatprep.subr.bf16.mxu0 0
    %2453 = vmatpush1.bf16.msra.mxu0 0
    %2454 = vmatprep.subr.bf16.mxu0 0
    %2455 = vmatpush1.bf16.msra.mxu0 0
    %2456 = vmatprep.subr.bf16.mxu0 0
    %2457 = vmatpush1.bf16.msra.mxu0 0
    %2458 = vmatprep.subr.bf16.mxu0 0
    %2459 = vmatpush1.bf16.msra.mxu0 0
    %2460 = vmatprep.subr.bf16.mxu0 0
    %2461 = vmatpush1.bf16.msra.mxu0 0
    %2462 = vmatprep.subr.bf16.mxu0 0
    %2463 = vmatpush1.bf16.msra.mxu0 0
    %2464 = vmatprep.mubr.bf16.mxu0 0
    %2465 = vmatmul.mubr.bf16.gmra.mrb[0].mxu0 %v2427
    %v2466 = vpop.f32.mrb[0].mxu0
    %v2467 = vadd.f32 0.0, %v2466
    %v2468 = vpop.f32.mrb[0].mxu0
    %v2469 = vpop.f32.mrb[0].mxu0
    %v2470 = vpop.f32.mrb[0].mxu0
    %2471 = vdwg.mxu0
    %2472 = vst.msk [vmem:[#allocation3 + $0x8] sm:$0xff] %vm241, %v2467
    %v2474 = vrot.slane %v2212, 4
    %2475 = vrot.lane.b32.xlu0 %v2425, 112
    %v2476 = vpop.permute.xlu0 %2475
    %v2478 = vsel %vm288, %v2474, 0
    %v2481 = vsel %vm765, %v2476, 0
    %2483 = vmatprep.subr.bf16.mxu0 0
    %2484 = vmatpush1.bf16.msra.mxu0 %v2481
    %2485 = vmatprep.subr.bf16.mxu0 0
    %2486 = vmatpush1.bf16.msra.mxu0 0
    %2487 = vmatprep.subr.bf16.mxu0 0
    %2488 = vmatpush1.bf16.msra.mxu0 0
    %2489 = vmatprep.subr.bf16.mxu0 0
    %2490 = vmatpush1.bf16.msra.mxu0 0
    %2491 = vmatprep.subr.bf16.mxu0 0
    %2492 = vmatpush1.bf16.msra.mxu0 0
    %2493 = vmatprep.subr.bf16.mxu0 0
    %2494 = vmatpush1.bf16.msra.mxu0 0
    %2495 = vmatprep.subr.bf16.mxu0 0
    %2496 = vmatpush1.bf16.msra.mxu0 0
    %2497 = vmatprep.subr.bf16.mxu0 0
    %2498 = vmatpush1.bf16.msra.mxu0 0
    %2499 = vmatprep.subr.bf16.mxu0 0
    %2500 = vmatpush1.bf16.msra.mxu0 0
    %2501 = vmatprep.subr.bf16.mxu0 0
    %2502 = vmatpush1.bf16.msra.mxu0 0
    %2503 = vmatprep.subr.bf16.mxu0 0
    %2504 = vmatpush1.bf16.msra.mxu0 0
    %2505 = vmatprep.subr.bf16.mxu0 0
    %2506 = vmatpush1.bf16.msra.mxu0 0
    %2507 = vmatprep.subr.bf16.mxu0 0
    %2508 = vmatpush1.bf16.msra.mxu0 0
    %2509 = vmatprep.subr.bf16.mxu0 0
    %2510 = vmatpush1.bf16.msra.mxu0 0
    %2511 = vmatprep.subr.bf16.mxu0 0
    %2512 = vmatpush1.bf16.msra.mxu0 0
    %2513 = vmatprep.subr.bf16.mxu0 0
    %2514 = vmatpush1.bf16.msra.mxu0 0
    %2515 = vmatprep.mubr.bf16.mxu0 0
    %2516 = vmatmul.mubr.bf16.gmra.mrb[0].mxu0 %v2478
    %v2517 = vpop.f32.mrb[0].mxu0
    %v2518 = vadd.f32 0.0, %v2517
    %v2519 = vpop.f32.mrb[0].mxu0
    %v2520 = vpop.f32.mrb[0].mxu0
    %v2521 = vpop.f32.mrb[0].mxu0
    %2522 = vdwg.mxu0
    %2524 = vrot.lane.b32.xlu0 %v2518, 16
    %v2525 = vpop.permute.xlu0 %2524
    %2527 = vst.msk [vmem:[#allocation3 + $0x8] sm:$0xff] %vm865, %v2525
    %2528 = vrot.lane.b32.xlu0 %v2425, 96
    %v2529 = vpop.permute.xlu0 %2528
    %v2531 = vsel %vm288, %v2213, 0
    %v2534 = vsel %vm765, %v2529, 0
    %2536 = vmatprep.subr.bf16.mxu0 0
    %2537 = vmatpush1.bf16.msra.mxu0 %v2534
    %2538 = vmatprep.subr.bf16.mxu0 0
    %2539 = vmatpush1.bf16.msra.mxu0 0
    %2540 = vmatprep.subr.bf16.mxu0 0
    %2541 = vmatpush1.bf16.msra.mxu0 0
    %2542 = vmatprep.subr.bf16.mxu0 0
    %2543 = vmatpush1.bf16.msra.mxu0 0
    %2544 = vmatprep.subr.bf16.mxu0 0
    %2545 = vmatpush1.bf16.msra.mxu0 0
    %2546 = vmatprep.subr.bf16.mxu0 0
    %2547 = vmatpush1.bf16.msra.mxu0 0
    %2548 = vmatprep.subr.bf16.mxu0 0
    %2549 = vmatpush1.bf16.msra.mxu0 0
    %2550 = vmatprep.subr.bf16.mxu0 0
    %2551 = vmatpush1.bf16.msra.mxu0 0
    %2552 = vmatprep.subr.bf16.mxu0 0
    %2553 = vmatpush1.bf16.msra.mxu0 0
    %2554 = vmatprep.subr.bf16.mxu0 0
    %2555 = vmatpush1.bf16.msra.mxu0 0
    %2556 = vmatprep.subr.bf16.mxu0 0
    %2557 = vmatpush1.bf16.msra.mxu0 0
    %2558 = vmatprep.subr.bf16.mxu0 0
    %2559 = vmatpush1.bf16.msra.mxu0 0
    %2560 = vmatprep.subr.bf16.mxu0 0
    %2561 = vmatpush1.bf16.msra.mxu0 0
    %2562 = vmatprep.subr.bf16.mxu0 0
    %2563 = vmatpush1.bf16.msra.mxu0 0
    %2564 = vmatprep.subr.bf16.mxu0 0
    %2565 = vmatpush1.bf16.msra.mxu0 0
    %2566 = vmatprep.subr.bf16.mxu0 0
    %2567 = vmatpush1.bf16.msra.mxu0 0
    %2568 = vmatprep.mubr.bf16.mxu0 0
    %2569 = vmatmul.mubr.bf16.gmra.mrb[0].mxu0 %v2531
    %v2570 = vpop.f32.mrb[0].mxu0
    %v2571 = vadd.f32 0.0, %v2570
    %v2572 = vpop.f32.mrb[0].mxu0
    %v2573 = vpop.f32.mrb[0].mxu0
    %v2574 = vpop.f32.mrb[0].mxu0
    %2575 = vdwg.mxu0
    %2577 = vrot.lane.b32.xlu0 %v2571, 32
    %v2578 = vpop.permute.xlu0 %2577
    %2580 = vst.msk [vmem:[#allocation3 + $0x8] sm:$0xff] %vm919, %v2578
    %v2582 = vrot.slane %v2213, 4
    %2583 = vrot.lane.b32.xlu0 %v2425, 80
    %v2584 = vpop.permute.xlu0 %2583
    %v2586 = vsel %vm288, %v2582, 0
    %v2589 = vsel %vm765, %v2584, 0
    %2591 = vmatprep.subr.bf16.mxu0 0
    %2592 = vmatpush1.bf16.msra.mxu0 %v2589
    %2593 = vmatprep.subr.bf16.mxu0 0
    %2594 = vmatpush1.bf16.msra.mxu0 0
    %2595 = vmatprep.subr.bf16.mxu0 0
    %2596 = vmatpush1.bf16.msra.mxu0 0
    %2597 = vmatprep.subr.bf16.mxu0 0
    %2598 = vmatpush1.bf16.msra.mxu0 0
    %2599 = vmatprep.subr.bf16.mxu0 0
    %2600 = vmatpush1.bf16.msra.mxu0 0
    %2601 = vmatprep.subr.bf16.mxu0 0
    %2602 = vmatpush1.bf16.msra.mxu0 0
    %2603 = vmatprep.subr.bf16.mxu0 0
    %2604 = vmatpush1.bf16.msra.mxu0 0
    %2605 = vmatprep.subr.bf16.mxu0 0
    %2606 = vmatpush1.bf16.msra.mxu0 0
    %2607 = vmatprep.subr.bf16.mxu0 0
    %2608 = vmatpush1.bf16.msra.mxu0 0
    %2609 = vmatprep.subr.bf16.mxu0 0
    %2610 = vmatpush1.bf16.msra.mxu0 0
    %2611 = vmatprep.subr.bf16.mxu0 0
    %2612 = vmatpush1.bf16.msra.mxu0 0
    %2613 = vmatprep.subr.bf16.mxu0 0
    %2614 = vmatpush1.bf16.msra.mxu0 0
    %2615 = vmatprep.subr.bf16.mxu0 0
    %2616 = vmatpush1.bf16.msra.mxu0 0
    %2617 = vmatprep.subr.bf16.mxu0 0
    %2618 = vmatpush1.bf16.msra.mxu0 0
    %2619 = vmatprep.subr.bf16.mxu0 0
    %2620 = vmatpush1.bf16.msra.mxu0 0
    %2621 = vmatprep.subr.bf16.mxu0 0
    %2622 = vmatpush1.bf16.msra.mxu0 0
    %2623 = vmatprep.mubr.bf16.mxu0 0
    %2624 = vmatmul.mubr.bf16.gmra.mrb[0].mxu0 %v2586
    %v2625 = vpop.f32.mrb[0].mxu0
    %v2626 = vadd.f32 0.0, %v2625
    %v2627 = vpop.f32.mrb[0].mxu0
    %v2628 = vpop.f32.mrb[0].mxu0
    %v2629 = vpop.f32.mrb[0].mxu0
    %2630 = vdwg.mxu0
    %2632 = vrot.lane.b32.xlu0 %v2626, 48
    %v2633 = vpop.permute.xlu0 %2632
    %2635 = vst.msk [vmem:[#allocation3 + $0x8] sm:$0xff] %vm975, %v2633
    %v2636 = vld [vmem:[#allocation3] sm:$0xff]
    %v2637 = vld [vmem:[#allocation3 + $0x8] sm:$0xff]
    %v2638 = vpack.c.bf16 %v2637, %v2636
    %s2639 = scalar_lea.vmem %s7, 32
    %v2640 = vld [vmem:[%s2639] sm:$0xf]
    %v2641 = vld [vmem:[%s2639 + $0x4] sm:$0xf]
    %v2642 = vld [vmem:[%s2639 + $0x8] sm:$0xf]
    %v2643 = vld [vmem:[%s2639 + $0xc] sm:$0xf]
    %v2644 = vld [vmem:[%s2639 + $0x10] sm:$0xf]
    %v2645 = vld [vmem:[%s2639 + $0x14] sm:$0xf]
    %v2646 = vld [vmem:[%s2639 + $0x18] sm:$0xf]
    %v2647 = vld [vmem:[%s2639 + $0x1c] sm:$0xf]
    %s2648 = scalar_lea.vmem %s8, 1
    %v2649 = vld [vmem:[%s2648] sm:$0x1]
    %v2651 = vlaneseq
    %v2652 = vshrl.u32 %v2651, 7
    %v2653 = vsub.s32 0, %v2652
    %v2654 = vrot.slane %v2649, %v2653
    %v2664 = vunpack.c.l.b16 %v2640
    %v2665 = vunpack.c.l.b16 %v2641
    %v2666 = vunpack.c.l.b16 %v2642
    %v2667 = vunpack.c.l.b16 %v2643
    %v2668 = vunpack.c.l.b16 %v2644
    %v2669 = vunpack.c.l.b16 %v2645
    %v2670 = vunpack.c.l.b16 %v2646
    %v2671 = vunpack.c.l.b16 %v2647
    %v2672 = vpack.c.b16 %v2665, %v2664
    %v2673 = vpack.c.b16 %v2667, %v2666
    %v2674 = vpack.c.b16 %v2669, %v2668
    %v2675 = vpack.c.b16 %v2671, %v2670
    %v2681 = vsel %vm77, %v2638, 0
    %2683 = vmatprep.subr.bf16.mxu0 0
    %2684 = vmatpush1.bf16.msra.mxu0 %v2672
    %2685 = vmatprep.subr.bf16.mxu0 0
    %2686 = vmatpush1.bf16.msra.mxu0 %v2673
    %2687 = vmatprep.subr.bf16.mxu0 0
    %2688 = vmatpush1.bf16.msra.mxu0 %v2674
    %2689 = vmatprep.subr.bf16.mxu0 0
    %2690 = vmatpush1.bf16.msra.mxu0 %v2675
    %2691 = vmatprep.subr.bf16.mxu0 0
    %2692 = vmatpush1.bf16.msra.mxu0 0
    %2693 = vmatprep.subr.bf16.mxu0 0
    %2694 = vmatpush1.bf16.msra.mxu0 0
    %2695 = vmatprep.subr.bf16.mxu0 0
    %2696 = vmatpush1.bf16.msra.mxu0 0
    %2697 = vmatprep.subr.bf16.mxu0 0
    %2698 = vmatpush1.bf16.msra.mxu0 0
    %2699 = vmatprep.subr.bf16.mxu0 0
    %2700 = vmatpush1.bf16.msra.mxu0 0
    %2701 = vmatprep.subr.bf16.mxu0 0
    %2702 = vmatpush1.bf16.msra.mxu0 0
    %2703 = vmatprep.subr.bf16.mxu0 0
    %2704 = vmatpush1.bf16.msra.mxu0 0
    %2705 = vmatprep.subr.bf16.mxu0 0
    %2706 = vmatpush1.bf16.msra.mxu0 0
    %2707 = vmatprep.subr.bf16.mxu0 0
    %2708 = vmatpush1.bf16.msra.mxu0 0
    %2709 = vmatprep.subr.bf16.mxu0 0
    %2710 = vmatpush1.bf16.msra.mxu0 0
    %2711 = vmatprep.subr.bf16.mxu0 0
    %2712 = vmatpush1.bf16.msra.mxu0 0
    %2713 = vmatprep.subr.bf16.mxu0 0
    %2714 = vmatpush1.bf16.msra.mxu0 0
    %2715 = vmatprep.mubr.bf16.mxu0 0
    %2716 = vmatmul.mubr.bf16.gmra.mrb[0].mxu0 %v2681
    %v2717 = vpop.f32.mrb[0].mxu0
    %v2718 = vadd.f32 %v2654, %v2717
    %v2719 = vpop.f32.mrb[0].mxu0
    %v2720 = vpop.f32.mrb[0].mxu0
    %v2721 = vadd.f32 %v2654, %v2720
    %v2722 = vpop.f32.mrb[0].mxu0
    %2723 = vdwg.mxu0
    %v2724 = vadd.f32 %v1579, %v2718
    %v2725 = vadd.f32 %v1580, %v2721
    %s2726 = scalar_lea.vmem %s9, 1
    %v2727 = vld [vmem:[%s2726] sm:$0x1]
    %s2728 = scalar_lea.vmem %s10, 1
    %v2729 = vld [vmem:[%s2728] sm:$0x1]
    %v2730 = vsel %vm77, %v2724, 0.0
    %2731 = vadd.xlane.f32.xlu0 %v2730
    %v2732 = vpop.xlane.xlu0 %2731
    %v2733 = vsel %vm77, %v2725, 0.0
    %2734 = vadd.xlane.f32.xlu0 %v2733
    %v2735 = vpop.xlane.xlu0 %2734
    %v2736 = vmul.f32 %v2732, %v84
    %v2737 = vmul.f32 %v2735, %v84
    %v2738 = vsub.f32 %v2724, %v2736
    %v2739 = vsub.f32 %v2725, %v2737
    %v2740 = vmul.f32 %v2738, %v2738
    %v2741 = vmul.f32 %v2739, %v2739
    %v2742 = vsel %vm77, %v2740, 0.0
    %2743 = vadd.xlane.f32.xlu0 %v2742
    %v2744 = vpop.xlane.xlu0 %2743
    %v2745 = vsel %vm77, %v2741, 0.0
    %2746 = vadd.xlane.f32.xlu0 %v2745
    %v2747 = vpop.xlane.xlu0 %2746
    %v2748 = vmul.f32 %v2744, %v84
    %v2749 = vmul.f32 %v2747, %v84
    %v2750 = vadd.f32 %v2748, 1e-05
    %v2751 = vadd.f32 %v2749, 1e-05
    %v2752 = vrsqrt.pop %v2750
    %v2753 = vrsqrt.pop %v2751
    %v2754 = vmul.f32 %v2738, %v2752
    %v2755 = vmul.f32 %v2739, %v2753
    %v2757 = vlaneseq
    %v2758 = vshrl.u32 %v2757, 7
    %v2759 = vsub.s32 0, %v2758
    %v2760 = vrot.slane %v2727, %v2759
    %v2762 = vmul.f32 %v2754, %v2760
    %v2763 = vmul.f32 %v2755, %v2760
    %v2765 = vlaneseq
    %v2766 = vshrl.u32 %v2765, 7
    %v2767 = vsub.s32 0, %v2766
    %v2768 = vrot.slane %v2729, %v2767
    %v2770 = vadd.f32 %v2762, %v2768
    %v2771 = vadd.f32 %v2763, %v2768
    %v2772 = vpack.c.bf16 %v2771, %v2770
    %s2773 = scalar_lea.vmem %s11, 32
    %v2774 = vld [vmem:[%s2773] sm:$0xf]
    %v2775 = vld [vmem:[%s2773 + $0x4] sm:$0xf]
    %v2776 = vld [vmem:[%s2773 + $0x8] sm:$0xf]
    %v2777 = vld [vmem:[%s2773 + $0xc] sm:$0xf]
    %v2778 = vld [vmem:[%s2773 + $0x10] sm:$0xf]
    %v2779 = vld [vmem:[%s2773 + $0x14] sm:$0xf]
    %v2780 = vld [vmem:[%s2773 + $0x18] sm:$0xf]
    %v2781 = vld [vmem:[%s2773 + $0x1c] sm:$0xf]
    %s2782 = scalar_lea.vmem %s12, 1
    %v2783 = vld [vmem:[%s2782] sm:$0x1]
    %v2785 = vlaneseq
    %v2786 = vshrl.u32 %v2785, 7
    %v2787 = vsub.s32 0, %v2786
    %v2788 = vrot.slane %v2783, %v2787
    %v2798 = vunpack.c.l.b16 %v2774
    %v2799 = vunpack.c.l.b16 %v2775
    %v2800 = vunpack.c.l.b16 %v2776
    %v2801 = vunpack.c.l.b16 %v2777
    %v2802 = vunpack.c.l.b16 %v2778
    %v2803 = vunpack.c.l.b16 %v2779
    %v2804 = vunpack.c.l.b16 %v2780
    %v2805 = vunpack.c.l.b16 %v2781
    %v2806 = vpack.c.b16 %v2799, %v2798
    %v2807 = vpack.c.b16 %v2801, %v2800
    %v2808 = vpack.c.b16 %v2803, %v2802
    %v2809 = vpack.c.b16 %v2805, %v2804
    %v2815 = vsel %vm77, %v2772, 0
    %2817 = vmatprep.subr.bf16.mxu0 0
    %2818 = vmatpush1.bf16.msra.mxu0 %v2806
    %2819 = vmatprep.subr.bf16.mxu0 0
    %2820 = vmatpush1.bf16.msra.mxu0 %v2807
    %2821 = vmatprep.subr.bf16.mxu0 0
    %2822 = vmatpush1.bf16.msra.mxu0 %v2808
    %2823 = vmatprep.subr.bf16.mxu0 0
    %2824 = vmatpush1.bf16.msra.mxu0 %v2809
    %2825 = vmatprep.subr.bf16.mxu0 0
    %2826 = vmatpush1.bf16.msra.mxu0 0
    %2827 = vmatprep.subr.bf16.mxu0 0
    %2828 = vmatpush1.bf16.msra.mxu0 0
    %2829 = vmatprep.subr.bf16.mxu0 0
    %2830 = vmatpush1.bf16.msra.mxu0 0
    %2831 = vmatprep.subr.bf16.mxu0 0
    %2832 = vmatpush1.bf16.msra.mxu0 0
    %2833 = vmatprep.subr.bf16.mxu0 0
    %2834 = vmatpush1.bf16.msra.mxu0 0
    %2835 = vmatprep.subr.bf16.mxu0 0
    %2836 = vmatpush1.bf16.msra.mxu0 0
    %2837 = vmatprep.subr.bf16.mxu0 0
    %2838 = vmatpush1.bf16.msra.mxu0 0
    %2839 = vmatprep.subr.bf16.mxu0 0
    %2840 = vmatpush1.bf16.msra.mxu0 0
    %2841 = vmatprep.subr.bf16.mxu0 0
    %2842 = vmatpush1.bf16.msra.mxu0 0
    %2843 = vmatprep.subr.bf16.mxu0 0
    %2844 = vmatpush1.bf16.msra.mxu0 0
    %2845 = vmatprep.subr.bf16.mxu0 0
    %2846 = vmatpush1.bf16.msra.mxu0 0
    %2847 = vmatprep.subr.bf16.mxu0 0
    %2848 = vmatpush1.bf16.msra.mxu0 0
    %2849 = vmatprep.mubr.bf16.mxu0 0
    %2850 = vmatmul.mubr.bf16.gmra.mrb[0].mxu0 %v2815
    %v2851 = vpop.f32.mrb[0].mxu0
    %v2852 = vadd.f32 %v2788, %v2851
    %v2853 = vpop.f32.mrb[0].mxu0
    %v2854 = vpop.f32.mrb[0].mxu0
    %v2855 = vadd.f32 %v2788, %v2854
    %v2856 = vpop.f32.mrb[0].mxu0
    %2857 = vdwg.mxu0
    %v2858 = vmul.f32 %v2852, %v2852
    %v2859 = vmul.f32 %v2855, %v2855
    %v2860 = vmul.f32 %v2852, %v2858
    %v2861 = vmul.f32 %v2855, %v2859
    %v2862 = vmul.f32 %v2860, 0.044715
    %v2863 = vmul.f32 %v2861, 0.044715
    %v2864 = vadd.f32 %v2852, %v2862
    %v2865 = vadd.f32 %v2855, %v2863
    %v2866 = vmul.f32 %v2864, 0.7978846
    %v2867 = vmul.f32 %v2865, 0.7978846
    %v2868 = vtanh.pop %v2866
    %v2869 = vtanh.pop %v2867
    %v2870 = vadd.f32 %v2868, 1.0
    %v2871 = vadd.f32 %v2869, 1.0
    %v2872 = vmul.f32 %v2870, 0.5
    %v2873 = vmul.f32 %v2871, 0.5
    %v2874 = vmul.f32 %v2852, %v2872
    %v2875 = vmul.f32 %v2855, %v2873
    %v2876 = vpack.c.bf16 %v2875, %v2874
    %s2877 = scalar_lea.vmem %s13, 64
    %v2878 = vld [vmem:[%s2877] sm:$0xf]
    %v2879 = vld [vmem:[%s2877 + $0x4] sm:$0xf]
    %v2880 = vld [vmem:[%s2877 + $0x8] sm:$0xf]
    %v2881 = vld [vmem:[%s2877 + $0xc] sm:$0xf]
    %v2882 = vld [vmem:[%s2877 + $0x10] sm:$0xf]
    %v2883 = vld [vmem:[%s2877 + $0x14] sm:$0xf]
    %v2884 = vld [vmem:[%s2877 + $0x18] sm:$0xf]
    %v2885 = vld [vmem:[%s2877 + $0x1c] sm:$0xf]
    %v2886 = vld [vmem:[%s2877 + $0x20] sm:$0xf]
    %v2887 = vld [vmem:[%s2877 + $0x24] sm:$0xf]
    %v2888 = vld [vmem:[%s2877 + $0x28] sm:$0xf]
    %v2889 = vld [vmem:[%s2877 + $0x2c] sm:$0xf]
    %v2890 = vld [vmem:[%s2877 + $0x30] sm:$0xf]
    %v2891 = vld [vmem:[%s2877 + $0x34] sm:$0xf]
    %v2892 = vld [vmem:[%s2877 + $0x38] sm:$0xf]
    %v2893 = vld [vmem:[%s2877 + $0x3c] sm:$0xf]
    %s2894 = scalar_lea.vmem %s14, 1
    %v2895 = vld [vmem:[%s2894] sm:$0x1]
    %v2897 = vlaneseq
    %v2898 = vshrl.u32 %v2897, 7
    %v2899 = vsub.s32 0, %v2898
    %v2900 = vrot.slane %v2895, %v2899
    %v2918 = vunpack.c.l.b16 %v2878
    %v2919 = vunpack.c.l.b16 %v2879
    %v2920 = vunpack.c.l.b16 %v2880
    %v2921 = vunpack.c.l.b16 %v2881
    %v2922 = vunpack.c.l.b16 %v2882
    %v2923 = vunpack.c.l.b16 %v2883
    %v2924 = vunpack.c.l.b16 %v2884
    %v2925 = vunpack.c.l.b16 %v2885
    %v2926 = vunpack.c.l.b16 %v2886
    %v2927 = vunpack.c.l.b16 %v2887
    %v2928 = vunpack.c.l.b16 %v2888
    %v2929 = vunpack.c.l.b16 %v2889
    %v2930 = vunpack.c.l.b16 %v2890
    %v2931 = vunpack.c.l.b16 %v2891
    %v2932 = vunpack.c.l.b16 %v2892
    %v2933 = vunpack.c.l.b16 %v2893
    %v2934 = vpack.c.b16 %v2919, %v2918
    %v2935 = vpack.c.b16 %v2921, %v2920
    %v2936 = vpack.c.b16 %v2923, %v2922
    %v2937 = vpack.c.b16 %v2925, %v2924
    %v2938 = vpack.c.b16 %v2927, %v2926
    %v2939 = vpack.c.b16 %v2929, %v2928
    %v2940 = vpack.c.b16 %v2931, %v2930
    %v2941 = vpack.c.b16 %v2933, %v2932
    %2950 = vmatprep.subr.bf16.mxu0 0
    %2951 = vmatpush1.bf16.msra.mxu0 %v2934
    %2952 = vmatprep.subr.bf16.mxu0 0
    %2953 = vmatpush1.bf16.msra.mxu0 %v2935
    %2954 = vmatprep.subr.bf16.mxu0 0
    %2955 = vmatpush1.bf16.msra.mxu0 %v2936
    %2956 = vmatprep.subr.bf16.mxu0 0
    %2957 = vmatpush1.bf16.msra.mxu0 %v2937
    %2958 = vmatprep.subr.bf16.mxu0 0
    %2959 = vmatpush1.bf16.msra.mxu0 %v2938
    %2960 = vmatprep.subr.bf16.mxu0 0
    %2961 = vmatpush1.bf16.msra.mxu0 %v2939
    %2962 = vmatprep.subr.bf16.mxu0 0
    %2963 = vmatpush1.bf16.msra.mxu0 %v2940
    %2964 = vmatprep.subr.bf16.mxu0 0
    %2965 = vmatpush1.bf16.msra.mxu0 %v2941
    %2966 = vmatprep.subr.bf16.mxu0 0
    %2967 = vmatpush1.bf16.msra.mxu0 0
    %2968 = vmatprep.subr.bf16.mxu0 0
    %2969 = vmatpush1.bf16.msra.mxu0 0
    %2970 = vmatprep.subr.bf16.mxu0 0
    %2971 = vmatpush1.bf16.msra.mxu0 0
    %2972 = vmatprep.subr.bf16.mxu0 0
    %2973 = vmatpush1.bf16.msra.mxu0 0
    %2974 = vmatprep.subr.bf16.mxu0 0
    %2975 = vmatpush1.bf16.msra.mxu0 0
    %2976 = vmatprep.subr.bf16.mxu0 0
    %2977 = vmatpush1.bf16.msra.mxu0 0
    %2978 = vmatprep.subr.bf16.mxu0 0
    %2979 = vmatpush1.bf16.msra.mxu0 0
    %2980 = vmatprep.subr.bf16.mxu0 0
    %2981 = vmatpush1.bf16.msra.mxu0 0
    %2982 = vmatprep.mubr.bf16.mxu0 0
    %2983 = vmatmul.mubr.bf16.gmra.mrb[0].mxu0 %v2876
    %v2984 = vpop.f32.mrb[0].mxu0
    %v2985 = vadd.f32 %v2900, %v2984
    %v2986 = vpop.f32.mrb[0].mxu0
    %v2987 = vpop.f32.mrb[0].mxu0
    %v2988 = vadd.f32 %v2900, %v2987
    %v2989 = vpop.f32.mrb[0].mxu0
    %2990 = vdwg.mxu0
    %v2991 = vadd.f32 %v2770, %v2985
    %v2992 = vadd.f32 %v2771, %v2988
    %s2993 = scalar_lea.vmem %s15, 1
    %v2994 = vld [vmem:[%s2993] sm:$0x1]
    %s2995 = scalar_lea.vmem %s16, 1
    %v2996 = vld [vmem:[%s2995] sm:$0x1]
    %v2997 = vsel %vm77, %v2991, 0.0
    %2998 = vadd.xlane.f32.xlu0 %v2997
    %v2999 = vpop.xlane.xlu0 %2998
    %v3000 = vsel %vm77, %v2992, 0.0
    %3001 = vadd.xlane.f32.xlu0 %v3000
    %v3002 = vpop.xlane.xlu0 %3001
    %v3003 = vmul.f32 %v2999, %v84
    %v3004 = vmul.f32 %v3002, %v84
    %v3005 = vsub.f32 %v2991, %v3003
    %v3006 = vsub.f32 %v2992, %v3004
    %v3007 = vmul.f32 %v3005, %v3005
    %v3008 = vmul.f32 %v3006, %v3006
    %v3009 = vsel %vm77, %v3007, 0.0
    %3010 = vadd.xlane.f32.xlu0 %v3009
    %v3011 = vpop.xlane.xlu0 %3010
    %v3012 = vsel %vm77, %v3008, 0.0
    %3013 = vadd.xlane.f32.xlu0 %v3012
    %v3014 = vpop.xlane.xlu0 %3013
    %v3015 = vmul.f32 %v3011, %v84
    %v3016 = vmul.f32 %v3014, %v84
    %v3017 = vadd.f32 %v3015, 1e-05
    %v3018 = vadd.f32 %v3016, 1e-05
    %v3019 = vrsqrt.pop %v3017
    %v3020 = vrsqrt.pop %v3018
    %v3021 = vmul.f32 %v3005, %v3019
    %v3022 = vmul.f32 %v3006, %v3020
    %v3024 = vlaneseq
    %v3025 = vshrl.u32 %v3024, 7
    %v3026 = vsub.s32 0, %v3025
    %v3027 = vrot.slane %v2994, %v3026
    %v3029 = vmul.f32 %v3021, %v3027
    %v3030 = vmul.f32 %v3022, %v3027
    %v3032 = vlaneseq
    %v3033 = vshrl.u32 %v3032, 7
    %v3034 = vsub.s32 0, %v3033
    %v3035 = vrot.slane %v2996, %v3034
    %v3037 = vadd.f32 %v3029, %v3035
    %v3038 = vadd.f32 %v3030, %v3035
    %v3039 = vpack.c.bf16 %v3038, %v3037
    %v3040 = vld [vmem:[%s17] sm:$0xf]
    %v3041 = vld [vmem:[%s17 + $0x4] sm:$0xf]
    %v3042 = vld [vmem:[%s17 + $0x8] sm:$0xf]
    %v3043 = vld [vmem:[%s17 + $0xc] sm:$0xf]
    %v3044 = vld [vmem:[%s17 + $0x10] sm:$0xf]
    %v3045 = vld [vmem:[%s17 + $0x14] sm:$0xf]
    %v3046 = vld [vmem:[%s17 + $0x18] sm:$0xf]
    %v3047 = vld [vmem:[%s17 + $0x1c] sm:$0xf]
    %v3048 = vld [vmem:[%s18] sm:$0x1]
    %v3050 = vlaneseq
    %v3051 = vshrl.u32 %v3050, 7
    %v3052 = vsub.s32 0, %v3051
    %v3053 = vrot.slane %v3048, %v3052
    %v3063 = vunpack.c.l.b16 %v3040
    %v3064 = vunpack.c.l.b16 %v3041
    %v3065 = vunpack.c.l.b16 %v3042
    %v3066 = vunpack.c.l.b16 %v3043
    %v3067 = vunpack.c.l.b16 %v3044
    %v3068 = vunpack.c.l.b16 %v3045
    %v3069 = vunpack.c.l.b16 %v3046
    %v3070 = vunpack.c.l.b16 %v3047
    %v3071 = vpack.c.b16 %v3064, %v3063
    %v3072 = vpack.c.b16 %v3066, %v3065
    %v3073 = vpack.c.b16 %v3068, %v3067
    %v3074 = vpack.c.b16 %v3070, %v3069
    %v3080 = vsel %vm77, %v3039, 0
    %3082 = vmatprep.subr.bf16.mxu0 0
    %3083 = vmatpush1.bf16.msra.mxu0 %v3071
    %3084 = vmatprep.subr.bf16.mxu0 0
    %3085 = vmatpush1.bf16.msra.mxu0 %v3072
    %3086 = vmatprep.subr.bf16.mxu0 0
    %3087 = vmatpush1.bf16.msra.mxu0 %v3073
    %3088 = vmatprep.subr.bf16.mxu0 0
    %3089 = vmatpush1.bf16.msra.mxu0 %v3074
    %3090 = vmatprep.subr.bf16.mxu0 0
    %3091 = vmatpush1.bf16.msra.mxu0 0
    %3092 = vmatprep.subr.bf16.mxu0 0
    %3093 = vmatpush1.bf16.msra.mxu0 0
    %3094 = vmatprep.subr.bf16.mxu0 0
    %3095 = vmatpush1.bf16.msra.mxu0 0
    %3096 = vmatprep.subr.bf16.mxu0 0
    %3097 = vmatpush1.bf16.msra.mxu0 0
    %3098 = vmatprep.subr.bf16.mxu0 0
    %3099 = vmatpush1.bf16.msra.mxu0 0
    %3100 = vmatprep.subr.bf16.mxu0 0
    %3101 = vmatpush1.bf16.msra.mxu0 0
    %3102 = vmatprep.subr.bf16.mxu0 0
    %3103 = vmatpush1.bf16.msra.mxu0 0
    %3104 = vmatprep.subr.bf16.mxu0 0
    %3105 = vmatpush1.bf16.msra.mxu0 0
    %3106 = vmatprep.subr.bf16.mxu0 0
    %3107 = vmatpush1.bf16.msra.mxu0 0
    %3108 = vmatprep.subr.bf16.mxu0 0
    %3109 = vmatpush1.bf16.msra.mxu0 0
    %3110 = vmatprep.subr.bf16.mxu0 0
    %3111 = vmatpush1.bf16.msra.mxu0 0
    %3112 = vmatprep.subr.bf16.mxu0 0
    %3113 = vmatpush1.bf16.msra.mxu0 0
    %3114 = vmatprep.mubr.bf16.mxu0 0
    %3115 = vmatmul.mubr.bf16.gmra.mrb[0].mxu0 %v3080
    %v3116 = vpop.f32.mrb[0].mxu0
    %v3117 = vadd.f32 %v3053, %v3116
    %v3118 = vpop.f32.mrb[0].mxu0
    %v3119 = vpop.f32.mrb[0].mxu0
    %v3120 = vadd.f32 %v3053, %v3119
    %v3121 = vpop.f32.mrb[0].mxu0
    %3122 = vdwg.mxu0
    %v3123 = vtanh.pop %v3117
    %v3124 = vtanh.pop %v3120
    %v3125 = vpack.c.bf16 %v3124, %v3123
    %v3126 = vld [vmem:[%s19] sm:$0xf]
    %v3127 = vld [vmem:[%s19 + $0x4] sm:$0xf]
    %v3128 = vld [vmem:[%s19 + $0x8] sm:$0xf]
    %v3129 = vld [vmem:[%s19 + $0xc] sm:$0xf]
    %v3130 = vld [vmem:[%s19 + $0x10] sm:$0xf]
    %v3131 = vld [vmem:[%s19 + $0x14] sm:$0xf]
    %v3132 = vld [vmem:[%s19 + $0x18] sm:$0xf]
    %v3133 = vld [vmem:[%s19 + $0x1c] sm:$0xf]
    %v3134 = vld [vmem:[%s20] sm:$0x1]
    %v3136 = vlaneseq
    %v3137 = vshrl.u32 %v3136, 7
    %v3138 = vsub.s32 0, %v3137
    %v3139 = vrot.slane %v3134, %v3138
    %v3149 = vunpack.c.l.b16 %v3126
    %v3150 = vunpack.c.l.b16 %v3127
    %v3151 = vunpack.c.l.b16 %v3128
    %v3152 = vunpack.c.l.b16 %v3129
    %v3153 = vunpack.c.l.b16 %v3130
    %v3154 = vunpack.c.l.b16 %v3131
    %v3155 = vunpack.c.l.b16 %v3132
    %v3156 = vunpack.c.l.b16 %v3133
    %v3157 = vpack.c.b16 %v3150, %v3149
    %v3158 = vpack.c.b16 %v3152, %v3151
    %v3159 = vpack.c.b16 %v3154, %v3153
    %v3160 = vpack.c.b16 %v3156, %v3155
    %v3166 = vsel %vm77, %v3125, 0
    %3168 = vmatprep.subr.bf16.mxu0 0
    %3169 = vmatpush1.bf16.msra.mxu0 %v3157
    %3170 = vmatprep.subr.bf16.mxu0 0
    %3171 = vmatpush1.bf16.msra.mxu0 %v3158
    %3172 = vmatprep.subr.bf16.mxu0 0
    %3173 = vmatpush1.bf16.msra.mxu0 %v3159
    %3174 = vmatprep.subr.bf16.mxu0 0
    %3175 = vmatpush1.bf16.msra.mxu0 %v3160
    %3176 = vmatprep.subr.bf16.mxu0 0
    %3177 = vmatpush1.bf16.msra.mxu0 0
    %3178 = vmatprep.subr.bf16.mxu0 0
    %3179 = vmatpush1.bf16.msra.mxu0 0
    %3180 = vmatprep.subr.bf16.mxu0 0
    %3181 = vmatpush1.bf16.msra.mxu0 0
    %3182 = vmatprep.subr.bf16.mxu0 0
    %3183 = vmatpush1.bf16.msra.mxu0 0
    %3184 = vmatprep.subr.bf16.mxu0 0
    %3185 = vmatpush1.bf16.msra.mxu0 0
    %3186 = vmatprep.subr.bf16.mxu0 0
    %3187 = vmatpush1.bf16.msra.mxu0 0
    %3188 = vmatprep.subr.bf16.mxu0 0
    %3189 = vmatpush1.bf16.msra.mxu0 0
    %3190 = vmatprep.subr.bf16.mxu0 0
    %3191 = vmatpush1.bf16.msra.mxu0 0
    %3192 = vmatprep.subr.bf16.mxu0 0
    %3193 = vmatpush1.bf16.msra.mxu0 0
    %3194 = vmatprep.subr.bf16.mxu0 0
    %3195 = vmatpush1.bf16.msra.mxu0 0
    %3196 = vmatprep.subr.bf16.mxu0 0
    %3197 = vmatpush1.bf16.msra.mxu0 0
    %3198 = vmatprep.subr.bf16.mxu0 0
    %3199 = vmatpush1.bf16.msra.mxu0 0
    %3200 = vmatprep.mubr.bf16.mxu0 0
    %3201 = vmatmul.mubr.bf16.gmra.mrb[0].mxu0 %v3166
    %v3202 = vpop.f32.mrb[0].mxu0
    %v3203 = vadd.f32 %v3139, %v3202
    %v3204 = vpop.f32.mrb[0].mxu0
    %v3205 = vpop.f32.mrb[0].mxu0
    %v3206 = vadd.f32 %v3139, %v3205
    %v3207 = vpop.f32.mrb[0].mxu0
    %3208 = vdwg.mxu0
    %vm3209 = vcmask 16384
    %3210 = vst.msk [vmem:[#allocation4] sm:$0x1] %vm3209, %v3203
    %3211 = vst.msk [vmem:[#allocation4 + $0x1] sm:$0x1] %vm3209, %v3206
    %vm3212 = vcmask 23552
    %v3213 = vsel %vm3212, %v3203, -inf
    %3214 = vmax.xlane.f32.xlu0 %v3213
    %v3215 = vpop.xlane.xlu0 %3214
    %v3216 = vsel %vm3212, %v3206, -inf
    %3217 = vmax.xlane.f32.xlu0 %v3216
    %v3218 = vpop.xlane.xlu0 %3217
    %v3219 = vsub.f32 %v3203, %v3215
    %v3220 = vsub.f32 %v3206, %v3218
    %v3221 = vmul.f32 %v3219, 1.442695
    %v3222 = vpow.pop %v3221
    %v3223 = vmul.f32 %v3220, 1.442695
    %v3224 = vpow.pop %v3223
    %v3225 = vsel %vm3212, %v3222, 0.0
    %3226 = vadd.xlane.f32.xlu0 %v3225
    %v3227 = vpop.xlane.xlu0 %3226
    %v3228 = vsel %vm3212, %v3224, 0.0
    %3229 = vadd.xlane.f32.xlu0 %v3228
    %v3230 = vpop.xlane.xlu0 %3229
    %v3231 = vlog2.pop %v3227
    %v3232 = vmul.f32 %v3231, 0.6931472
    %v3233 = vlog2.pop %v3230
    %v3234 = vmul.f32 %v3233, 0.6931472
    %v3235 = vsub.f32 %v3219, %v3232
    %v3236 = vsub.f32 %v3220, %v3234
    %v3237 = vld [vmem:[%s2] sm:$0xff]
    %v3238 = vld [vmem:[%s2 + $0x8] sm:$0xff]
    %v3239 = vmul.f32 %v3237, %v3235
    %v3240 = vmul.f32 %v3238, %v3236
    %v3241 = vsel %vm3212, %v3239, 0.0
    %v3242 = vsel %vm3212, %v3240, 0.0
    %v3243 = vadd.f32 %v3241, %v3242
    %3244 = vadd.xlane.f32.xlu0 %v3243
    %v3245 = vpop.xlane.xlu0 %3244
    %v3246 = vrot.slane %v3245, 4
    %v3247 = vadd.f32 %v3245, %v3246
    %v3248 = vrot.slane %v3247, 2
    %v3249 = vadd.f32 %v3247, %v3248
    %v3250 = vrot.slane %v3249, 1
    %v3251 = vadd.f32 %v3249, %v3250
    %s3252 = vtos %v3251
    %s3253 = ssub.f32 0.0, %s3252
    %v3254 = vrcp.pop 2.0
    %s3255 = vtos %v3254
    %s3256 = smul.f32 %s3253, %s3255
    %v3257 = vstv %s3256
    %vm3258 = vcmask 0
    %3259 = vst.msk [vmem:[#allocation6] sm:$0x1] %vm3258, %v3257
    // Predicated region
    $region86: #{forward.1} parent=1 // pred_check
      _
    $region87: #{forward.1} parent=1 // pred_check_branch
      %3261 = sbr.rel (0) target = $region89
    $region88: #{forward.1} parent=1 // pred_region
      %s3263 = ssub.s32 32, 32
      %3264 = vsyncadd [#allocation5], %s3263
      %s3266 = sshll.u32 [#allocation4], 4
      %s3267 = int_to_ptr.vmem [resolvable:$true] %s3266
      %3269 = dma.vmem_to_hbm [thread:$0]  %s3267, 32, %s21, [#allocation5]
    $region89: #{forward.1} parent=1 // pred_fallthru
      _
    // Predicated region
    $region90: #{forward.1} parent=1 // pred_check
      _
    $region91: #{forward.1} parent=1 // pred_check_branch
      %3271 = sbr.rel (0) target = $region93
    $region92: #{forward.1} parent=1 // pred_region
      %s3273 = ssub.s32 16, 16
      %3274 = vsyncadd [#allocation7], %s3273
      %s3276 = sshll.u32 [#allocation6], 4
      %s3277 = int_to_ptr.vmem [resolvable:$true] %s3276
      %3279 = dma.vmem_to_hbm [thread:$0]  %s3277, 16, %s22, [#allocation7]
    $region93: #{forward.1} parent=1 // pred_fallthru
      _
    // Predicated region
    $region94: #{forward.1} parent=1 // pred_check
      _
    $region95: #{forward.1} parent=1 // pred_check_branch
      %3281 = sbr.rel (0) target = $region97
    $region96: #{forward.1} parent=1 // pred_region
      %3282 = dma.done [#allocation5], 32
    $region97: #{forward.1} parent=1 // pred_fallthru
      _
    // Predicated region
    $region98: #{forward.1} parent=1 // pred_check
      _
    $region99: #{forward.1} parent=1 // pred_check_branch
      %3284 = sbr.rel (0) target = $region101
    $region100: #{forward.1} parent=1 // pred_region
      %3285 = dma.done [#allocation7], 16
    $region101: #{forward.1} parent=1 // pred_fallthru
      _
    %3286 = vsyncpa [#allocation5], 1
    %3287 = vsyncpa [#allocation7], 1

</llo_original>
